<compile_context>
chip_gen: v7x
topology: tpu7x:2x2x1
jax: 0.10.0
libtpu: 0.0.40
codegen_flags: <defaults>
</compile_context>

<pallas_src>
import jax
import jax.numpy as jnp
from jax.experimental import pallas as pl
from jax.experimental.pallas import tpu as pltpu

# ----------------------------- configuration --------------------------------
BATCH = 2
CHANNELS = 4
SEQ_LEN = 64
PATCH_LEN = 8
PATCH_STRIDE = 8          # stride == patch_len -> patchify is a pure reshape
D_MODEL = 32
EXPANSION = 2
NUM_LAYERS = 2
NUM_PATCHES = (SEQ_LEN - PATCH_LEN) // PATCH_STRIDE + 1   # 8
MIN_SCALE = 1e-5          # std scaler minimum_scale
LN_EPS = 1e-5             # LayerNorm eps
LANE = 128


# ----------------------------- math helpers ---------------------------------
def _layernorm(x, g, b):
    mu = jnp.mean(x, axis=-1, keepdims=True)
    var = jnp.mean((x - mu) ** 2, axis=-1, keepdims=True)
    return (x - mu) / jnp.sqrt(var + LN_EPS) * g + b


def _gelu(x):
    # exact (erf) GELU, matching torch.nn.functional.gelu default
    return 0.5 * x * (1.0 + jax.lax.erf(x / jnp.sqrt(2.0)))


def _softmax_ref(x):
    m = jnp.max(x, axis=-1, keepdims=True)
    e = jnp.exp(x - m)
    return e / jnp.sum(e, axis=-1, keepdims=True)


def _softmax_fast(x):
    # kernel-side softmax: reciprocal runs on the EUP instead of a VPU divide
    m = jnp.max(x, axis=-1, keepdims=True)
    e = jnp.exp(x - m)
    return e * pl.reciprocal(jnp.sum(e, axis=-1, keepdims=True), approx=True)


# ----------------------------- weight packing --------------------------------
def pack_params(params):
    """Pack weights into two lane-padded [R,128] slabs.

    Slab 0 (bf16): all matmul weights (gate weights pre-folded with W2 in f32).
    Slab 1 (f32):  LayerNorm gamma/beta and all biases (gate bias pre-folded).
    Every entry starts at an 8-aligned row; kernel reads static
    [off:off+rows, :cols] slices.  Returns ((wslab, bslab), meta) with
    meta[name] = (slab_id, row_offset, rows, cols).
    """
    HI = jax.lax.Precision.HIGHEST

    w_entries = [("emb_w", params["emb_w"])]
    b_entries = [("emb_b", params["emb_b"])]
    for l in range(NUM_LAYERS):
        # fold the gate projection: gate = softmax(h1 @ (W2@Wg) + (b2@Wg + bg))
        pm_wg_f = jnp.dot(params["pm_w2"][l], params["pm_wg"][l], precision=HI)
        pm_bg_f = (jnp.dot(params["pm_b2"][l], params["pm_wg"][l], precision=HI)
                   + params["pm_bg"][l])
        fm_wg_f = jnp.dot(params["fm_w2"][l], params["fm_wg"][l], precision=HI)
        fm_bg_f = (jnp.dot(params["fm_b2"][l], params["fm_wg"][l], precision=HI)
                   + params["fm_bg"][l])

        w_entries += [
            (f"pm_w1_{l}", params["pm_w1"][l]),
            (f"pm_w2_{l}", params["pm_w2"][l]),
            (f"pm_wg_{l}", pm_wg_f),
            (f"fm_w1_{l}", params["fm_w1"][l]),
            (f"fm_w2_{l}", params["fm_w2"][l]),
            (f"fm_wg_{l}", fm_wg_f),
        ]
        b_entries += [
            (f"pm_ln_g_{l}", params["pm_ln_g"][l]),
            (f"pm_ln_b_{l}", params["pm_ln_b"][l]),
            (f"pm_b1_{l}", params["pm_b1"][l]),
            (f"pm_b2_{l}", params["pm_b2"][l]),
            (f"pm_bg_{l}", pm_bg_f),
            (f"fm_ln_g_{l}", params["fm_ln_g"][l]),
            (f"fm_ln_b_{l}", params["fm_ln_b"][l]),
            (f"fm_b1_{l}", params["fm_b1"][l]),
            (f"fm_b2_{l}", params["fm_b2"][l]),
            (f"fm_bg_{l}", fm_bg_f),
        ]

    def build(entries, dtype):
        meta, pieces, row = {}, [], 0
        for name, arr in entries:
            r, c = int(arr.shape[0]), int(arr.shape[1])
            pr = -(-r // 8) * 8
            block = jnp.zeros((pr, LANE), jnp.float32)
            block = block.at[:r, :c].set(arr.astype(jnp.float32))
            meta[name] = (row, r, c)
            pieces.append(block)
            row += pr
        return jnp.concatenate(pieces, axis=0).astype(dtype), meta

    wslab, wmeta = build(w_entries, jnp.bfloat16)
    bslab, bmeta = build(b_entries, jnp.float32)

    meta = {name: (0,) + v for name, v in wmeta.items()}
    meta.update({name: (1,) + v for name, v in bmeta.items()})
    return (wslab, bslab), meta


# ----------------------------- patchify (glue) ------------------------------
def patchify(x):
    # stride == patch_len -> unfold is a reshape + transpose ([B,L,C]->[B,C,N,P])
    B, L, C = x.shape
    new_len = PATCH_LEN + PATCH_STRIDE * (NUM_PATCHES - 1)
    x = x[:, L - new_len:, :]
    x = x.reshape(B, NUM_PATCHES, PATCH_LEN, C)
    return jnp.transpose(x, (0, 3, 1, 2))


# ----------------------------- fused backbone kernel ------------------------
def make_backbone(meta, batch):
    B, C, N, P, D = batch, CHANNELS, NUM_PATCHES, PATCH_LEN, D_MODEL
    BC, BCN = B * C, B * C * N

    def kernel(x_ref, m_ref, wslab_ref, bslab_ref,
               out_ref, patch_ref, stats_ref):
        slab_refs = (wslab_ref, bslab_ref)

        def W(name):                       # static row + lane slice of a slab
            sid, off, rows, cols = meta[name]
            return slab_refs[sid][off:off + rows, :cols]

        def mm(a_bf16, name):              # MXU: bf16 x bf16 -> f32 accumulate
            return jnp.dot(a_bf16, W(name), preferred_element_type=jnp.float32)

        def bf(a):
            return a.astype(jnp.bfloat16)

        # ---------------- std scaler (observed-mask aware), exact f32 --------
        x = x_ref[...]                     # [B, C, N, P] raw patchified values
        m = m_ref[...]

        def sum_np(a):                     # sum over (patch, in-patch) axes
            return jnp.sum(jnp.sum(a, axis=3, keepdims=True),
                           axis=2, keepdims=True)

        denom = jnp.maximum(sum_np(m), 1.0)                       # [B,C,1,1]
        loc = sum_np(x * m) / denom
        var = sum_np(((x - loc) * m) ** 2) / denom
        scale = jnp.sqrt(var + MIN_SCALE)
        scaled = (x - loc) / scale                                 # [B,C,N,P]

        patch_ref[...] = scaled
        stats_ref[...] = jnp.concatenate(
            [loc.reshape(B, C, 1), scale.reshape(B, C, 1)], axis=-1)   # [B,C,2]

        # ---------------- encoder: patch embedding ---------------------------
        h = mm(bf(scaled.reshape(BCN, P)), "emb_w") + W("emb_b")   # [B*C*N, D]

        for l in range(NUM_LAYERS):        # static unroll
            # ---- patch mixer: MLP over num_patches + gated attention over N --
            res = h
            hn = _layernorm(h, W(f"pm_ln_g_{l}"), W(f"pm_ln_b_{l}"))
            # [B*C*N, D] -> [B*C*D, N]: one batched minor-dim transpose
            t = jnp.swapaxes(hn.reshape(BC, N, D), -1, -2).reshape(BC * D, N)
            h1 = bf(_gelu(mm(bf(t), f"pm_w1_{l}") + W(f"pm_b1_{l}")))
            t2 = mm(h1, f"pm_w2_{l}") + W(f"pm_b2_{l}")            # [B*C*D, N]
            gate = _softmax_fast(mm(h1, f"pm_wg_{l}") + W(f"pm_bg_{l}"))
            t2 = t2 * gate
            h = res + jnp.swapaxes(t2.reshape(BC, D, N), -1, -2).reshape(BCN, D)

            # ---- feature mixer: MLP over d_model + gated attention over D ----
            res = h
            hn = _layernorm(h, W(f"fm_ln_g_{l}"), W(f"fm_ln_b_{l}"))
            h1 = bf(_gelu(mm(bf(hn), f"fm_w1_{l}") + W(f"fm_b1_{l}")))
            t2 = mm(h1, f"fm_w2_{l}") + W(f"fm_b2_{l}")            # [B*C*N, D]
            gate = _softmax_fast(mm(h1, f"fm_wg_{l}") + W(f"fm_bg_{l}"))
            h = res + t2 * gate

        # lane-dense hidden output: [B, N, C*D] = [2, 8, 128], one full store
        h4 = h.reshape(B, C, N, D)
        out_ref[...] = jnp.concatenate([h4[:, c] for c in range(C)], axis=-1)

    def call(x_p, m_p, wslab, bslab):
        in_specs = [
            pl.BlockSpec((B, C, N, P), lambda i: (0, 0, 0, 0)),
            pl.BlockSpec((B, C, N, P), lambda i: (0, 0, 0, 0)),
            pl.BlockSpec(wslab.shape, lambda i: (0, 0)),
            pl.BlockSpec(bslab.shape, lambda i: (0, 0)),
        ]
        out_specs = (
            pl.BlockSpec((B, N, C * D), lambda i: (0, 0, 0)),
            pl.BlockSpec((B, C, N, P), lambda i: (0, 0, 0, 0)),
            pl.BlockSpec((B, C, 2), lambda i: (0, 0, 0)),
        )
        out_shape = (
            jax.ShapeDtypeStruct((B, N, C * D), jnp.float32),
            jax.ShapeDtypeStruct((B, C, N, P), jnp.float32),
            jax.ShapeDtypeStruct((B, C, 2), jnp.float32),
        )
        return pl.pallas_call(
            kernel,
            grid=(1,),                      # whole problem in one grid step
            in_specs=in_specs,
            out_specs=out_specs,
            out_shape=out_shape,
            compiler_params=pltpu.CompilerParams(
                dimension_semantics=("arbitrary",)),
        )(x_p, m_p, wslab, bslab)

    return call


# ----------------------------- backbone wrapper -----------------------------
def make_ttm_backbone(meta, batch):
    B, C, N, P, D = batch, CHANNELS, NUM_PATCHES, PATCH_LEN, D_MODEL
    backbone_call = make_backbone(meta, batch)

    @jax.jit
    def fwd(past_values, observed_mask, wslab, bslab):
        x_p = patchify(past_values)                    # [B, C, N, P] raw
        m_p = patchify(observed_mask)
        hidden_ncd, patch, stats = backbone_call(x_p, m_p, wslab, bslab)
        hidden = jnp.transpose(hidden_ncd.reshape(B, N, C, D), (0, 2, 1, 3))
        loc = stats[:, :, 0][:, None, :]               # [B, 1, C]
        scale = stats[:, :, 1][:, None, :]
        return {
            "backbone_hidden_state": hidden,           # [B, C, N, D]
            "patch_input": patch,                      # [B, C, N, P]
            "loc": loc,                                # [B, 1, C]
            "scale": scale,                            # [B, 1, C]
        }

    return fwd


def ttm_backbone(fwd, past_values, observed_mask, wslab, bslab):
    if observed_mask is None:
        observed_mask = jnp.ones_like(past_values)
    return fwd(past_values, observed_mask, wslab, bslab)


# ----------------------------- parameter init -------------------------------
def init_params(key):
    ks = jax.random.split(key, 16)

    def w(k, shape, s=0.05):
        return (s * jax.random.normal(k, shape)).astype(jnp.float32)

    N, P, D, E, L = NUM_PATCHES, PATCH_LEN, D_MODEL, EXPANSION, NUM_LAYERS
    return dict(
        emb_w=w(ks[0], (P, D)),
        emb_b=w(ks[1], (1, D)),
        pm_ln_g=jnp.ones((L, 1, D), jnp.float32),
        pm_ln_b=jnp.zeros((L, 1, D), jnp.float32),
        pm_w1=w(ks[2], (L, N, N * E)),
        pm_b1=w(ks[3], (L, 1, N * E)),
        pm_w2=w(ks[4], (L, N * E, N)),
        pm_b2=w(ks[5], (L, 1, N)),
        pm_wg=w(ks[6], (L, N, N)),
        pm_bg=w(ks[7], (L, 1, N)),
        fm_ln_g=jnp.ones((L, 1, D), jnp.float32),
        fm_ln_b=jnp.zeros((L, 1, D), jnp.float32),
        fm_w1=w(ks[8], (L, D, D * E)),
        fm_b1=w(ks[9], (L, 1, D * E)),
        fm_w2=w(ks[10], (L, D * E, D)),
        fm_b2=w(ks[11], (L, 1, D)),
        fm_wg=w(ks[12], (L, D, D)),
        fm_bg=w(ks[13], (L, 1, D)),
    )


# ----------------------------- pure-JAX reference ---------------------------
def ref_backbone(x, mask, params):
    denom = jnp.maximum(jnp.sum(mask, axis=1, keepdims=True), 1.0)
    loc = jnp.sum(x * mask, axis=1, keepdims=True) / denom
    var = jnp.sum(((x - loc) * mask) ** 2, axis=1, keepdims=True) / denom
    scale = jnp.sqrt(var + MIN_SCALE)
    scaled = (x - loc) / scale
    patched = patchify(scaled)
    h = patched @ params["emb_w"] + params["emb_b"]
    for l in range(NUM_LAYERS):
        res = h
        hn = _layernorm(h, params["pm_ln_g"][l], params["pm_ln_b"][l])
        t = jnp.swapaxes(hn, -1, -2)
        t = _gelu(t @ params["pm_w1"][l] + params["pm_b1"][l])
        t = t @ params["pm_w2"][l] + params["pm_b2"][l]
        gate = _softmax_ref(t @ params["pm_wg"][l] + params["pm_bg"][l])
        t = t * gate
        h = jnp.swapaxes(t, -1, -2) + res

        res = h
        hn = _layernorm(h, params["fm_ln_g"][l], params["fm_ln_b"][l])
        t = _gelu(hn @ params["fm_w1"][l] + params["fm_b1"][l])
        t = t @ params["fm_w2"][l] + params["fm_b2"][l]
        gate = _softmax_ref(t @ params["fm_wg"][l] + params["fm_bg"][l])
        t = t * gate
        h = t + res
    return h, patched, loc, scale


# ----------------------------------- main ------------------------------------
if __name__ == "__main__":
    key = jax.random.PRNGKey(0)
    k_x, k_m, k_p = jax.random.split(key, 3)

    past_values = jax.random.normal(k_x, (BATCH, SEQ_LEN, CHANNELS), jnp.float32)
    observed_mask = (jax.random.uniform(k_m, (BATCH, SEQ_LEN, CHANNELS)) > 0.1
                     ).astype(jnp.float32)
    params = init_params(k_p)
    (wslab, bslab), meta = pack_params(params)

    fwd = make_ttm_backbone(meta, BATCH)
    out = ttm_backbone(fwd, past_values, observed_mask, wslab, bslab)
    out = jax.tree_util.tree_map(jax.block_until_ready, out)

    # correctness check vs pure-JAX reference
    with jax.default_matmul_precision("highest"):
        ref_h, ref_patch, ref_loc, ref_scale = ref_backbone(
            past_values, observed_mask, params)

    assert out["backbone_hidden_state"].shape == (BATCH, CHANNELS, NUM_PATCHES,
                                                  D_MODEL)
    assert jnp.allclose(out["patch_input"], ref_patch, atol=1e-5, rtol=1e-5)
    assert jnp.allclose(out["loc"], ref_loc, atol=1e-3, rtol=1e-3)
    assert jnp.allclose(out["scale"], ref_scale, atol=1e-3, rtol=1e-3)
    assert jnp.allclose(out["backbone_hidden_state"], ref_h, atol=1e-2, rtol=1e-2)

    print("KERNEL_OK")
</pallas_src>

<mosaic_0001>
module attributes {stable_mosaic.version = 11 : i64} {
  func.func @kernel(%arg0: i32, %arg1: memref<2x4x8x8xf32, #tpu.memory_space<vmem>>, %arg2: memref<2x4x8x8xf32, #tpu.memory_space<vmem>>, %arg3: memref<408x128xbf16, #tpu.memory_space<vmem>>, %arg4: memref<168x128xf32, #tpu.memory_space<vmem>>, %arg5: memref<2x8x128xf32, #tpu.memory_space<vmem>>, %arg6: memref<2x4x8x8xf32, #tpu.memory_space<vmem>>, %arg7: memref<2x4x2xf32, #tpu.memory_space<vmem>>) attributes {dimension_semantics = [#tpu.dimension_semantics<arbitrary>], iteration_bounds = array<i64: 1>, scalar_prefetch = 0 : i64, scratch_operands = 0 : i64, tpu.core_type = #tpu.core_type<tc>, window_params = [{pipeline_mode = #tpu.pipeline_mode<synchronous>, transform_indices = @transform_0, window_bounds = array<i64: 2, 4, 8, 8>}, {pipeline_mode = #tpu.pipeline_mode<synchronous>, transform_indices = @transform_1, window_bounds = array<i64: 2, 4, 8, 8>}, {pipeline_mode = #tpu.pipeline_mode<synchronous>, transform_indices = @transform_2, window_bounds = array<i64: 408, 128>}, {pipeline_mode = #tpu.pipeline_mode<synchronous>, transform_indices = @transform_3, window_bounds = array<i64: 168, 128>}, {pipeline_mode = #tpu.pipeline_mode<synchronous>, transform_indices = @transform_4, window_bounds = array<i64: 2, 8, 128>}, {pipeline_mode = #tpu.pipeline_mode<synchronous>, transform_indices = @transform_5, window_bounds = array<i64: 2, 4, 8, 8>}, {pipeline_mode = #tpu.pipeline_mode<synchronous>, transform_indices = @transform_6, window_bounds = array<i64: 2, 4, 2>}]} {
    %c0 = arith.constant 0 : index
    %c0_0 = arith.constant 0 : index
    %c0_1 = arith.constant 0 : index
    %c0_2 = arith.constant 0 : index
    %0 = vector.load %arg1[%c0, %c0_0, %c0_1, %c0_2] : memref<2x4x8x8xf32, #tpu.memory_space<vmem>>, vector<2x4x8x8xf32>
    %c0_3 = arith.constant 0 : index
    %c0_4 = arith.constant 0 : index
    %c0_5 = arith.constant 0 : index
    %c0_6 = arith.constant 0 : index
    %1 = vector.load %arg2[%c0_3, %c0_4, %c0_5, %c0_6] : memref<2x4x8x8xf32, #tpu.memory_space<vmem>>, vector<2x4x8x8xf32>
    %cst = arith.constant dense<0.000000e+00> : vector<2x4x8xf32>
    %2 = vector.multi_reduction <add>, %1, %cst [3] : vector<2x4x8x8xf32> to vector<2x4x8xf32>
    %3 = vector.shape_cast %2 : vector<2x4x8xf32> to vector<2x4x8x1xf32>
    %cst_7 = arith.constant dense<0.000000e+00> : vector<2x4x1xf32>
    %4 = vector.multi_reduction <add>, %3, %cst_7 [2] : vector<2x4x8x1xf32> to vector<2x4x1xf32>
    %5 = vector.shape_cast %4 : vector<2x4x1xf32> to vector<2x4x1x1xf32>
    %cst_8 = arith.constant 1.000000e+00 : f32
    %6 = vector.broadcast %cst_8 : f32 to vector<2x4x1x1xf32>
    %7 = arith.maximumf %5, %6 : vector<2x4x1x1xf32>
    %8 = arith.mulf %0, %1 : vector<2x4x8x8xf32>
    %cst_9 = arith.constant dense<0.000000e+00> : vector<2x4x8xf32>
    %9 = vector.multi_reduction <add>, %8, %cst_9 [3] : vector<2x4x8x8xf32> to vector<2x4x8xf32>
    %10 = vector.shape_cast %9 : vector<2x4x8xf32> to vector<2x4x8x1xf32>
    %cst_10 = arith.constant dense<0.000000e+00> : vector<2x4x1xf32>
    %11 = vector.multi_reduction <add>, %10, %cst_10 [2] : vector<2x4x8x1xf32> to vector<2x4x1xf32>
    %12 = vector.shape_cast %11 : vector<2x4x1xf32> to vector<2x4x1x1xf32>
    %13 = arith.divf %12, %7 : vector<2x4x1x1xf32>
    %14 = vector.broadcast %13 : vector<2x4x1x1xf32> to vector<2x4x8x8xf32>
    %15 = arith.subf %0, %14 : vector<2x4x8x8xf32>
    %16 = arith.mulf %15, %1 : vector<2x4x8x8xf32>
    %17 = arith.mulf %16, %16 : vector<2x4x8x8xf32>
    %cst_11 = arith.constant dense<0.000000e+00> : vector<2x4x8xf32>
    %18 = vector.multi_reduction <add>, %17, %cst_11 [3] : vector<2x4x8x8xf32> to vector<2x4x8xf32>
    %19 = vector.shape_cast %18 : vector<2x4x8xf32> to vector<2x4x8x1xf32>
    %cst_12 = arith.constant dense<0.000000e+00> : vector<2x4x1xf32>
    %20 = vector.multi_reduction <add>, %19, %cst_12 [2] : vector<2x4x8x1xf32> to vector<2x4x1xf32>
    %21 = vector.shape_cast %20 : vector<2x4x1xf32> to vector<2x4x1x1xf32>
    %22 = arith.divf %21, %7 : vector<2x4x1x1xf32>
    %cst_13 = arith.constant 9.99999974E-6 : f32
    %23 = vector.broadcast %cst_13 : f32 to vector<2x4x1x1xf32>
    %24 = arith.addf %22, %23 : vector<2x4x1x1xf32>
    %25 = math.sqrt %24 : vector<2x4x1x1xf32>
    %26 = vector.broadcast %13 : vector<2x4x1x1xf32> to vector<2x4x8x8xf32>
    %27 = arith.subf %0, %26 : vector<2x4x8x8xf32>
    %28 = vector.broadcast %25 : vector<2x4x1x1xf32> to vector<2x4x8x8xf32>
    %29 = arith.divf %27, %28 : vector<2x4x8x8xf32>
    %c0_14 = arith.constant 0 : index
    %c0_15 = arith.constant 0 : index
    %c0_16 = arith.constant 0 : index
    %c0_17 = arith.constant 0 : index
    %30 = vector.load %arg6[%c0_14, %c0_15, %c0_16, %c0_17] : memref<2x4x8x8xf32, #tpu.memory_space<vmem>>, vector<2x4x8x8xf32>
    tpu.vector_store %arg6[%c0_14, %c0_15, %c0_16, %c0_17], %29 {strides = array<i32>} : memref<2x4x8x8xf32, #tpu.memory_space<vmem>>, vector<2x4x8x8xf32>,
    %31 = vector.shape_cast %13 : vector<2x4x1x1xf32> to vector<2x4x1xf32>
    %32 = vector.shape_cast %25 : vector<2x4x1x1xf32> to vector<2x4x1xf32>
    %33 = tpu.concatenate %31, %32 in 2 : vector<2x4x1xf32>, vector<2x4x1xf32> -> vector<2x4x2xf32>
    %c0_18 = arith.constant 0 : index
    %c0_19 = arith.constant 0 : index
    %c0_20 = arith.constant 0 : index
    %34 = vector.load %arg7[%c0_18, %c0_19, %c0_20] : memref<2x4x2xf32, #tpu.memory_space<vmem>>, vector<2x4x2xf32>
    tpu.vector_store %arg7[%c0_18, %c0_19, %c0_20], %33 {strides = array<i32>} : memref<2x4x2xf32, #tpu.memory_space<vmem>>, vector<2x4x2xf32>,
    %35 = vector.shape_cast %29 : vector<2x4x8x8xf32> to vector<64x8xf32>
    %36 = arith.truncf %35 : vector<64x8xf32> to vector<64x8xbf16>
    %c0_21 = arith.constant 0 : index
    %c0_22 = arith.constant 0 : index
    %37 = vector.load %arg3[%c0_21, %c0_22] : memref<408x128xbf16, #tpu.memory_space<vmem>>, vector<8x32xbf16>
    %cst_23 = arith.constant dense<0.000000e+00> : vector<64x32xf32>
    %38 = tpu.matmul %36, %37, %cst_23 {dimension_numbers = #tpu.dot_dimension_numbers<[1], [0], [0], [1], [0, 0, 1, 1], [], []>} : vector<64x8xbf16>, vector<8x32xbf16>, vector<64x32xf32> -> vector<64x32xf32>
    %c0_24 = arith.constant 0 : index
    %c0_25 = arith.constant 0 : index
    %39 = vector.load %arg4[%c0_24, %c0_25] : memref<168x128xf32, #tpu.memory_space<vmem>>, vector<1x32xf32>
    %40 = vector.broadcast %39 : vector<1x32xf32> to vector<64x32xf32>
    %41 = arith.addf %38, %40 : vector<64x32xf32>
    %c8 = arith.constant 8 : index
    %c0_26 = arith.constant 0 : index
    %42 = vector.load %arg4[%c8, %c0_26] : memref<168x128xf32, #tpu.memory_space<vmem>>, vector<1x32xf32>
    %c16 = arith.constant 16 : index
    %c0_27 = arith.constant 0 : index
    %43 = vector.load %arg4[%c16, %c0_27] : memref<168x128xf32, #tpu.memory_space<vmem>>, vector<1x32xf32>
    %cst_28 = arith.constant dense<0.000000e+00> : vector<64xf32>
    %44 = vector.multi_reduction <add>, %41, %cst_28 [1] : vector<64x32xf32> to vector<64xf32>
    %45 = vector.shape_cast %44 : vector<64xf32> to vector<64x1xf32>
    %cst_29 = arith.constant 3.200000e+01 : f32
    %46 = vector.broadcast %cst_29 : f32 to vector<64x1xf32>
    %47 = arith.divf %45, %46 : vector<64x1xf32>
    %48 = vector.broadcast %47 : vector<64x1xf32> to vector<64x32xf32>
    %49 = arith.subf %41, %48 : vector<64x32xf32>
    %50 = arith.mulf %49, %49 : vector<64x32xf32>
    %cst_30 = arith.constant dense<0.000000e+00> : vector<64xf32>
    %51 = vector.multi_reduction <add>, %50, %cst_30 [1] : vector<64x32xf32> to vector<64xf32>
    %52 = vector.shape_cast %51 : vector<64xf32> to vector<64x1xf32>
    %cst_31 = arith.constant 3.200000e+01 : f32
    %53 = vector.broadcast %cst_31 : f32 to vector<64x1xf32>
    %54 = arith.divf %52, %53 : vector<64x1xf32>
    %55 = vector.broadcast %47 : vector<64x1xf32> to vector<64x32xf32>
    %56 = arith.subf %41, %55 : vector<64x32xf32>
    %cst_32 = arith.constant 9.99999974E-6 : f32
    %57 = vector.broadcast %cst_32 : f32 to vector<64x1xf32>
    %58 = arith.addf %54, %57 : vector<64x1xf32>
    %59 = math.sqrt %58 : vector<64x1xf32>
    %60 = vector.broadcast %59 : vector<64x1xf32> to vector<64x32xf32>
    %61 = arith.divf %56, %60 : vector<64x32xf32>
    %62 = vector.broadcast %42 : vector<1x32xf32> to vector<64x32xf32>
    %63 = arith.mulf %61, %62 : vector<64x32xf32>
    %64 = vector.broadcast %43 : vector<1x32xf32> to vector<64x32xf32>
    %65 = arith.addf %63, %64 : vector<64x32xf32>
    %66 = vector.shape_cast %65 : vector<64x32xf32> to vector<8x8x32xf32>
    %67 = tpu.transpose %66, [0, 2, 1] : vector<8x8x32xf32> -> vector<8x32x8xf32>
    %68 = vector.shape_cast %67 : vector<8x32x8xf32> to vector<256x8xf32>
    %69 = arith.truncf %68 : vector<256x8xf32> to vector<256x8xbf16>
    %c8_33 = arith.constant 8 : index
    %c0_34 = arith.constant 0 : index
    %70 = vector.load %arg3[%c8_33, %c0_34] : memref<408x128xbf16, #tpu.memory_space<vmem>>, vector<8x16xbf16>
    %cst_35 = arith.constant dense<0.000000e+00> : vector<256x16xf32>
    %71 = tpu.matmul %69, %70, %cst_35 {dimension_numbers = #tpu.dot_dimension_numbers<[1], [0], [0], [1], [0, 0, 1, 1], [], []>} : vector<256x8xbf16>, vector<8x16xbf16>, vector<256x16xf32> -> vector<256x16xf32>
    %c24 = arith.constant 24 : index
    %c0_36 = arith.constant 0 : index
    %72 = vector.load %arg4[%c24, %c0_36] : memref<168x128xf32, #tpu.memory_space<vmem>>, vector<1x16xf32>
    %73 = vector.broadcast %72 : vector<1x16xf32> to vector<256x16xf32>
    %74 = arith.addf %71, %73 : vector<256x16xf32>
    %cst_37 = arith.constant 5.000000e-01 : f32
    %75 = vector.broadcast %cst_37 : f32 to vector<256x16xf32>
    %76 = arith.mulf %75, %74 : vector<256x16xf32>
    %cst_38 = arith.constant 2.000000e+00 : f32
    %77 = math.sqrt %cst_38 : f32
    %78 = vector.broadcast %77 : f32 to vector<256x16xf32>
    %79 = arith.divf %74, %78 : vector<256x16xf32>
    %80 = math.erf %79 : vector<256x16xf32>
    %cst_39 = arith.constant 1.000000e+00 : f32
    %81 = vector.broadcast %cst_39 : f32 to vector<256x16xf32>
    %82 = arith.addf %81, %80 : vector<256x16xf32>
    %83 = arith.mulf %76, %82 : vector<256x16xf32>
    %84 = arith.truncf %83 : vector<256x16xf32> to vector<256x16xbf16>
    %c16_40 = arith.constant 16 : index
    %c0_41 = arith.constant 0 : index
    %85 = vector.load %arg3[%c16_40, %c0_41] : memref<408x128xbf16, #tpu.memory_space<vmem>>, vector<16x8xbf16>
    %cst_42 = arith.constant dense<0.000000e+00> : vector<256x8xf32>
    %86 = tpu.matmul %84, %85, %cst_42 {dimension_numbers = #tpu.dot_dimension_numbers<[1], [0], [0], [1], [0, 0, 1, 1], [], []>} : vector<256x16xbf16>, vector<16x8xbf16>, vector<256x8xf32> -> vector<256x8xf32>
    %c32 = arith.constant 32 : index
    %c0_43 = arith.constant 0 : index
    %87 = vector.load %arg4[%c32, %c0_43] : memref<168x128xf32, #tpu.memory_space<vmem>>, vector<1x8xf32>
    %88 = vector.broadcast %87 : vector<1x8xf32> to vector<256x8xf32>
    %89 = arith.addf %86, %88 : vector<256x8xf32>
    %c32_44 = arith.constant 32 : index
    %c0_45 = arith.constant 0 : index
    %90 = vector.load %arg3[%c32_44, %c0_45] : memref<408x128xbf16, #tpu.memory_space<vmem>>, vector<16x8xbf16>
    %cst_46 = arith.constant dense<0.000000e+00> : vector<256x8xf32>
    %91 = tpu.matmul %84, %90, %cst_46 {dimension_numbers = #tpu.dot_dimension_numbers<[1], [0], [0], [1], [0, 0, 1, 1], [], []>} : vector<256x16xbf16>, vector<16x8xbf16>, vector<256x8xf32> -> vector<256x8xf32>
    %c40 = arith.constant 40 : index
    %c0_47 = arith.constant 0 : index
    %92 = vector.load %arg4[%c40, %c0_47] : memref<168x128xf32, #tpu.memory_space<vmem>>, vector<1x8xf32>
    %93 = vector.broadcast %92 : vector<1x8xf32> to vector<256x8xf32>
    %94 = arith.addf %91, %93 : vector<256x8xf32>
    %cst_48 = arith.constant dense<0xFF800000> : vector<256xf32>
    %95 = vector.multi_reduction <maximumf>, %94, %cst_48 [1] : vector<256x8xf32> to vector<256xf32>
    %96 = vector.shape_cast %95 : vector<256xf32> to vector<256x1xf32>
    %97 = vector.broadcast %96 : vector<256x1xf32> to vector<256x8xf32>
    %98 = arith.subf %94, %97 : vector<256x8xf32>
    %99 = math.exp %98 : vector<256x8xf32>
    %cst_49 = arith.constant dense<0.000000e+00> : vector<256xf32>
    %100 = vector.multi_reduction <add>, %99, %cst_49 [1] : vector<256x8xf32> to vector<256xf32>
    %101 = vector.shape_cast %100 : vector<256xf32> to vector<256x1xf32>
    %102 = tpu.reciprocal %101 {approx = true} : vector<256x1xf32> -> vector<256x1xf32>
    %103 = vector.broadcast %102 : vector<256x1xf32> to vector<256x8xf32>
    %104 = arith.mulf %99, %103 : vector<256x8xf32>
    %105 = arith.mulf %89, %104 : vector<256x8xf32>
    %106 = vector.shape_cast %105 : vector<256x8xf32> to vector<8x32x8xf32>
    %107 = tpu.transpose %106, [0, 2, 1] : vector<8x32x8xf32> -> vector<8x8x32xf32>
    %108 = vector.shape_cast %107 : vector<8x8x32xf32> to vector<64x32xf32>
    %109 = arith.addf %41, %108 : vector<64x32xf32>
    %c48 = arith.constant 48 : index
    %c0_50 = arith.constant 0 : index
    %110 = vector.load %arg4[%c48, %c0_50] : memref<168x128xf32, #tpu.memory_space<vmem>>, vector<1x32xf32>
    %c56 = arith.constant 56 : index
    %c0_51 = arith.constant 0 : index
    %111 = vector.load %arg4[%c56, %c0_51] : memref<168x128xf32, #tpu.memory_space<vmem>>, vector<1x32xf32>
    %cst_52 = arith.constant dense<0.000000e+00> : vector<64xf32>
    %112 = vector.multi_reduction <add>, %109, %cst_52 [1] : vector<64x32xf32> to vector<64xf32>
    %113 = vector.shape_cast %112 : vector<64xf32> to vector<64x1xf32>
    %cst_53 = arith.constant 3.200000e+01 : f32
    %114 = vector.broadcast %cst_53 : f32 to vector<64x1xf32>
    %115 = arith.divf %113, %114 : vector<64x1xf32>
    %116 = vector.broadcast %115 : vector<64x1xf32> to vector<64x32xf32>
    %117 = arith.subf %109, %116 : vector<64x32xf32>
    %118 = arith.mulf %117, %117 : vector<64x32xf32>
    %cst_54 = arith.constant dense<0.000000e+00> : vector<64xf32>
    %119 = vector.multi_reduction <add>, %118, %cst_54 [1] : vector<64x32xf32> to vector<64xf32>
    %120 = vector.shape_cast %119 : vector<64xf32> to vector<64x1xf32>
    %cst_55 = arith.constant 3.200000e+01 : f32
    %121 = vector.broadcast %cst_55 : f32 to vector<64x1xf32>
    %122 = arith.divf %120, %121 : vector<64x1xf32>
    %123 = vector.broadcast %115 : vector<64x1xf32> to vector<64x32xf32>
    %124 = arith.subf %109, %123 : vector<64x32xf32>
    %cst_56 = arith.constant 9.99999974E-6 : f32
    %125 = vector.broadcast %cst_56 : f32 to vector<64x1xf32>
    %126 = arith.addf %122, %125 : vector<64x1xf32>
    %127 = math.sqrt %126 : vector<64x1xf32>
    %128 = vector.broadcast %127 : vector<64x1xf32> to vector<64x32xf32>
    %129 = arith.divf %124, %128 : vector<64x32xf32>
    %130 = vector.broadcast %110 : vector<1x32xf32> to vector<64x32xf32>
    %131 = arith.mulf %129, %130 : vector<64x32xf32>
    %132 = vector.broadcast %111 : vector<1x32xf32> to vector<64x32xf32>
    %133 = arith.addf %131, %132 : vector<64x32xf32>
    %134 = arith.truncf %133 : vector<64x32xf32> to vector<64x32xbf16>
    %c48_57 = arith.constant 48 : index
    %c0_58 = arith.constant 0 : index
    %135 = vector.load %arg3[%c48_57, %c0_58] : memref<408x128xbf16, #tpu.memory_space<vmem>>, vector<32x64xbf16>
    %cst_59 = arith.constant dense<0.000000e+00> : vector<64x64xf32>
    %136 = tpu.matmul %134, %135, %cst_59 {dimension_numbers = #tpu.dot_dimension_numbers<[1], [0], [0], [1], [0, 0, 1, 1], [], []>} : vector<64x32xbf16>, vector<32x64xbf16>, vector<64x64xf32> -> vector<64x64xf32>
    %c64 = arith.constant 64 : index
    %c0_60 = arith.constant 0 : index
    %137 = vector.load %arg4[%c64, %c0_60] : memref<168x128xf32, #tpu.memory_space<vmem>>, vector<1x64xf32>
    %138 = vector.broadcast %137 : vector<1x64xf32> to vector<64x64xf32>
    %139 = arith.addf %136, %138 : vector<64x64xf32>
    %cst_61 = arith.constant 5.000000e-01 : f32
    %140 = vector.broadcast %cst_61 : f32 to vector<64x64xf32>
    %141 = arith.mulf %140, %139 : vector<64x64xf32>
    %cst_62 = arith.constant 2.000000e+00 : f32
    %142 = math.sqrt %cst_62 : f32
    %143 = vector.broadcast %142 : f32 to vector<64x64xf32>
    %144 = arith.divf %139, %143 : vector<64x64xf32>
    %145 = math.erf %144 : vector<64x64xf32>
    %cst_63 = arith.constant 1.000000e+00 : f32
    %146 = vector.broadcast %cst_63 : f32 to vector<64x64xf32>
    %147 = arith.addf %146, %145 : vector<64x64xf32>
    %148 = arith.mulf %141, %147 : vector<64x64xf32>
    %149 = arith.truncf %148 : vector<64x64xf32> to vector<64x64xbf16>
    %c80 = arith.constant 80 : index
    %c0_64 = arith.constant 0 : index
    %150 = vector.load %arg3[%c80, %c0_64] : memref<408x128xbf16, #tpu.memory_space<vmem>>, vector<64x32xbf16>
    %cst_65 = arith.constant dense<0.000000e+00> : vector<64x32xf32>
    %151 = tpu.matmul %149, %150, %cst_65 {dimension_numbers = #tpu.dot_dimension_numbers<[1], [0], [0], [1], [0, 0, 1, 1], [], []>} : vector<64x64xbf16>, vector<64x32xbf16>, vector<64x32xf32> -> vector<64x32xf32>
    %c72 = arith.constant 72 : index
    %c0_66 = arith.constant 0 : index
    %152 = vector.load %arg4[%c72, %c0_66] : memref<168x128xf32, #tpu.memory_space<vmem>>, vector<1x32xf32>
    %153 = vector.broadcast %152 : vector<1x32xf32> to vector<64x32xf32>
    %154 = arith.addf %151, %153 : vector<64x32xf32>
    %c144 = arith.constant 144 : index
    %c0_67 = arith.constant 0 : index
    %155 = vector.load %arg3[%c144, %c0_67] : memref<408x128xbf16, #tpu.memory_space<vmem>>, vector<64x32xbf16>
    %cst_68 = arith.constant dense<0.000000e+00> : vector<64x32xf32>
    %156 = tpu.matmul %149, %155, %cst_68 {dimension_numbers = #tpu.dot_dimension_numbers<[1], [0], [0], [1], [0, 0, 1, 1], [], []>} : vector<64x64xbf16>, vector<64x32xbf16>, vector<64x32xf32> -> vector<64x32xf32>
    %c80_69 = arith.constant 80 : index
    %c0_70 = arith.constant 0 : index
    %157 = vector.load %arg4[%c80_69, %c0_70] : memref<168x128xf32, #tpu.memory_space<vmem>>, vector<1x32xf32>
    %158 = vector.broadcast %157 : vector<1x32xf32> to vector<64x32xf32>
    %159 = arith.addf %156, %158 : vector<64x32xf32>
    %cst_71 = arith.constant dense<0xFF800000> : vector<64xf32>
    %160 = vector.multi_reduction <maximumf>, %159, %cst_71 [1] : vector<64x32xf32> to vector<64xf32>
    %161 = vector.shape_cast %160 : vector<64xf32> to vector<64x1xf32>
    %162 = vector.broadcast %161 : vector<64x1xf32> to vector<64x32xf32>
    %163 = arith.subf %159, %162 : vector<64x32xf32>
    %164 = math.exp %163 : vector<64x32xf32>
    %cst_72 = arith.constant dense<0.000000e+00> : vector<64xf32>
    %165 = vector.multi_reduction <add>, %164, %cst_72 [1] : vector<64x32xf32> to vector<64xf32>
    %166 = vector.shape_cast %165 : vector<64xf32> to vector<64x1xf32>
    %167 = tpu.reciprocal %166 {approx = true} : vector<64x1xf32> -> vector<64x1xf32>
    %168 = vector.broadcast %167 : vector<64x1xf32> to vector<64x32xf32>
    %169 = arith.mulf %164, %168 : vector<64x32xf32>
    %170 = arith.mulf %154, %169 : vector<64x32xf32>
    %171 = arith.addf %109, %170 : vector<64x32xf32>
    %c88 = arith.constant 88 : index
    %c0_73 = arith.constant 0 : index
    %172 = vector.load %arg4[%c88, %c0_73] : memref<168x128xf32, #tpu.memory_space<vmem>>, vector<1x32xf32>
    %c96 = arith.constant 96 : index
    %c0_74 = arith.constant 0 : index
    %173 = vector.load %arg4[%c96, %c0_74] : memref<168x128xf32, #tpu.memory_space<vmem>>, vector<1x32xf32>
    %cst_75 = arith.constant dense<0.000000e+00> : vector<64xf32>
    %174 = vector.multi_reduction <add>, %171, %cst_75 [1] : vector<64x32xf32> to vector<64xf32>
    %175 = vector.shape_cast %174 : vector<64xf32> to vector<64x1xf32>
    %cst_76 = arith.constant 3.200000e+01 : f32
    %176 = vector.broadcast %cst_76 : f32 to vector<64x1xf32>
    %177 = arith.divf %175, %176 : vector<64x1xf32>
    %178 = vector.broadcast %177 : vector<64x1xf32> to vector<64x32xf32>
    %179 = arith.subf %171, %178 : vector<64x32xf32>
    %180 = arith.mulf %179, %179 : vector<64x32xf32>
    %cst_77 = arith.constant dense<0.000000e+00> : vector<64xf32>
    %181 = vector.multi_reduction <add>, %180, %cst_77 [1] : vector<64x32xf32> to vector<64xf32>
    %182 = vector.shape_cast %181 : vector<64xf32> to vector<64x1xf32>
    %cst_78 = arith.constant 3.200000e+01 : f32
    %183 = vector.broadcast %cst_78 : f32 to vector<64x1xf32>
    %184 = arith.divf %182, %183 : vector<64x1xf32>
    %185 = vector.broadcast %177 : vector<64x1xf32> to vector<64x32xf32>
    %186 = arith.subf %171, %185 : vector<64x32xf32>
    %cst_79 = arith.constant 9.99999974E-6 : f32
    %187 = vector.broadcast %cst_79 : f32 to vector<64x1xf32>
    %188 = arith.addf %184, %187 : vector<64x1xf32>
    %189 = math.sqrt %188 : vector<64x1xf32>
    %190 = vector.broadcast %189 : vector<64x1xf32> to vector<64x32xf32>
    %191 = arith.divf %186, %190 : vector<64x32xf32>
    %192 = vector.broadcast %172 : vector<1x32xf32> to vector<64x32xf32>
    %193 = arith.mulf %191, %192 : vector<64x32xf32>
    %194 = vector.broadcast %173 : vector<1x32xf32> to vector<64x32xf32>
    %195 = arith.addf %193, %194 : vector<64x32xf32>
    %196 = vector.shape_cast %195 : vector<64x32xf32> to vector<8x8x32xf32>
    %197 = tpu.transpose %196, [0, 2, 1] : vector<8x8x32xf32> -> vector<8x32x8xf32>
    %198 = vector.shape_cast %197 : vector<8x32x8xf32> to vector<256x8xf32>
    %199 = arith.truncf %198 : vector<256x8xf32> to vector<256x8xbf16>
    %c208 = arith.constant 208 : index
    %c0_80 = arith.constant 0 : index
    %200 = vector.load %arg3[%c208, %c0_80] : memref<408x128xbf16, #tpu.memory_space<vmem>>, vector<8x16xbf16>
    %cst_81 = arith.constant dense<0.000000e+00> : vector<256x16xf32>
    %201 = tpu.matmul %199, %200, %cst_81 {dimension_numbers = #tpu.dot_dimension_numbers<[1], [0], [0], [1], [0, 0, 1, 1], [], []>} : vector<256x8xbf16>, vector<8x16xbf16>, vector<256x16xf32> -> vector<256x16xf32>
    %c104 = arith.constant 104 : index
    %c0_82 = arith.constant 0 : index
    %202 = vector.load %arg4[%c104, %c0_82] : memref<168x128xf32, #tpu.memory_space<vmem>>, vector<1x16xf32>
    %203 = vector.broadcast %202 : vector<1x16xf32> to vector<256x16xf32>
    %204 = arith.addf %201, %203 : vector<256x16xf32>
    %cst_83 = arith.constant 5.000000e-01 : f32
    %205 = vector.broadcast %cst_83 : f32 to vector<256x16xf32>
    %206 = arith.mulf %205, %204 : vector<256x16xf32>
    %cst_84 = arith.constant 2.000000e+00 : f32
    %207 = math.sqrt %cst_84 : f32
    %208 = vector.broadcast %207 : f32 to vector<256x16xf32>
    %209 = arith.divf %204, %208 : vector<256x16xf32>
    %210 = math.erf %209 : vector<256x16xf32>
    %cst_85 = arith.constant 1.000000e+00 : f32
    %211 = vector.broadcast %cst_85 : f32 to vector<256x16xf32>
    %212 = arith.addf %211, %210 : vector<256x16xf32>
    %213 = arith.mulf %206, %212 : vector<256x16xf32>
    %214 = arith.truncf %213 : vector<256x16xf32> to vector<256x16xbf16>
    %c216 = arith.constant 216 : index
    %c0_86 = arith.constant 0 : index
    %215 = vector.load %arg3[%c216, %c0_86] : memref<408x128xbf16, #tpu.memory_space<vmem>>, vector<16x8xbf16>
    %cst_87 = arith.constant dense<0.000000e+00> : vector<256x8xf32>
    %216 = tpu.matmul %214, %215, %cst_87 {dimension_numbers = #tpu.dot_dimension_numbers<[1], [0], [0], [1], [0, 0, 1, 1], [], []>} : vector<256x16xbf16>, vector<16x8xbf16>, vector<256x8xf32> -> vector<256x8xf32>
    %c112 = arith.constant 112 : index
    %c0_88 = arith.constant 0 : index
    %217 = vector.load %arg4[%c112, %c0_88] : memref<168x128xf32, #tpu.memory_space<vmem>>, vector<1x8xf32>
    %218 = vector.broadcast %217 : vector<1x8xf32> to vector<256x8xf32>
    %219 = arith.addf %216, %218 : vector<256x8xf32>
    %c232 = arith.constant 232 : index
    %c0_89 = arith.constant 0 : index
    %220 = vector.load %arg3[%c232, %c0_89] : memref<408x128xbf16, #tpu.memory_space<vmem>>, vector<16x8xbf16>
    %cst_90 = arith.constant dense<0.000000e+00> : vector<256x8xf32>
    %221 = tpu.matmul %214, %220, %cst_90 {dimension_numbers = #tpu.dot_dimension_numbers<[1], [0], [0], [1], [0, 0, 1, 1], [], []>} : vector<256x16xbf16>, vector<16x8xbf16>, vector<256x8xf32> -> vector<256x8xf32>
    %c120 = arith.constant 120 : index
    %c0_91 = arith.constant 0 : index
    %222 = vector.load %arg4[%c120, %c0_91] : memref<168x128xf32, #tpu.memory_space<vmem>>, vector<1x8xf32>
    %223 = vector.broadcast %222 : vector<1x8xf32> to vector<256x8xf32>
    %224 = arith.addf %221, %223 : vector<256x8xf32>
    %cst_92 = arith.constant dense<0xFF800000> : vector<256xf32>
    %225 = vector.multi_reduction <maximumf>, %224, %cst_92 [1] : vector<256x8xf32> to vector<256xf32>
    %226 = vector.shape_cast %225 : vector<256xf32> to vector<256x1xf32>
    %227 = vector.broadcast %226 : vector<256x1xf32> to vector<256x8xf32>
    %228 = arith.subf %224, %227 : vector<256x8xf32>
    %229 = math.exp %228 : vector<256x8xf32>
    %cst_93 = arith.constant dense<0.000000e+00> : vector<256xf32>
    %230 = vector.multi_reduction <add>, %229, %cst_93 [1] : vector<256x8xf32> to vector<256xf32>
    %231 = vector.shape_cast %230 : vector<256xf32> to vector<256x1xf32>
    %232 = tpu.reciprocal %231 {approx = true} : vector<256x1xf32> -> vector<256x1xf32>
    %233 = vector.broadcast %232 : vector<256x1xf32> to vector<256x8xf32>
    %234 = arith.mulf %229, %233 : vector<256x8xf32>
    %235 = arith.mulf %219, %234 : vector<256x8xf32>
    %236 = vector.shape_cast %235 : vector<256x8xf32> to vector<8x32x8xf32>
    %237 = tpu.transpose %236, [0, 2, 1] : vector<8x32x8xf32> -> vector<8x8x32xf32>
    %238 = vector.shape_cast %237 : vector<8x8x32xf32> to vector<64x32xf32>
    %239 = arith.addf %171, %238 : vector<64x32xf32>
    %c128 = arith.constant 128 : index
    %c0_94 = arith.constant 0 : index
    %240 = vector.load %arg4[%c128, %c0_94] : memref<168x128xf32, #tpu.memory_space<vmem>>, vector<1x32xf32>
    %c136 = arith.constant 136 : index
    %c0_95 = arith.constant 0 : index
    %241 = vector.load %arg4[%c136, %c0_95] : memref<168x128xf32, #tpu.memory_space<vmem>>, vector<1x32xf32>
    %cst_96 = arith.constant dense<0.000000e+00> : vector<64xf32>
    %242 = vector.multi_reduction <add>, %239, %cst_96 [1] : vector<64x32xf32> to vector<64xf32>
    %243 = vector.shape_cast %242 : vector<64xf32> to vector<64x1xf32>
    %cst_97 = arith.constant 3.200000e+01 : f32
    %244 = vector.broadcast %cst_97 : f32 to vector<64x1xf32>
    %245 = arith.divf %243, %244 : vector<64x1xf32>
    %246 = vector.broadcast %245 : vector<64x1xf32> to vector<64x32xf32>
    %247 = arith.subf %239, %246 : vector<64x32xf32>
    %248 = arith.mulf %247, %247 : vector<64x32xf32>
    %cst_98 = arith.constant dense<0.000000e+00> : vector<64xf32>
    %249 = vector.multi_reduction <add>, %248, %cst_98 [1] : vector<64x32xf32> to vector<64xf32>
    %250 = vector.shape_cast %249 : vector<64xf32> to vector<64x1xf32>
    %cst_99 = arith.constant 3.200000e+01 : f32
    %251 = vector.broadcast %cst_99 : f32 to vector<64x1xf32>
    %252 = arith.divf %250, %251 : vector<64x1xf32>
    %253 = vector.broadcast %245 : vector<64x1xf32> to vector<64x32xf32>
    %254 = arith.subf %239, %253 : vector<64x32xf32>
    %cst_100 = arith.constant 9.99999974E-6 : f32
    %255 = vector.broadcast %cst_100 : f32 to vector<64x1xf32>
    %256 = arith.addf %252, %255 : vector<64x1xf32>
    %257 = math.sqrt %256 : vector<64x1xf32>
    %258 = vector.broadcast %257 : vector<64x1xf32> to vector<64x32xf32>
    %259 = arith.divf %254, %258 : vector<64x32xf32>
    %260 = vector.broadcast %240 : vector<1x32xf32> to vector<64x32xf32>
    %261 = arith.mulf %259, %260 : vector<64x32xf32>
    %262 = vector.broadcast %241 : vector<1x32xf32> to vector<64x32xf32>
    %263 = arith.addf %261, %262 : vector<64x32xf32>
    %264 = arith.truncf %263 : vector<64x32xf32> to vector<64x32xbf16>
    %c248 = arith.constant 248 : index
    %c0_101 = arith.constant 0 : index
    %265 = vector.load %arg3[%c248, %c0_101] : memref<408x128xbf16, #tpu.memory_space<vmem>>, vector<32x64xbf16>
    %cst_102 = arith.constant dense<0.000000e+00> : vector<64x64xf32>
    %266 = tpu.matmul %264, %265, %cst_102 {dimension_numbers = #tpu.dot_dimension_numbers<[1], [0], [0], [1], [0, 0, 1, 1], [], []>} : vector<64x32xbf16>, vector<32x64xbf16>, vector<64x64xf32> -> vector<64x64xf32>
    %c144_103 = arith.constant 144 : index
    %c0_104 = arith.constant 0 : index
    %267 = vector.load %arg4[%c144_103, %c0_104] : memref<168x128xf32, #tpu.memory_space<vmem>>, vector<1x64xf32>
    %268 = vector.broadcast %267 : vector<1x64xf32> to vector<64x64xf32>
    %269 = arith.addf %266, %268 : vector<64x64xf32>
    %cst_105 = arith.constant 5.000000e-01 : f32
    %270 = vector.broadcast %cst_105 : f32 to vector<64x64xf32>
    %271 = arith.mulf %270, %269 : vector<64x64xf32>
    %cst_106 = arith.constant 2.000000e+00 : f32
    %272 = math.sqrt %cst_106 : f32
    %273 = vector.broadcast %272 : f32 to vector<64x64xf32>
    %274 = arith.divf %269, %273 : vector<64x64xf32>
    %275 = math.erf %274 : vector<64x64xf32>
    %cst_107 = arith.constant 1.000000e+00 : f32
    %276 = vector.broadcast %cst_107 : f32 to vector<64x64xf32>
    %277 = arith.addf %276, %275 : vector<64x64xf32>
    %278 = arith.mulf %271, %277 : vector<64x64xf32>
    %279 = arith.truncf %278 : vector<64x64xf32> to vector<64x64xbf16>
    %c280 = arith.constant 280 : index
    %c0_108 = arith.constant 0 : index
    %280 = vector.load %arg3[%c280, %c0_108] : memref<408x128xbf16, #tpu.memory_space<vmem>>, vector<64x32xbf16>
    %cst_109 = arith.constant dense<0.000000e+00> : vector<64x32xf32>
    %281 = tpu.matmul %279, %280, %cst_109 {dimension_numbers = #tpu.dot_dimension_numbers<[1], [0], [0], [1], [0, 0, 1, 1], [], []>} : vector<64x64xbf16>, vector<64x32xbf16>, vector<64x32xf32> -> vector<64x32xf32>
    %c152 = arith.constant 152 : index
    %c0_110 = arith.constant 0 : index
    %282 = vector.load %arg4[%c152, %c0_110] : memref<168x128xf32, #tpu.memory_space<vmem>>, vector<1x32xf32>
    %283 = vector.broadcast %282 : vector<1x32xf32> to vector<64x32xf32>
    %284 = arith.addf %281, %283 : vector<64x32xf32>
    %c344 = arith.constant 344 : index
    %c0_111 = arith.constant 0 : index
    %285 = vector.load %arg3[%c344, %c0_111] : memref<408x128xbf16, #tpu.memory_space<vmem>>, vector<64x32xbf16>
    %cst_112 = arith.constant dense<0.000000e+00> : vector<64x32xf32>
    %286 = tpu.matmul %279, %285, %cst_112 {dimension_numbers = #tpu.dot_dimension_numbers<[1], [0], [0], [1], [0, 0, 1, 1], [], []>} : vector<64x64xbf16>, vector<64x32xbf16>, vector<64x32xf32> -> vector<64x32xf32>
    %c160 = arith.constant 160 : index
    %c0_113 = arith.constant 0 : index
    %287 = vector.load %arg4[%c160, %c0_113] : memref<168x128xf32, #tpu.memory_space<vmem>>, vector<1x32xf32>
    %288 = vector.broadcast %287 : vector<1x32xf32> to vector<64x32xf32>
    %289 = arith.addf %286, %288 : vector<64x32xf32>
    %cst_114 = arith.constant dense<0xFF800000> : vector<64xf32>
    %290 = vector.multi_reduction <maximumf>, %289, %cst_114 [1] : vector<64x32xf32> to vector<64xf32>
    %291 = vector.shape_cast %290 : vector<64xf32> to vector<64x1xf32>
    %292 = vector.broadcast %291 : vector<64x1xf32> to vector<64x32xf32>
    %293 = arith.subf %289, %292 : vector<64x32xf32>
    %294 = math.exp %293 : vector<64x32xf32>
    %cst_115 = arith.constant dense<0.000000e+00> : vector<64xf32>
    %295 = vector.multi_reduction <add>, %294, %cst_115 [1] : vector<64x32xf32> to vector<64xf32>
    %296 = vector.shape_cast %295 : vector<64xf32> to vector<64x1xf32>
    %297 = tpu.reciprocal %296 {approx = true} : vector<64x1xf32> -> vector<64x1xf32>
    %298 = vector.broadcast %297 : vector<64x1xf32> to vector<64x32xf32>
    %299 = arith.mulf %294, %298 : vector<64x32xf32>
    %300 = arith.mulf %284, %299 : vector<64x32xf32>
    %301 = arith.addf %239, %300 : vector<64x32xf32>
    %302 = vector.shape_cast %301 : vector<64x32xf32> to vector<2x4x8x32xf32>
    %303 = vector.extract_strided_slice %302 {offsets = [0, 0, 0, 0], sizes = [2, 1, 8, 32], strides = [1, 1, 1, 1]} : vector<2x4x8x32xf32> to vector<2x1x8x32xf32>
    %304 = vector.shape_cast %303 : vector<2x1x8x32xf32> to vector<2x8x32xf32>
    %305 = vector.extract_strided_slice %302 {offsets = [0, 1, 0, 0], sizes = [2, 1, 8, 32], strides = [1, 1, 1, 1]} : vector<2x4x8x32xf32> to vector<2x1x8x32xf32>
    %306 = vector.shape_cast %305 : vector<2x1x8x32xf32> to vector<2x8x32xf32>
    %307 = vector.extract_strided_slice %302 {offsets = [0, 2, 0, 0], sizes = [2, 1, 8, 32], strides = [1, 1, 1, 1]} : vector<2x4x8x32xf32> to vector<2x1x8x32xf32>
    %308 = vector.shape_cast %307 : vector<2x1x8x32xf32> to vector<2x8x32xf32>
    %309 = vector.extract_strided_slice %302 {offsets = [0, 3, 0, 0], sizes = [2, 1, 8, 32], strides = [1, 1, 1, 1]} : vector<2x4x8x32xf32> to vector<2x1x8x32xf32>
    %310 = vector.shape_cast %309 : vector<2x1x8x32xf32> to vector<2x8x32xf32>
    %311 = tpu.concatenate %304, %306, %308, %310 in 2 : vector<2x8x32xf32>, vector<2x8x32xf32>, vector<2x8x32xf32>, vector<2x8x32xf32> -> vector<2x8x128xf32>
    %c0_116 = arith.constant 0 : index
    %c0_117 = arith.constant 0 : index
    %c0_118 = arith.constant 0 : index
    %312 = vector.load %arg5[%c0_116, %c0_117, %c0_118] : memref<2x8x128xf32, #tpu.memory_space<vmem>>, vector<2x8x128xf32>
    tpu.vector_store %arg5[%c0_116, %c0_117, %c0_118], %311 {strides = array<i32>} : memref<2x8x128xf32, #tpu.memory_space<vmem>>, vector<2x8x128xf32>,
    return
  }
  func.func @transform_0(%arg0: i32) -> (i32, i32, i32, i32) {
    %c0_i32 = arith.constant 0 : i32
    %c0_i32_0 = arith.constant 0 : i32
    %c0_i32_1 = arith.constant 0 : i32
    %c0_i32_2 = arith.constant 0 : i32
    %c0_i32_3 = arith.constant 0 : i32
    return %c0_i32, %c0_i32_0, %c0_i32_1, %c0_i32_2 : i32, i32, i32, i32
  }
  func.func @transform_1(%arg0: i32) -> (i32, i32, i32, i32) {
    %c0_i32 = arith.constant 0 : i32
    %c0_i32_0 = arith.constant 0 : i32
    %c0_i32_1 = arith.constant 0 : i32
    %c0_i32_2 = arith.constant 0 : i32
    %c0_i32_3 = arith.constant 0 : i32
    return %c0_i32, %c0_i32_0, %c0_i32_1, %c0_i32_2 : i32, i32, i32, i32
  }
  func.func @transform_2(%arg0: i32) -> (i32, i32) {
    %c0_i32 = arith.constant 0 : i32
    %c0_i32_0 = arith.constant 0 : i32
    %c0_i32_1 = arith.constant 0 : i32
    return %c0_i32, %c0_i32_0 : i32, i32
  }
  func.func @transform_3(%arg0: i32) -> (i32, i32) {
    %c0_i32 = arith.constant 0 : i32
    %c0_i32_0 = arith.constant 0 : i32
    %c0_i32_1 = arith.constant 0 : i32
    return %c0_i32, %c0_i32_0 : i32, i32
  }
  func.func @transform_4(%arg0: i32) -> (i32, i32, i32) {
    %c0_i32 = arith.constant 0 : i32
    %c0_i32_0 = arith.constant 0 : i32
    %c0_i32_1 = arith.constant 0 : i32
    %c0_i32_2 = arith.constant 0 : i32
    return %c0_i32, %c0_i32_0, %c0_i32_1 : i32, i32, i32
  }
  func.func @transform_5(%arg0: i32) -> (i32, i32, i32, i32) {
    %c0_i32 = arith.constant 0 : i32
    %c0_i32_0 = arith.constant 0 : i32
    %c0_i32_1 = arith.constant 0 : i32
    %c0_i32_2 = arith.constant 0 : i32
    %c0_i32_3 = arith.constant 0 : i32
    return %c0_i32, %c0_i32_0, %c0_i32_1, %c0_i32_2 : i32, i32, i32, i32
  }
  func.func @transform_6(%arg0: i32) -> (i32, i32, i32) {
    %c0_i32 = arith.constant 0 : i32
    %c0_i32_0 = arith.constant 0 : i32
    %c0_i32_1 = arith.constant 0 : i32
    %c0_i32_2 = arith.constant 0 : i32
    return %c0_i32, %c0_i32_0, %c0_i32_1 : i32, i32, i32
  }
}

</mosaic_0001>

<llo_original>
// kernel: fwd.1
$region0: #{fwd.1}
  #allocation0 [shape = 'u32[]', space=smem, size = 0x4, offset = 0x4, fixed_abs, tag = 'smem constant byte address 0x4 - core index']
  #allocation1 [shape = 'u32[144,128]{1,0:T(1,128)}', space=vmem, size = 0x12000, scoped, tag = 'internal scratch']
  %s0 = inlined_call_operand.vmem [shape: f32[2,4,8,8], index: 0, kind: input, shape index: {}]
  %s1 = inlined_call_operand.vmem [shape: f32[2,4,8,8], index: 1, kind: input, shape index: {}]
  %s2 = inlined_call_operand.hbm [shape: bf16[408,128], index: 2, kind: input, shape index: {}]
  %s3 = inlined_call_operand.hbm [shape: f32[168,128], index: 3, kind: input, shape index: {}]
  %s4 = inlined_call_operand.vmem [shape: f32[2,8,128], index: 4, kind: output, shape index: {0}]
  %s5 = inlined_call_operand.hbm [shape: f32[2,4,8,8], index: 5, kind: output, shape index: {1}]
  %s6 = inlined_call_operand.vmem [shape: f32[2,4,2], index: 6, kind: output, shape index: {2}]
  %7 = xla_tuple %s4, %s5, %s6
  %s8 = sld [smem:[#allocation0]]
  $region50: #{fwd.1} parent=0
    _
  %s10 = ssub.s32 1, %s8
  %s11 = scalar_select 0, %s10, %s8
  $region1: #{fwd.1} parent=0
    #allocation2 [shape = 'u8[104448]{0}', space=vmem, size = 0x19800, scoped, tag = 'input window, operand 2, single buffered']
    #allocation3 [shape = 's32[1]{0}', space=sflag, size = 0x4, scoped, tag = 'scoped memory for fwd.1']
    #allocation4 [shape = 's32[1]{0}', space=sflag, size = 0x4, scoped, tag = 'scoped memory for fwd.1']
    #allocation5 [shape = 'u8[86016]{0}', space=vmem, size = 0x15000, scoped, tag = 'input window, operand 3, single buffered']
    #allocation6 [shape = 's32[1]{0}', space=sflag, size = 0x4, scoped, tag = 'scoped memory for fwd.1']
    #allocation7 [shape = 'u8[32768]{0}', space=vmem, size = 0x8000, scoped, tag = 'output window, operand 1, single buffered']
    %12 = vsyncpa [#allocation3], 0
    %13 = vsyncpa [#allocation6], 0
    %14 = vsyncpa [#allocation4], 0
    // Predicated region
    $region2: #{fwd.1} parent=1 // pred_check
      _
    $region3: #{fwd.1} parent=1 // pred_check_branch
      %16 = sbr.rel (0) target = $region5
    $region4: #{fwd.1} parent=1 // pred_region
      _
    $region5: #{fwd.1} parent=1 // pred_fallthru
      _
    // Predicated region
    $region6: #{fwd.1} parent=1 // pred_check
      _
    $region7: #{fwd.1} parent=1 // pred_check_branch
      %18 = sbr.rel (0) target = $region9
    $region8: #{fwd.1} parent=1 // pred_region
      _
    $region9: #{fwd.1} parent=1 // pred_fallthru
      _
    // Predicated region
    $region10: #{fwd.1} parent=1 // pred_check
      _
    $region11: #{fwd.1} parent=1 // pred_check_branch
      %20 = sbr.rel (0) target = $region13
    $region12: #{fwd.1} parent=1 // pred_region
      %s22 = ssub.s32 3264, 3264
      %23 = vsyncadd [#allocation3], %s22
      %s24 = sshll.u32 [#allocation2], 4
      %s25 = int_to_ptr.vmem [resolvable:$true] %s24
      %30 = dma.hbm_to_vmem [thread:$0]  %s2, 3264, %s25, [#allocation3], 64, 64, 4
    $region13: #{fwd.1} parent=1 // pred_fallthru
      _
    // Predicated region
    $region14: #{fwd.1} parent=1 // pred_check
      _
    $region15: #{fwd.1} parent=1 // pred_check_branch
      %32 = sbr.rel (0) target = $region17
    $region16: #{fwd.1} parent=1 // pred_region
      %s34 = ssub.s32 2688, 2688
      %35 = vsyncadd [#allocation6], %s34
      %s36 = sshll.u32 [#allocation5], 4
      %s37 = int_to_ptr.vmem [resolvable:$true] %s36
      %42 = dma.hbm_to_vmem [thread:$0]  %s3, 2688, %s37, [#allocation6], 128, 128, 8
    $region17: #{fwd.1} parent=1 // pred_fallthru
      _
    // Predicated region
    $region18: #{fwd.1} parent=1 // pred_check
      _
    $region19: #{fwd.1} parent=1 // pred_check_branch
      %44 = sbr.rel (0) target = $region21
    $region20: #{fwd.1} parent=1 // pred_region
      %45 = dma.done [#allocation3], 3264
    $region21: #{fwd.1} parent=1 // pred_fallthru
      _
    // Predicated region
    $region22: #{fwd.1} parent=1 // pred_check
      _
    $region23: #{fwd.1} parent=1 // pred_check_branch
      %47 = sbr.rel (0) target = $region25
    $region24: #{fwd.1} parent=1 // pred_region
      %48 = dma.done [#allocation6], 2688
    $region25: #{fwd.1} parent=1 // pred_fallthru
      _
    %v50 = vld [vmem:[%s0] sm:$0xff]
    %v51 = vld [vmem:[%s0 + $0x8] sm:$0xff]
    %v52 = vld [vmem:[%s0 + $0x10] sm:$0xff]
    %v53 = vld [vmem:[%s0 + $0x18] sm:$0xff]
    %v54 = vld [vmem:[%s0 + $0x20] sm:$0xff]
    %v55 = vld [vmem:[%s0 + $0x28] sm:$0xff]
    %v56 = vld [vmem:[%s0 + $0x30] sm:$0xff]
    %v57 = vld [vmem:[%s0 + $0x38] sm:$0xff]
    %v58 = vld [vmem:[%s1] sm:$0xff]
    %v59 = vld [vmem:[%s1 + $0x8] sm:$0xff]
    %v60 = vld [vmem:[%s1 + $0x10] sm:$0xff]
    %v61 = vld [vmem:[%s1 + $0x18] sm:$0xff]
    %v62 = vld [vmem:[%s1 + $0x20] sm:$0xff]
    %v63 = vld [vmem:[%s1 + $0x28] sm:$0xff]
    %v64 = vld [vmem:[%s1 + $0x30] sm:$0xff]
    %v65 = vld [vmem:[%s1 + $0x38] sm:$0xff]
    %vm66 = vcmask 64512
    %v67 = vsel %vm66, %v58, 0.0
    %68 = vadd.xlane.f32.xlu0 %v67
    %v69 = vpop.xlane.xlu0 %68
    %v70 = vsel %vm66, %v59, 0.0
    %71 = vadd.xlane.f32.xlu0 %v70
    %v72 = vpop.xlane.xlu0 %71
    %v73 = vsel %vm66, %v60, 0.0
    %74 = vadd.xlane.f32.xlu0 %v73
    %v75 = vpop.xlane.xlu0 %74
    %v76 = vsel %vm66, %v61, 0.0
    %77 = vadd.xlane.f32.xlu0 %v76
    %v78 = vpop.xlane.xlu0 %77
    %v79 = vsel %vm66, %v62, 0.0
    %80 = vadd.xlane.f32.xlu0 %v79
    %v81 = vpop.xlane.xlu0 %80
    %v82 = vsel %vm66, %v63, 0.0
    %83 = vadd.xlane.f32.xlu0 %v82
    %v84 = vpop.xlane.xlu0 %83
    %v85 = vsel %vm66, %v64, 0.0
    %86 = vadd.xlane.f32.xlu0 %v85
    %v87 = vpop.xlane.xlu0 %86
    %v88 = vsel %vm66, %v65, 0.0
    %89 = vadd.xlane.f32.xlu0 %v88
    %v90 = vpop.xlane.xlu0 %89
    %v91 = vrot.slane %v69, 4
    %v92 = vadd.f32 %v69, %v91
    %v93 = vrot.slane %v92, 2
    %v94 = vadd.f32 %v92, %v93
    %v95 = vrot.slane %v94, 1
    %v96 = vadd.f32 %v94, %v95
    %v97 = vrot.slane %v72, 4
    %v98 = vadd.f32 %v72, %v97
    %v99 = vrot.slane %v98, 2
    %v100 = vadd.f32 %v98, %v99
    %v101 = vrot.slane %v100, 1
    %v102 = vadd.f32 %v100, %v101
    %v103 = vrot.slane %v75, 4
    %v104 = vadd.f32 %v75, %v103
    %v105 = vrot.slane %v104, 2
    %v106 = vadd.f32 %v104, %v105
    %v107 = vrot.slane %v106, 1
    %v108 = vadd.f32 %v106, %v107
    %v109 = vrot.slane %v78, 4
    %v110 = vadd.f32 %v78, %v109
    %v111 = vrot.slane %v110, 2
    %v112 = vadd.f32 %v110, %v111
    %v113 = vrot.slane %v112, 1
    %v114 = vadd.f32 %v112, %v113
    %v115 = vrot.slane %v81, 4
    %v116 = vadd.f32 %v81, %v115
    %v117 = vrot.slane %v116, 2
    %v118 = vadd.f32 %v116, %v117
    %v119 = vrot.slane %v118, 1
    %v120 = vadd.f32 %v118, %v119
    %v121 = vrot.slane %v84, 4
    %v122 = vadd.f32 %v84, %v121
    %v123 = vrot.slane %v122, 2
    %v124 = vadd.f32 %v122, %v123
    %v125 = vrot.slane %v124, 1
    %v126 = vadd.f32 %v124, %v125
    %v127 = vrot.slane %v87, 4
    %v128 = vadd.f32 %v87, %v127
    %v129 = vrot.slane %v128, 2
    %v130 = vadd.f32 %v128, %v129
    %v131 = vrot.slane %v130, 1
    %v132 = vadd.f32 %v130, %v131
    %v133 = vrot.slane %v90, 4
    %v134 = vadd.f32 %v90, %v133
    %v135 = vrot.slane %v134, 2
    %v136 = vadd.f32 %v134, %v135
    %v137 = vrot.slane %v136, 1
    %v138 = vadd.f32 %v136, %v137
    %v139 = vmax.f32 %v96, 1.0
    %v140 = vmax.f32 %v102, 1.0
    %v141 = vmax.f32 %v108, 1.0
    %v142 = vmax.f32 %v114, 1.0
    %v143 = vmax.f32 %v120, 1.0
    %v144 = vmax.f32 %v126, 1.0
    %v145 = vmax.f32 %v132, 1.0
    %v146 = vmax.f32 %v138, 1.0
    %v147 = vmul.f32 %v50, %v58
    %v148 = vmul.f32 %v51, %v59
    %v149 = vmul.f32 %v52, %v60
    %v150 = vmul.f32 %v53, %v61
    %v151 = vmul.f32 %v54, %v62
    %v152 = vmul.f32 %v55, %v63
    %v153 = vmul.f32 %v56, %v64
    %v154 = vmul.f32 %v57, %v65
    %v155 = vsel %vm66, %v147, 0.0
    %156 = vadd.xlane.f32.xlu0 %v155
    %v157 = vpop.xlane.xlu0 %156
    %v158 = vsel %vm66, %v148, 0.0
    %159 = vadd.xlane.f32.xlu0 %v158
    %v160 = vpop.xlane.xlu0 %159
    %v161 = vsel %vm66, %v149, 0.0
    %162 = vadd.xlane.f32.xlu0 %v161
    %v163 = vpop.xlane.xlu0 %162
    %v164 = vsel %vm66, %v150, 0.0
    %165 = vadd.xlane.f32.xlu0 %v164
    %v166 = vpop.xlane.xlu0 %165
    %v167 = vsel %vm66, %v151, 0.0
    %168 = vadd.xlane.f32.xlu0 %v167
    %v169 = vpop.xlane.xlu0 %168
    %v170 = vsel %vm66, %v152, 0.0
    %171 = vadd.xlane.f32.xlu0 %v170
    %v172 = vpop.xlane.xlu0 %171
    %v173 = vsel %vm66, %v153, 0.0
    %174 = vadd.xlane.f32.xlu0 %v173
    %v175 = vpop.xlane.xlu0 %174
    %v176 = vsel %vm66, %v154, 0.0
    %177 = vadd.xlane.f32.xlu0 %v176
    %v178 = vpop.xlane.xlu0 %177
    %v179 = vrot.slane %v157, 4
    %v180 = vadd.f32 %v157, %v179
    %v181 = vrot.slane %v180, 2
    %v182 = vadd.f32 %v180, %v181
    %v183 = vrot.slane %v182, 1
    %v184 = vadd.f32 %v182, %v183
    %v185 = vrot.slane %v160, 4
    %v186 = vadd.f32 %v160, %v185
    %v187 = vrot.slane %v186, 2
    %v188 = vadd.f32 %v186, %v187
    %v189 = vrot.slane %v188, 1
    %v190 = vadd.f32 %v188, %v189
    %v191 = vrot.slane %v163, 4
    %v192 = vadd.f32 %v163, %v191
    %v193 = vrot.slane %v192, 2
    %v194 = vadd.f32 %v192, %v193
    %v195 = vrot.slane %v194, 1
    %v196 = vadd.f32 %v194, %v195
    %v197 = vrot.slane %v166, 4
    %v198 = vadd.f32 %v166, %v197
    %v199 = vrot.slane %v198, 2
    %v200 = vadd.f32 %v198, %v199
    %v201 = vrot.slane %v200, 1
    %v202 = vadd.f32 %v200, %v201
    %v203 = vrot.slane %v169, 4
    %v204 = vadd.f32 %v169, %v203
    %v205 = vrot.slane %v204, 2
    %v206 = vadd.f32 %v204, %v205
    %v207 = vrot.slane %v206, 1
    %v208 = vadd.f32 %v206, %v207
    %v209 = vrot.slane %v172, 4
    %v210 = vadd.f32 %v172, %v209
    %v211 = vrot.slane %v210, 2
    %v212 = vadd.f32 %v210, %v211
    %v213 = vrot.slane %v212, 1
    %v214 = vadd.f32 %v212, %v213
    %v215 = vrot.slane %v175, 4
    %v216 = vadd.f32 %v175, %v215
    %v217 = vrot.slane %v216, 2
    %v218 = vadd.f32 %v216, %v217
    %v219 = vrot.slane %v218, 1
    %v220 = vadd.f32 %v218, %v219
    %v221 = vrot.slane %v178, 4
    %v222 = vadd.f32 %v178, %v221
    %v223 = vrot.slane %v222, 2
    %v224 = vadd.f32 %v222, %v223
    %v225 = vrot.slane %v224, 1
    %v226 = vadd.f32 %v224, %v225
    %v227 = vrcp.pop %v139
    %v228 = vmul.f32 %v184, %v227
    %v229 = vrcp.pop %v140
    %v230 = vmul.f32 %v190, %v229
    %v231 = vrcp.pop %v141
    %v232 = vmul.f32 %v196, %v231
    %v233 = vrcp.pop %v142
    %v234 = vmul.f32 %v202, %v233
    %v235 = vrcp.pop %v143
    %v236 = vmul.f32 %v208, %v235
    %v237 = vrcp.pop %v144
    %v238 = vmul.f32 %v214, %v237
    %v239 = vrcp.pop %v145
    %v240 = vmul.f32 %v220, %v239
    %v241 = vrcp.pop %v146
    %v242 = vmul.f32 %v226, %v241
    %v243 = vsub.f32 %v50, %v228
    %v244 = vsub.f32 %v51, %v230
    %v245 = vsub.f32 %v52, %v232
    %v246 = vsub.f32 %v53, %v234
    %v247 = vsub.f32 %v54, %v236
    %v248 = vsub.f32 %v55, %v238
    %v249 = vsub.f32 %v56, %v240
    %v250 = vsub.f32 %v57, %v242
    %v251 = vmul.f32 %v243, %v58
    %v252 = vmul.f32 %v244, %v59
    %v253 = vmul.f32 %v245, %v60
    %v254 = vmul.f32 %v246, %v61
    %v255 = vmul.f32 %v247, %v62
    %v256 = vmul.f32 %v248, %v63
    %v257 = vmul.f32 %v249, %v64
    %v258 = vmul.f32 %v250, %v65
    %v259 = vmul.f32 %v251, %v251
    %v260 = vmul.f32 %v252, %v252
    %v261 = vmul.f32 %v253, %v253
    %v262 = vmul.f32 %v254, %v254
    %v263 = vmul.f32 %v255, %v255
    %v264 = vmul.f32 %v256, %v256
    %v265 = vmul.f32 %v257, %v257
    %v266 = vmul.f32 %v258, %v258
    %v267 = vsel %vm66, %v259, 0.0
    %268 = vadd.xlane.f32.xlu0 %v267
    %v269 = vpop.xlane.xlu0 %268
    %v270 = vsel %vm66, %v260, 0.0
    %271 = vadd.xlane.f32.xlu0 %v270
    %v272 = vpop.xlane.xlu0 %271
    %v273 = vsel %vm66, %v261, 0.0
    %274 = vadd.xlane.f32.xlu0 %v273
    %v275 = vpop.xlane.xlu0 %274
    %v276 = vsel %vm66, %v262, 0.0
    %277 = vadd.xlane.f32.xlu0 %v276
    %v278 = vpop.xlane.xlu0 %277
    %v279 = vsel %vm66, %v263, 0.0
    %280 = vadd.xlane.f32.xlu0 %v279
    %v281 = vpop.xlane.xlu0 %280
    %v282 = vsel %vm66, %v264, 0.0
    %283 = vadd.xlane.f32.xlu0 %v282
    %v284 = vpop.xlane.xlu0 %283
    %v285 = vsel %vm66, %v265, 0.0
    %286 = vadd.xlane.f32.xlu0 %v285
    %v287 = vpop.xlane.xlu0 %286
    %v288 = vsel %vm66, %v266, 0.0
    %289 = vadd.xlane.f32.xlu0 %v288
    %v290 = vpop.xlane.xlu0 %289
    %v291 = vrot.slane %v269, 4
    %v292 = vadd.f32 %v269, %v291
    %v293 = vrot.slane %v292, 2
    %v294 = vadd.f32 %v292, %v293
    %v295 = vrot.slane %v294, 1
    %v296 = vadd.f32 %v294, %v295
    %v297 = vrot.slane %v272, 4
    %v298 = vadd.f32 %v272, %v297
    %v299 = vrot.slane %v298, 2
    %v300 = vadd.f32 %v298, %v299
    %v301 = vrot.slane %v300, 1
    %v302 = vadd.f32 %v300, %v301
    %v303 = vrot.slane %v275, 4
    %v304 = vadd.f32 %v275, %v303
    %v305 = vrot.slane %v304, 2
    %v306 = vadd.f32 %v304, %v305
    %v307 = vrot.slane %v306, 1
    %v308 = vadd.f32 %v306, %v307
    %v309 = vrot.slane %v278, 4
    %v310 = vadd.f32 %v278, %v309
    %v311 = vrot.slane %v310, 2
    %v312 = vadd.f32 %v310, %v311
    %v313 = vrot.slane %v312, 1
    %v314 = vadd.f32 %v312, %v313
    %v315 = vrot.slane %v281, 4
    %v316 = vadd.f32 %v281, %v315
    %v317 = vrot.slane %v316, 2
    %v318 = vadd.f32 %v316, %v317
    %v319 = vrot.slane %v318, 1
    %v320 = vadd.f32 %v318, %v319
    %v321 = vrot.slane %v284, 4
    %v322 = vadd.f32 %v284, %v321
    %v323 = vrot.slane %v322, 2
    %v324 = vadd.f32 %v322, %v323
    %v325 = vrot.slane %v324, 1
    %v326 = vadd.f32 %v324, %v325
    %v327 = vrot.slane %v287, 4
    %v328 = vadd.f32 %v287, %v327
    %v329 = vrot.slane %v328, 2
    %v330 = vadd.f32 %v328, %v329
    %v331 = vrot.slane %v330, 1
    %v332 = vadd.f32 %v330, %v331
    %v333 = vrot.slane %v290, 4
    %v334 = vadd.f32 %v290, %v333
    %v335 = vrot.slane %v334, 2
    %v336 = vadd.f32 %v334, %v335
    %v337 = vrot.slane %v336, 1
    %v338 = vadd.f32 %v336, %v337
    %v339 = vmul.f32 %v296, %v227
    %v340 = vmul.f32 %v302, %v229
    %v341 = vmul.f32 %v308, %v231
    %v342 = vmul.f32 %v314, %v233
    %v343 = vmul.f32 %v320, %v235
    %v344 = vmul.f32 %v326, %v237
    %v345 = vmul.f32 %v332, %v239
    %v346 = vmul.f32 %v338, %v241
    %v347 = vadd.f32 %v339, 1e-05
    %v348 = vadd.f32 %v340, 1e-05
    %v349 = vadd.f32 %v341, 1e-05
    %v350 = vadd.f32 %v342, 1e-05
    %v351 = vadd.f32 %v343, 1e-05
    %v352 = vadd.f32 %v344, 1e-05
    %v353 = vadd.f32 %v345, 1e-05
    %v354 = vadd.f32 %v346, 1e-05
    %v355 = vrsqrt.pop %v347
    %v356 = vmul.f32 %v347, %v355
    %vm357 = vcmp.eq.f32.partialorder %v347, inf
    %v358 = vsel %vm357, %v347, %v356
    %vm359 = vcmp.eq.f32.partialorder %v347, 0.0
    %v360 = vand.u32 %v347, 2147483648
    %v361 = vsel %vm359, %v360, %v358
    %v362 = vrsqrt.pop %v348
    %v363 = vmul.f32 %v348, %v362
    %vm364 = vcmp.eq.f32.partialorder %v348, inf
    %v365 = vsel %vm364, %v348, %v363
    %vm366 = vcmp.eq.f32.partialorder %v348, 0.0
    %v367 = vand.u32 %v348, 2147483648
    %v368 = vsel %vm366, %v367, %v365
    %v369 = vrsqrt.pop %v349
    %v370 = vmul.f32 %v349, %v369
    %vm371 = vcmp.eq.f32.partialorder %v349, inf
    %v372 = vsel %vm371, %v349, %v370
    %vm373 = vcmp.eq.f32.partialorder %v349, 0.0
    %v374 = vand.u32 %v349, 2147483648
    %v375 = vsel %vm373, %v374, %v372
    %v376 = vrsqrt.pop %v350
    %v377 = vmul.f32 %v350, %v376
    %vm378 = vcmp.eq.f32.partialorder %v350, inf
    %v379 = vsel %vm378, %v350, %v377
    %vm380 = vcmp.eq.f32.partialorder %v350, 0.0
    %v381 = vand.u32 %v350, 2147483648
    %v382 = vsel %vm380, %v381, %v379
    %v383 = vrsqrt.pop %v351
    %v384 = vmul.f32 %v351, %v383
    %vm385 = vcmp.eq.f32.partialorder %v351, inf
    %v386 = vsel %vm385, %v351, %v384
    %vm387 = vcmp.eq.f32.partialorder %v351, 0.0
    %v388 = vand.u32 %v351, 2147483648
    %v389 = vsel %vm387, %v388, %v386
    %v390 = vrsqrt.pop %v352
    %v391 = vmul.f32 %v352, %v390
    %vm392 = vcmp.eq.f32.partialorder %v352, inf
    %v393 = vsel %vm392, %v352, %v391
    %vm394 = vcmp.eq.f32.partialorder %v352, 0.0
    %v395 = vand.u32 %v352, 2147483648
    %v396 = vsel %vm394, %v395, %v393
    %v397 = vrsqrt.pop %v353
    %v398 = vmul.f32 %v353, %v397
    %vm399 = vcmp.eq.f32.partialorder %v353, inf
    %v400 = vsel %vm399, %v353, %v398
    %vm401 = vcmp.eq.f32.partialorder %v353, 0.0
    %v402 = vand.u32 %v353, 2147483648
    %v403 = vsel %vm401, %v402, %v400
    %v404 = vrsqrt.pop %v354
    %v405 = vmul.f32 %v354, %v404
    %vm406 = vcmp.eq.f32.partialorder %v354, inf
    %v407 = vsel %vm406, %v354, %v405
    %vm408 = vcmp.eq.f32.partialorder %v354, 0.0
    %v409 = vand.u32 %v354, 2147483648
    %v410 = vsel %vm408, %v409, %v407
    %v411 = vrcp.pop %v361
    %v412 = vmul.f32 %v243, %v411
    %v413 = vrcp.pop %v368
    %v414 = vmul.f32 %v244, %v413
    %v415 = vrcp.pop %v375
    %v416 = vmul.f32 %v245, %v415
    %v417 = vrcp.pop %v382
    %v418 = vmul.f32 %v246, %v417
    %v419 = vrcp.pop %v389
    %v420 = vmul.f32 %v247, %v419
    %v421 = vrcp.pop %v396
    %v422 = vmul.f32 %v248, %v421
    %v423 = vrcp.pop %v403
    %v424 = vmul.f32 %v249, %v423
    %v425 = vrcp.pop %v410
    %v426 = vmul.f32 %v250, %v425
    %427 = vst.msk [vmem:[#allocation7] sm:$0xff] %vm66, %v412
    %428 = vst.msk [vmem:[#allocation7 + $0x8] sm:$0xff] %vm66, %v414
    %429 = vst.msk [vmem:[#allocation7 + $0x10] sm:$0xff] %vm66, %v416
    %430 = vst.msk [vmem:[#allocation7 + $0x18] sm:$0xff] %vm66, %v418
    %431 = vst.msk [vmem:[#allocation7 + $0x20] sm:$0xff] %vm66, %v420
    %432 = vst.msk [vmem:[#allocation7 + $0x28] sm:$0xff] %vm66, %v422
    %433 = vst.msk [vmem:[#allocation7 + $0x30] sm:$0xff] %vm66, %v424
    %434 = vst.msk [vmem:[#allocation7 + $0x38] sm:$0xff] %vm66, %v426
    %vm443 = vcmask 1041409
    %v444 = vsel %vm443, %v230, %v228
    %vm445 = vcmask 1042434
    %v446 = vsel %vm445, %v232, %v444
    %vm447 = vcmask 1043459
    %v448 = vsel %vm447, %v234, %v446
    %v449 = vsel %vm443, %v238, %v236
    %v450 = vsel %vm445, %v240, %v449
    %v451 = vsel %vm447, %v242, %v450
    %v462 = vsel %vm443, %v368, %v361
    %v463 = vsel %vm445, %v375, %v462
    %v464 = vsel %vm447, %v382, %v463
    %v465 = vsel %vm443, %v396, %v389
    %v466 = vsel %vm445, %v403, %v465
    %v467 = vsel %vm447, %v410, %v466
    %vm470 = vcmask 7168
    %v471 = vsel %vm470, %v448, %v464
    %v472 = vsel %vm470, %v451, %v467
    %vm473 = vcmask 11264
    %474 = vst.msk [vmem:[%s6] sm:$0xf] %vm473, %v471
    %475 = vst.msk [vmem:[%s6 + $0x4] sm:$0xf] %vm473, %v472
    %v476 = vpack.c.bf16 %v414, %v412
    %v477 = vpack.c.bf16 %v418, %v416
    %v478 = vpack.c.bf16 %v422, %v420
    %v479 = vpack.c.bf16 %v426, %v424
    %v480 = vld [vmem:[#allocation2] sm:$0xf]
    %v481 = vld [vmem:[#allocation5] sm:$0x1]
    %v482 = vlaneseq
    %v483 = vshrl.u32 %v482, 7
    %v484 = vsub.s32 0, %v483
    %v485 = vrot.slane %v481, %v484
    %v487 = vsel %vm66, %v476, 0
    %v490 = vsel %vm66, %v477, 0
    %v493 = vsel %vm66, %v478, 0
    %v496 = vsel %vm66, %v479, 0
    %vm498 = vcmask 1043456
    %v500 = vsel %vm498, %v480, 0
    %502 = vmatprep.subr.bf16.mxu0 0
    %503 = vmatpush1.bf16.msra.mxu0 %v500
    %504 = vmatprep.subr.bf16.mxu0 0
    %505 = vmatpush1.bf16.msra.mxu0 0
    %506 = vmatprep.subr.bf16.mxu0 0
    %507 = vmatpush1.bf16.msra.mxu0 0
    %508 = vmatprep.subr.bf16.mxu0 0
    %509 = vmatpush1.bf16.msra.mxu0 0
    %510 = vmatprep.subr.bf16.mxu0 0
    %511 = vmatpush1.bf16.msra.mxu0 0
    %512 = vmatprep.subr.bf16.mxu0 0
    %513 = vmatpush1.bf16.msra.mxu0 0
    %514 = vmatprep.subr.bf16.mxu0 0
    %515 = vmatpush1.bf16.msra.mxu0 0
    %516 = vmatprep.subr.bf16.mxu0 0
    %517 = vmatpush1.bf16.msra.mxu0 0
    %518 = vmatprep.subr.bf16.mxu0 0
    %519 = vmatpush1.bf16.msra.mxu0 0
    %520 = vmatprep.subr.bf16.mxu0 0
    %521 = vmatpush1.bf16.msra.mxu0 0
    %522 = vmatprep.subr.bf16.mxu0 0
    %523 = vmatpush1.bf16.msra.mxu0 0
    %524 = vmatprep.subr.bf16.mxu0 0
    %525 = vmatpush1.bf16.msra.mxu0 0
    %526 = vmatprep.subr.bf16.mxu0 0
    %527 = vmatpush1.bf16.msra.mxu0 0
    %528 = vmatprep.subr.bf16.mxu0 0
    %529 = vmatpush1.bf16.msra.mxu0 0
    %530 = vmatprep.subr.bf16.mxu0 0
    %531 = vmatpush1.bf16.msra.mxu0 0
    %532 = vmatprep.subr.bf16.mxu0 0
    %533 = vmatpush1.bf16.msra.mxu0 0
    %534 = vmatprep.mubr.bf16.mxu0 0
    %535 = vmatmul.mubr.bf16.gmra.mrb[0].mxu0 %v487
    %v536 = vpop.f32.mrb[0].mxu0
    %v537 = vadd.f32 %v485, %v536
    %v538 = vpop.f32.mrb[0].mxu0
    %v539 = vpop.f32.mrb[0].mxu0
    %v540 = vadd.f32 %v485, %v539
    %v541 = vpop.f32.mrb[0].mxu0
    %542 = vmatprep.mubr.bf16.mxu0 0
    %543 = vmatmul.mubr.bf16.gmra.mrb[0].mxu0 %v490
    %v544 = vpop.f32.mrb[0].mxu0
    %v545 = vadd.f32 %v485, %v544
    %v546 = vpop.f32.mrb[0].mxu0
    %v547 = vpop.f32.mrb[0].mxu0
    %v548 = vadd.f32 %v485, %v547
    %v549 = vpop.f32.mrb[0].mxu0
    %550 = vmatprep.mubr.bf16.mxu0 0
    %551 = vmatmul.mubr.bf16.gmra.mrb[0].mxu0 %v493
    %v552 = vpop.f32.mrb[0].mxu0
    %v553 = vadd.f32 %v485, %v552
    %v554 = vpop.f32.mrb[0].mxu0
    %v555 = vpop.f32.mrb[0].mxu0
    %v556 = vadd.f32 %v485, %v555
    %v557 = vpop.f32.mrb[0].mxu0
    %558 = vmatprep.mubr.bf16.mxu0 0
    %559 = vmatmul.mubr.bf16.gmra.mrb[0].mxu0 %v496
    %v560 = vpop.f32.mrb[0].mxu0
    %v561 = vadd.f32 %v485, %v560
    %v562 = vpop.f32.mrb[0].mxu0
    %v563 = vpop.f32.mrb[0].mxu0
    %v564 = vadd.f32 %v485, %v563
    %v565 = vpop.f32.mrb[0].mxu0
    %566 = vdwg.mxu0
    %v567 = vld [vmem:[#allocation5 + $0x8] sm:$0x1]
    %v568 = vld [vmem:[#allocation5 + $0x10] sm:$0x1]
    %vm569 = vcmask 261120
    %v570 = vsel %vm569, %v537, 0.0
    %571 = vadd.xlane.f32.xlu0 %v570
    %v572 = vpop.xlane.xlu0 %571
    %v573 = vsel %vm569, %v540, 0.0
    %574 = vadd.xlane.f32.xlu0 %v573
    %v575 = vpop.xlane.xlu0 %574
    %v576 = vsel %vm569, %v545, 0.0
    %577 = vadd.xlane.f32.xlu0 %v576
    %v578 = vpop.xlane.xlu0 %577
    %v579 = vsel %vm569, %v548, 0.0
    %580 = vadd.xlane.f32.xlu0 %v579
    %v581 = vpop.xlane.xlu0 %580
    %v582 = vsel %vm569, %v553, 0.0
    %583 = vadd.xlane.f32.xlu0 %v582
    %v584 = vpop.xlane.xlu0 %583
    %v585 = vsel %vm569, %v556, 0.0
    %586 = vadd.xlane.f32.xlu0 %v585
    %v587 = vpop.xlane.xlu0 %586
    %v588 = vsel %vm569, %v561, 0.0
    %589 = vadd.xlane.f32.xlu0 %v588
    %v590 = vpop.xlane.xlu0 %589
    %v591 = vsel %vm569, %v564, 0.0
    %592 = vadd.xlane.f32.xlu0 %v591
    %v593 = vpop.xlane.xlu0 %592
    %v594 = vrcp.pop 32.0
    %v595 = vmul.f32 %v572, %v594
    %v596 = vmul.f32 %v575, %v594
    %v597 = vmul.f32 %v578, %v594
    %v598 = vmul.f32 %v581, %v594
    %v599 = vmul.f32 %v584, %v594
    %v600 = vmul.f32 %v587, %v594
    %v601 = vmul.f32 %v590, %v594
    %v602 = vmul.f32 %v593, %v594
    %v603 = vsub.f32 %v537, %v595
    %v604 = vsub.f32 %v540, %v596
    %v605 = vsub.f32 %v545, %v597
    %v606 = vsub.f32 %v548, %v598
    %v607 = vsub.f32 %v553, %v599
    %v608 = vsub.f32 %v556, %v600
    %v609 = vsub.f32 %v561, %v601
    %v610 = vsub.f32 %v564, %v602
    %v611 = vmul.f32 %v603, %v603
    %v612 = vmul.f32 %v604, %v604
    %v613 = vmul.f32 %v605, %v605
    %v614 = vmul.f32 %v606, %v606
    %v615 = vmul.f32 %v607, %v607
    %v616 = vmul.f32 %v608, %v608
    %v617 = vmul.f32 %v609, %v609
    %v618 = vmul.f32 %v610, %v610
    %v619 = vsel %vm569, %v611, 0.0
    %620 = vadd.xlane.f32.xlu0 %v619
    %v621 = vpop.xlane.xlu0 %620
    %v622 = vsel %vm569, %v612, 0.0
    %623 = vadd.xlane.f32.xlu0 %v622
    %v624 = vpop.xlane.xlu0 %623
    %v625 = vsel %vm569, %v613, 0.0
    %626 = vadd.xlane.f32.xlu0 %v625
    %v627 = vpop.xlane.xlu0 %626
    %v628 = vsel %vm569, %v614, 0.0
    %629 = vadd.xlane.f32.xlu0 %v628
    %v630 = vpop.xlane.xlu0 %629
    %v631 = vsel %vm569, %v615, 0.0
    %632 = vadd.xlane.f32.xlu0 %v631
    %v633 = vpop.xlane.xlu0 %632
    %v634 = vsel %vm569, %v616, 0.0
    %635 = vadd.xlane.f32.xlu0 %v634
    %v636 = vpop.xlane.xlu0 %635
    %v637 = vsel %vm569, %v617, 0.0
    %638 = vadd.xlane.f32.xlu0 %v637
    %v639 = vpop.xlane.xlu0 %638
    %v640 = vsel %vm569, %v618, 0.0
    %641 = vadd.xlane.f32.xlu0 %v640
    %v642 = vpop.xlane.xlu0 %641
    %v643 = vmul.f32 %v621, %v594
    %v644 = vmul.f32 %v624, %v594
    %v645 = vmul.f32 %v627, %v594
    %v646 = vmul.f32 %v630, %v594
    %v647 = vmul.f32 %v633, %v594
    %v648 = vmul.f32 %v636, %v594
    %v649 = vmul.f32 %v639, %v594
    %v650 = vmul.f32 %v642, %v594
    %v651 = vadd.f32 %v643, 1e-05
    %v652 = vadd.f32 %v644, 1e-05
    %v653 = vadd.f32 %v645, 1e-05
    %v654 = vadd.f32 %v646, 1e-05
    %v655 = vadd.f32 %v647, 1e-05
    %v656 = vadd.f32 %v648, 1e-05
    %v657 = vadd.f32 %v649, 1e-05
    %v658 = vadd.f32 %v650, 1e-05
    %v659 = vrsqrt.pop %v651
    %v660 = vmul.f32 %v651, %v659
    %vm661 = vcmp.eq.f32.partialorder %v651, inf
    %v662 = vsel %vm661, %v651, %v660
    %vm663 = vcmp.eq.f32.partialorder %v651, 0.0
    %v664 = vand.u32 %v651, 2147483648
    %v665 = vsel %vm663, %v664, %v662
    %v666 = vrsqrt.pop %v652
    %v667 = vmul.f32 %v652, %v666
    %vm668 = vcmp.eq.f32.partialorder %v652, inf
    %v669 = vsel %vm668, %v652, %v667
    %vm670 = vcmp.eq.f32.partialorder %v652, 0.0
    %v671 = vand.u32 %v652, 2147483648
    %v672 = vsel %vm670, %v671, %v669
    %v673 = vrsqrt.pop %v653
    %v674 = vmul.f32 %v653, %v673
    %vm675 = vcmp.eq.f32.partialorder %v653, inf
    %v676 = vsel %vm675, %v653, %v674
    %vm677 = vcmp.eq.f32.partialorder %v653, 0.0
    %v678 = vand.u32 %v653, 2147483648
    %v679 = vsel %vm677, %v678, %v676
    %v680 = vrsqrt.pop %v654
    %v681 = vmul.f32 %v654, %v680
    %vm682 = vcmp.eq.f32.partialorder %v654, inf
    %v683 = vsel %vm682, %v654, %v681
    %vm684 = vcmp.eq.f32.partialorder %v654, 0.0
    %v685 = vand.u32 %v654, 2147483648
    %v686 = vsel %vm684, %v685, %v683
    %v687 = vrsqrt.pop %v655
    %v688 = vmul.f32 %v655, %v687
    %vm689 = vcmp.eq.f32.partialorder %v655, inf
    %v690 = vsel %vm689, %v655, %v688
    %vm691 = vcmp.eq.f32.partialorder %v655, 0.0
    %v692 = vand.u32 %v655, 2147483648
    %v693 = vsel %vm691, %v692, %v690
    %v694 = vrsqrt.pop %v656
    %v695 = vmul.f32 %v656, %v694
    %vm696 = vcmp.eq.f32.partialorder %v656, inf
    %v697 = vsel %vm696, %v656, %v695
    %vm698 = vcmp.eq.f32.partialorder %v656, 0.0
    %v699 = vand.u32 %v656, 2147483648
    %v700 = vsel %vm698, %v699, %v697
    %v701 = vrsqrt.pop %v657
    %v702 = vmul.f32 %v657, %v701
    %vm703 = vcmp.eq.f32.partialorder %v657, inf
    %v704 = vsel %vm703, %v657, %v702
    %vm705 = vcmp.eq.f32.partialorder %v657, 0.0
    %v706 = vand.u32 %v657, 2147483648
    %v707 = vsel %vm705, %v706, %v704
    %v708 = vrsqrt.pop %v658
    %v709 = vmul.f32 %v658, %v708
    %vm710 = vcmp.eq.f32.partialorder %v658, inf
    %v711 = vsel %vm710, %v658, %v709
    %vm712 = vcmp.eq.f32.partialorder %v658, 0.0
    %v713 = vand.u32 %v658, 2147483648
    %v714 = vsel %vm712, %v713, %v711
    %v715 = vrcp.pop %v665
    %v716 = vmul.f32 %v603, %v715
    %v717 = vrcp.pop %v672
    %v718 = vmul.f32 %v604, %v717
    %v719 = vrcp.pop %v679
    %v720 = vmul.f32 %v605, %v719
    %v721 = vrcp.pop %v686
    %v722 = vmul.f32 %v606, %v721
    %v723 = vrcp.pop %v693
    %v724 = vmul.f32 %v607, %v723
    %v725 = vrcp.pop %v700
    %v726 = vmul.f32 %v608, %v725
    %v727 = vrcp.pop %v707
    %v728 = vmul.f32 %v609, %v727
    %v729 = vrcp.pop %v714
    %v730 = vmul.f32 %v610, %v729
    %v731 = vlaneseq
    %v732 = vshrl.u32 %v731, 7
    %v733 = vsub.s32 0, %v732
    %v734 = vrot.slane %v567, %v733
    %v735 = vmul.f32 %v716, %v734
    %v736 = vmul.f32 %v718, %v734
    %v737 = vmul.f32 %v720, %v734
    %v738 = vmul.f32 %v722, %v734
    %v739 = vmul.f32 %v724, %v734
    %v740 = vmul.f32 %v726, %v734
    %v741 = vmul.f32 %v728, %v734
    %v742 = vmul.f32 %v730, %v734
    %v743 = vlaneseq
    %v744 = vshrl.u32 %v743, 7
    %v745 = vsub.s32 0, %v744
    %v746 = vrot.slane %v568, %v745
    %v747 = vadd.f32 %v735, %v746
    %v748 = vadd.f32 %v736, %v746
    %v749 = vadd.f32 %v737, %v746
    %v750 = vadd.f32 %v738, %v746
    %v751 = vadd.f32 %v739, %v746
    %v752 = vadd.f32 %v740, %v746
    %v753 = vadd.f32 %v741, %v746
    %v754 = vadd.f32 %v742, %v746
    %755 = vxpose.xlu0.b32.start [1/16] %v747, 128
    %756 = vxpose.xlu0.b32.cont [2/16] 0.0, 128
    %757 = vxpose.xlu0.b32.cont [3/16] 0.0, 128
    %758 = vxpose.xlu0.b32.cont [4/16] 0.0, 128
    %759 = vxpose.xlu0.b32.cont [5/16] 0.0, 128
    %760 = vxpose.xlu0.b32.cont [6/16] 0.0, 128
    %761 = vxpose.xlu0.b32.cont [7/16] 0.0, 128
    %762 = vxpose.xlu0.b32.cont [8/16] 0.0, 128
    %763 = vxpose.xlu0.b32.cont [9/16] 0.0, 128
    %764 = vxpose.xlu0.b32.cont [10/16] 0.0, 128
    %765 = vxpose.xlu0.b32.cont [11/16] 0.0, 128
    %766 = vxpose.xlu0.b32.cont [12/16] 0.0, 128
    %767 = vxpose.xlu0.b32.cont [13/16] 0.0, 128
    %768 = vxpose.xlu0.b32.cont [14/16] 0.0, 128
    %769 = vxpose.xlu0.b32.cont [15/16] 0.0, 128
    %770 = vxpose.xlu0.b32.end [16/16] 0.0, 128
    %v771 = vpop.trf.xlu0
    %v772 = vpop.trf.xlu0
    %v773 = vpop.trf.xlu0
    %v774 = vpop.trf.xlu0
    %v775 = vpop.trf.xlu0
    %v776 = vpop.trf.xlu0
    %v777 = vpop.trf.xlu0
    %v778 = vpop.trf.xlu0
    %v779 = vpop.trf.xlu0
    %v780 = vpop.trf.xlu0
    %v781 = vpop.trf.xlu0
    %v782 = vpop.trf.xlu0
    %v783 = vpop.trf.xlu0
    %v784 = vpop.trf.xlu0
    %v785 = vpop.trf.xlu0
    %v786 = vpop.trf.xlu0
    %787 = vxpose.xlu0.b32.start [1/16] %v748, 128
    %788 = vxpose.xlu0.b32.cont [2/16] 0.0, 128
    %789 = vxpose.xlu0.b32.cont [3/16] 0.0, 128
    %790 = vxpose.xlu0.b32.cont [4/16] 0.0, 128
    %791 = vxpose.xlu0.b32.cont [5/16] 0.0, 128
    %792 = vxpose.xlu0.b32.cont [6/16] 0.0, 128
    %793 = vxpose.xlu0.b32.cont [7/16] 0.0, 128
    %794 = vxpose.xlu0.b32.cont [8/16] 0.0, 128
    %795 = vxpose.xlu0.b32.cont [9/16] 0.0, 128
    %796 = vxpose.xlu0.b32.cont [10/16] 0.0, 128
    %797 = vxpose.xlu0.b32.cont [11/16] 0.0, 128
    %798 = vxpose.xlu0.b32.cont [12/16] 0.0, 128
    %799 = vxpose.xlu0.b32.cont [13/16] 0.0, 128
    %800 = vxpose.xlu0.b32.cont [14/16] 0.0, 128
    %801 = vxpose.xlu0.b32.cont [15/16] 0.0, 128
    %802 = vxpose.xlu0.b32.end [16/16] 0.0, 128
    %v803 = vpop.trf.xlu0
    %v804 = vpop.trf.xlu0
    %v805 = vpop.trf.xlu0
    %v806 = vpop.trf.xlu0
    %v807 = vpop.trf.xlu0
    %v808 = vpop.trf.xlu0
    %v809 = vpop.trf.xlu0
    %v810 = vpop.trf.xlu0
    %v811 = vpop.trf.xlu0
    %v812 = vpop.trf.xlu0
    %v813 = vpop.trf.xlu0
    %v814 = vpop.trf.xlu0
    %v815 = vpop.trf.xlu0
    %v816 = vpop.trf.xlu0
    %v817 = vpop.trf.xlu0
    %v818 = vpop.trf.xlu0
    %819 = vxpose.xlu0.b32.start [1/16] %v749, 128
    %820 = vxpose.xlu0.b32.cont [2/16] 0.0, 128
    %821 = vxpose.xlu0.b32.cont [3/16] 0.0, 128
    %822 = vxpose.xlu0.b32.cont [4/16] 0.0, 128
    %823 = vxpose.xlu0.b32.cont [5/16] 0.0, 128
    %824 = vxpose.xlu0.b32.cont [6/16] 0.0, 128
    %825 = vxpose.xlu0.b32.cont [7/16] 0.0, 128
    %826 = vxpose.xlu0.b32.cont [8/16] 0.0, 128
    %827 = vxpose.xlu0.b32.cont [9/16] 0.0, 128
    %828 = vxpose.xlu0.b32.cont [10/16] 0.0, 128
    %829 = vxpose.xlu0.b32.cont [11/16] 0.0, 128
    %830 = vxpose.xlu0.b32.cont [12/16] 0.0, 128
    %831 = vxpose.xlu0.b32.cont [13/16] 0.0, 128
    %832 = vxpose.xlu0.b32.cont [14/16] 0.0, 128
    %833 = vxpose.xlu0.b32.cont [15/16] 0.0, 128
    %834 = vxpose.xlu0.b32.end [16/16] 0.0, 128
    %v835 = vpop.trf.xlu0
    %v836 = vpop.trf.xlu0
    %v837 = vpop.trf.xlu0
    %v838 = vpop.trf.xlu0
    %v839 = vpop.trf.xlu0
    %v840 = vpop.trf.xlu0
    %v841 = vpop.trf.xlu0
    %v842 = vpop.trf.xlu0
    %v843 = vpop.trf.xlu0
    %v844 = vpop.trf.xlu0
    %v845 = vpop.trf.xlu0
    %v846 = vpop.trf.xlu0
    %v847 = vpop.trf.xlu0
    %v848 = vpop.trf.xlu0
    %v849 = vpop.trf.xlu0
    %v850 = vpop.trf.xlu0
    %851 = vxpose.xlu0.b32.start [1/16] %v750, 128
    %852 = vxpose.xlu0.b32.cont [2/16] 0.0, 128
    %853 = vxpose.xlu0.b32.cont [3/16] 0.0, 128
    %854 = vxpose.xlu0.b32.cont [4/16] 0.0, 128
    %855 = vxpose.xlu0.b32.cont [5/16] 0.0, 128
    %856 = vxpose.xlu0.b32.cont [6/16] 0.0, 128
    %857 = vxpose.xlu0.b32.cont [7/16] 0.0, 128
    %858 = vxpose.xlu0.b32.cont [8/16] 0.0, 128
    %859 = vxpose.xlu0.b32.cont [9/16] 0.0, 128
    %860 = vxpose.xlu0.b32.cont [10/16] 0.0, 128
    %861 = vxpose.xlu0.b32.cont [11/16] 0.0, 128
    %862 = vxpose.xlu0.b32.cont [12/16] 0.0, 128
    %863 = vxpose.xlu0.b32.cont [13/16] 0.0, 128
    %864 = vxpose.xlu0.b32.cont [14/16] 0.0, 128
    %865 = vxpose.xlu0.b32.cont [15/16] 0.0, 128
    %866 = vxpose.xlu0.b32.end [16/16] 0.0, 128
    %v867 = vpop.trf.xlu0
    %v868 = vpop.trf.xlu0
    %v869 = vpop.trf.xlu0
    %v870 = vpop.trf.xlu0
    %v871 = vpop.trf.xlu0
    %v872 = vpop.trf.xlu0
    %v873 = vpop.trf.xlu0
    %v874 = vpop.trf.xlu0
    %v875 = vpop.trf.xlu0
    %v876 = vpop.trf.xlu0
    %v877 = vpop.trf.xlu0
    %v878 = vpop.trf.xlu0
    %v879 = vpop.trf.xlu0
    %v880 = vpop.trf.xlu0
    %v881 = vpop.trf.xlu0
    %v882 = vpop.trf.xlu0
    %883 = vxpose.xlu0.b32.start [1/16] %v751, 128
    %884 = vxpose.xlu0.b32.cont [2/16] 0.0, 128
    %885 = vxpose.xlu0.b32.cont [3/16] 0.0, 128
    %886 = vxpose.xlu0.b32.cont [4/16] 0.0, 128
    %887 = vxpose.xlu0.b32.cont [5/16] 0.0, 128
    %888 = vxpose.xlu0.b32.cont [6/16] 0.0, 128
    %889 = vxpose.xlu0.b32.cont [7/16] 0.0, 128
    %890 = vxpose.xlu0.b32.cont [8/16] 0.0, 128
    %891 = vxpose.xlu0.b32.cont [9/16] 0.0, 128
    %892 = vxpose.xlu0.b32.cont [10/16] 0.0, 128
    %893 = vxpose.xlu0.b32.cont [11/16] 0.0, 128
    %894 = vxpose.xlu0.b32.cont [12/16] 0.0, 128
    %895 = vxpose.xlu0.b32.cont [13/16] 0.0, 128
    %896 = vxpose.xlu0.b32.cont [14/16] 0.0, 128
    %897 = vxpose.xlu0.b32.cont [15/16] 0.0, 128
    %898 = vxpose.xlu0.b32.end [16/16] 0.0, 128
    %v899 = vpop.trf.xlu0
    %v900 = vpop.trf.xlu0
    %v901 = vpop.trf.xlu0
    %v902 = vpop.trf.xlu0
    %v903 = vpop.trf.xlu0
    %v904 = vpop.trf.xlu0
    %v905 = vpop.trf.xlu0
    %v906 = vpop.trf.xlu0
    %v907 = vpop.trf.xlu0
    %v908 = vpop.trf.xlu0
    %v909 = vpop.trf.xlu0
    %v910 = vpop.trf.xlu0
    %v911 = vpop.trf.xlu0
    %v912 = vpop.trf.xlu0
    %v913 = vpop.trf.xlu0
    %v914 = vpop.trf.xlu0
    %915 = vxpose.xlu0.b32.start [1/16] %v752, 128
    %916 = vxpose.xlu0.b32.cont [2/16] 0.0, 128
    %917 = vxpose.xlu0.b32.cont [3/16] 0.0, 128
    %918 = vxpose.xlu0.b32.cont [4/16] 0.0, 128
    %919 = vxpose.xlu0.b32.cont [5/16] 0.0, 128
    %920 = vxpose.xlu0.b32.cont [6/16] 0.0, 128
    %921 = vxpose.xlu0.b32.cont [7/16] 0.0, 128
    %922 = vxpose.xlu0.b32.cont [8/16] 0.0, 128
    %923 = vxpose.xlu0.b32.cont [9/16] 0.0, 128
    %924 = vxpose.xlu0.b32.cont [10/16] 0.0, 128
    %925 = vxpose.xlu0.b32.cont [11/16] 0.0, 128
    %926 = vxpose.xlu0.b32.cont [12/16] 0.0, 128
    %927 = vxpose.xlu0.b32.cont [13/16] 0.0, 128
    %928 = vxpose.xlu0.b32.cont [14/16] 0.0, 128
    %929 = vxpose.xlu0.b32.cont [15/16] 0.0, 128
    %930 = vxpose.xlu0.b32.end [16/16] 0.0, 128
    %v931 = vpop.trf.xlu0
    %v932 = vpop.trf.xlu0
    %v933 = vpop.trf.xlu0
    %v934 = vpop.trf.xlu0
    %v935 = vpop.trf.xlu0
    %v936 = vpop.trf.xlu0
    %v937 = vpop.trf.xlu0
    %v938 = vpop.trf.xlu0
    %v939 = vpop.trf.xlu0
    %v940 = vpop.trf.xlu0
    %v941 = vpop.trf.xlu0
    %v942 = vpop.trf.xlu0
    %v943 = vpop.trf.xlu0
    %v944 = vpop.trf.xlu0
    %v945 = vpop.trf.xlu0
    %v946 = vpop.trf.xlu0
    %947 = vxpose.xlu0.b32.start [1/16] %v753, 128
    %948 = vxpose.xlu0.b32.cont [2/16] 0.0, 128
    %949 = vxpose.xlu0.b32.cont [3/16] 0.0, 128
    %950 = vxpose.xlu0.b32.cont [4/16] 0.0, 128
    %951 = vxpose.xlu0.b32.cont [5/16] 0.0, 128
    %952 = vxpose.xlu0.b32.cont [6/16] 0.0, 128
    %953 = vxpose.xlu0.b32.cont [7/16] 0.0, 128
    %954 = vxpose.xlu0.b32.cont [8/16] 0.0, 128
    %955 = vxpose.xlu0.b32.cont [9/16] 0.0, 128
    %956 = vxpose.xlu0.b32.cont [10/16] 0.0, 128
    %957 = vxpose.xlu0.b32.cont [11/16] 0.0, 128
    %958 = vxpose.xlu0.b32.cont [12/16] 0.0, 128
    %959 = vxpose.xlu0.b32.cont [13/16] 0.0, 128
    %960 = vxpose.xlu0.b32.cont [14/16] 0.0, 128
    %961 = vxpose.xlu0.b32.cont [15/16] 0.0, 128
    %962 = vxpose.xlu0.b32.end [16/16] 0.0, 128
    %v963 = vpop.trf.xlu0
    %v964 = vpop.trf.xlu0
    %v965 = vpop.trf.xlu0
    %v966 = vpop.trf.xlu0
    %v967 = vpop.trf.xlu0
    %v968 = vpop.trf.xlu0
    %v969 = vpop.trf.xlu0
    %v970 = vpop.trf.xlu0
    %v971 = vpop.trf.xlu0
    %v972 = vpop.trf.xlu0
    %v973 = vpop.trf.xlu0
    %v974 = vpop.trf.xlu0
    %v975 = vpop.trf.xlu0
    %v976 = vpop.trf.xlu0
    %v977 = vpop.trf.xlu0
    %v978 = vpop.trf.xlu0
    %979 = vxpose.xlu0.b32.start [1/16] %v754, 128
    %980 = vxpose.xlu0.b32.cont [2/16] 0.0, 128
    %981 = vxpose.xlu0.b32.cont [3/16] 0.0, 128
    %982 = vxpose.xlu0.b32.cont [4/16] 0.0, 128
    %983 = vxpose.xlu0.b32.cont [5/16] 0.0, 128
    %984 = vxpose.xlu0.b32.cont [6/16] 0.0, 128
    %985 = vxpose.xlu0.b32.cont [7/16] 0.0, 128
    %986 = vxpose.xlu0.b32.cont [8/16] 0.0, 128
    %987 = vxpose.xlu0.b32.cont [9/16] 0.0, 128
    %988 = vxpose.xlu0.b32.cont [10/16] 0.0, 128
    %989 = vxpose.xlu0.b32.cont [11/16] 0.0, 128
    %990 = vxpose.xlu0.b32.cont [12/16] 0.0, 128
    %991 = vxpose.xlu0.b32.cont [13/16] 0.0, 128
    %992 = vxpose.xlu0.b32.cont [14/16] 0.0, 128
    %993 = vxpose.xlu0.b32.cont [15/16] 0.0, 128
    %994 = vxpose.xlu0.b32.end [16/16] 0.0, 128
    %v995 = vpop.trf.xlu0
    %v996 = vpop.trf.xlu0
    %v997 = vpop.trf.xlu0
    %v998 = vpop.trf.xlu0
    %v999 = vpop.trf.xlu0
    %v1000 = vpop.trf.xlu0
    %v1001 = vpop.trf.xlu0
    %v1002 = vpop.trf.xlu0
    %v1003 = vpop.trf.xlu0
    %v1004 = vpop.trf.xlu0
    %v1005 = vpop.trf.xlu0
    %v1006 = vpop.trf.xlu0
    %v1007 = vpop.trf.xlu0
    %v1008 = vpop.trf.xlu0
    %v1009 = vpop.trf.xlu0
    %v1010 = vpop.trf.xlu0
    %v1011 = vpack.c.bf16 %v772, %v771
    %v1012 = vpack.c.bf16 %v774, %v773
    %v1013 = vpack.c.bf16 %v804, %v803
    %v1014 = vpack.c.bf16 %v806, %v805
    %v1015 = vpack.c.bf16 %v836, %v835
    %v1016 = vpack.c.bf16 %v838, %v837
    %v1017 = vpack.c.bf16 %v868, %v867
    %v1018 = vpack.c.bf16 %v870, %v869
    %v1019 = vpack.c.bf16 %v900, %v899
    %v1020 = vpack.c.bf16 %v902, %v901
    %v1021 = vpack.c.bf16 %v932, %v931
    %v1022 = vpack.c.bf16 %v934, %v933
    %v1023 = vpack.c.bf16 %v964, %v963
    %v1024 = vpack.c.bf16 %v966, %v965
    %v1025 = vpack.c.bf16 %v996, %v995
    %v1026 = vpack.c.bf16 %v998, %v997
    %v1027 = vld [vmem:[#allocation2 + $0x4] sm:$0xf]
    %v1028 = vld [vmem:[#allocation5 + $0x18] sm:$0x1]
    %v1029 = vlaneseq
    %v1030 = vshrl.u32 %v1029, 7
    %v1031 = vsub.s32 0, %v1030
    %v1032 = vrot.slane %v1028, %v1031
    %v1034 = vsel %vm66, %v1011, 0
    %v1037 = vsel %vm66, %v1012, 0
    %v1040 = vsel %vm66, %v1013, 0
    %v1043 = vsel %vm66, %v1014, 0
    %v1046 = vsel %vm66, %v1015, 0
    %v1049 = vsel %vm66, %v1016, 0
    %v1052 = vsel %vm66, %v1017, 0
    %v1055 = vsel %vm66, %v1018, 0
    %v1058 = vsel %vm66, %v1019, 0
    %v1061 = vsel %vm66, %v1020, 0
    %v1064 = vsel %vm66, %v1021, 0
    %v1067 = vsel %vm66, %v1022, 0
    %v1070 = vsel %vm66, %v1023, 0
    %v1073 = vsel %vm66, %v1024, 0
    %v1076 = vsel %vm66, %v1025, 0
    %v1079 = vsel %vm66, %v1026, 0
    %v1082 = vsel %vm498, %v1027, 0
    %1084 = vmatprep.subr.bf16.mxu0 0
    %1085 = vmatpush1.bf16.msra.mxu0 %v1082
    %1086 = vmatprep.subr.bf16.mxu0 0
    %1087 = vmatpush1.bf16.msra.mxu0 0
    %1088 = vmatprep.subr.bf16.mxu0 0
    %1089 = vmatpush1.bf16.msra.mxu0 0
    %1090 = vmatprep.subr.bf16.mxu0 0
    %1091 = vmatpush1.bf16.msra.mxu0 0
    %1092 = vmatprep.subr.bf16.mxu0 0
    %1093 = vmatpush1.bf16.msra.mxu0 0
    %1094 = vmatprep.subr.bf16.mxu0 0
    %1095 = vmatpush1.bf16.msra.mxu0 0
    %1096 = vmatprep.subr.bf16.mxu0 0
    %1097 = vmatpush1.bf16.msra.mxu0 0
    %1098 = vmatprep.subr.bf16.mxu0 0
    %1099 = vmatpush1.bf16.msra.mxu0 0
    %1100 = vmatprep.subr.bf16.mxu0 0
    %1101 = vmatpush1.bf16.msra.mxu0 0
    %1102 = vmatprep.subr.bf16.mxu0 0
    %1103 = vmatpush1.bf16.msra.mxu0 0
    %1104 = vmatprep.subr.bf16.mxu0 0
    %1105 = vmatpush1.bf16.msra.mxu0 0
    %1106 = vmatprep.subr.bf16.mxu0 0
    %1107 = vmatpush1.bf16.msra.mxu0 0
    %1108 = vmatprep.subr.bf16.mxu0 0
    %1109 = vmatpush1.bf16.msra.mxu0 0
    %1110 = vmatprep.subr.bf16.mxu0 0
    %1111 = vmatpush1.bf16.msra.mxu0 0
    %1112 = vmatprep.subr.bf16.mxu0 0
    %1113 = vmatpush1.bf16.msra.mxu0 0
    %1114 = vmatprep.subr.bf16.mxu0 0
    %1115 = vmatpush1.bf16.msra.mxu0 0
    %1116 = vmatprep.mubr.bf16.mxu0 0
    %1117 = vmatmul.mubr.bf16.gmra.mrb[0].mxu0 %v1034
    %v1118 = vpop.f32.mrb[0].mxu0
    %v1119 = vadd.f32 %v1032, %v1118
    %v1120 = vpop.f32.mrb[0].mxu0
    %v1121 = vpop.f32.mrb[0].mxu0
    %v1122 = vadd.f32 %v1032, %v1121
    %v1123 = vpop.f32.mrb[0].mxu0
    %1124 = vmatprep.mubr.bf16.mxu0 0
    %1125 = vmatmul.mubr.bf16.gmra.mrb[0].mxu0 %v1037
    %v1126 = vpop.f32.mrb[0].mxu0
    %v1127 = vadd.f32 %v1032, %v1126
    %v1128 = vpop.f32.mrb[0].mxu0
    %v1129 = vpop.f32.mrb[0].mxu0
    %v1130 = vadd.f32 %v1032, %v1129
    %v1131 = vpop.f32.mrb[0].mxu0
    %1132 = vmatprep.mubr.bf16.mxu0 0
    %1133 = vmatmul.mubr.bf16.gmra.mrb[0].mxu0 %v1040
    %v1134 = vpop.f32.mrb[0].mxu0
    %v1135 = vadd.f32 %v1032, %v1134
    %v1136 = vpop.f32.mrb[0].mxu0
    %v1137 = vpop.f32.mrb[0].mxu0
    %v1138 = vadd.f32 %v1032, %v1137
    %v1139 = vpop.f32.mrb[0].mxu0
    %1140 = vmatprep.mubr.bf16.mxu0 0
    %1141 = vmatmul.mubr.bf16.gmra.mrb[0].mxu0 %v1043
    %v1142 = vpop.f32.mrb[0].mxu0
    %v1143 = vadd.f32 %v1032, %v1142
    %v1144 = vpop.f32.mrb[0].mxu0
    %v1145 = vpop.f32.mrb[0].mxu0
    %v1146 = vadd.f32 %v1032, %v1145
    %v1147 = vpop.f32.mrb[0].mxu0
    %1148 = vmatprep.mubr.bf16.mxu0 0
    %1149 = vmatmul.mubr.bf16.gmra.mrb[0].mxu0 %v1046
    %v1150 = vpop.f32.mrb[0].mxu0
    %v1151 = vadd.f32 %v1032, %v1150
    %v1152 = vpop.f32.mrb[0].mxu0
    %v1153 = vpop.f32.mrb[0].mxu0
    %v1154 = vadd.f32 %v1032, %v1153
    %v1155 = vpop.f32.mrb[0].mxu0
    %1156 = vmatprep.mubr.bf16.mxu0 0
    %1157 = vmatmul.mubr.bf16.gmra.mrb[0].mxu0 %v1049
    %v1158 = vpop.f32.mrb[0].mxu0
    %v1159 = vadd.f32 %v1032, %v1158
    %v1160 = vpop.f32.mrb[0].mxu0
    %v1161 = vpop.f32.mrb[0].mxu0
    %v1162 = vadd.f32 %v1032, %v1161
    %v1163 = vpop.f32.mrb[0].mxu0
    %1164 = vmatprep.mubr.bf16.mxu0 0
    %1165 = vmatmul.mubr.bf16.gmra.mrb[0].mxu0 %v1052
    %v1166 = vpop.f32.mrb[0].mxu0
    %v1167 = vadd.f32 %v1032, %v1166
    %v1168 = vpop.f32.mrb[0].mxu0
    %v1169 = vpop.f32.mrb[0].mxu0
    %v1170 = vadd.f32 %v1032, %v1169
    %v1171 = vpop.f32.mrb[0].mxu0
    %1172 = vmatprep.mubr.bf16.mxu0 0
    %1173 = vmatmul.mubr.bf16.gmra.mrb[0].mxu0 %v1055
    %v1174 = vpop.f32.mrb[0].mxu0
    %v1175 = vadd.f32 %v1032, %v1174
    %v1176 = vpop.f32.mrb[0].mxu0
    %v1177 = vpop.f32.mrb[0].mxu0
    %v1178 = vadd.f32 %v1032, %v1177
    %v1179 = vpop.f32.mrb[0].mxu0
    %1180 = vmatprep.mubr.bf16.mxu0 0
    %1181 = vmatmul.mubr.bf16.gmra.mrb[0].mxu0 %v1058
    %v1182 = vpop.f32.mrb[0].mxu0
    %v1183 = vadd.f32 %v1032, %v1182
    %v1184 = vpop.f32.mrb[0].mxu0
    %v1185 = vpop.f32.mrb[0].mxu0
    %v1186 = vadd.f32 %v1032, %v1185
    %v1187 = vpop.f32.mrb[0].mxu0
    %1188 = vmatprep.mubr.bf16.mxu0 0
    %1189 = vmatmul.mubr.bf16.gmra.mrb[0].mxu0 %v1061
    %v1190 = vpop.f32.mrb[0].mxu0
    %v1191 = vadd.f32 %v1032, %v1190
    %v1192 = vpop.f32.mrb[0].mxu0
    %v1193 = vpop.f32.mrb[0].mxu0
    %v1194 = vadd.f32 %v1032, %v1193
    %v1195 = vpop.f32.mrb[0].mxu0
    %1196 = vmatprep.mubr.bf16.mxu0 0
    %1197 = vmatmul.mubr.bf16.gmra.mrb[0].mxu0 %v1064
    %v1198 = vpop.f32.mrb[0].mxu0
    %v1199 = vadd.f32 %v1032, %v1198
    %v1200 = vpop.f32.mrb[0].mxu0
    %v1201 = vpop.f32.mrb[0].mxu0
    %v1202 = vadd.f32 %v1032, %v1201
    %v1203 = vpop.f32.mrb[0].mxu0
    %1204 = vmatprep.mubr.bf16.mxu0 0
    %1205 = vmatmul.mubr.bf16.gmra.mrb[0].mxu0 %v1067
    %v1206 = vpop.f32.mrb[0].mxu0
    %v1207 = vadd.f32 %v1032, %v1206
    %v1208 = vpop.f32.mrb[0].mxu0
    %v1209 = vpop.f32.mrb[0].mxu0
    %v1210 = vadd.f32 %v1032, %v1209
    %v1211 = vpop.f32.mrb[0].mxu0
    %1212 = vmatprep.mubr.bf16.mxu0 0
    %1213 = vmatmul.mubr.bf16.gmra.mrb[0].mxu0 %v1070
    %v1214 = vpop.f32.mrb[0].mxu0
    %v1215 = vadd.f32 %v1032, %v1214
    %v1216 = vpop.f32.mrb[0].mxu0
    %v1217 = vpop.f32.mrb[0].mxu0
    %v1218 = vadd.f32 %v1032, %v1217
    %v1219 = vpop.f32.mrb[0].mxu0
    %1220 = vmatprep.mubr.bf16.mxu0 0
    %1221 = vmatmul.mubr.bf16.gmra.mrb[0].mxu0 %v1073
    %v1222 = vpop.f32.mrb[0].mxu0
    %v1223 = vadd.f32 %v1032, %v1222
    %v1224 = vpop.f32.mrb[0].mxu0
    %v1225 = vpop.f32.mrb[0].mxu0
    %v1226 = vadd.f32 %v1032, %v1225
    %v1227 = vpop.f32.mrb[0].mxu0
    %1228 = vmatprep.mubr.bf16.mxu0 0
    %1229 = vmatmul.mubr.bf16.gmra.mrb[0].mxu0 %v1076
    %v1230 = vpop.f32.mrb[0].mxu0
    %v1231 = vadd.f32 %v1032, %v1230
    %v1232 = vpop.f32.mrb[0].mxu0
    %v1233 = vpop.f32.mrb[0].mxu0
    %v1234 = vadd.f32 %v1032, %v1233
    %v1235 = vpop.f32.mrb[0].mxu0
    %1236 = vmatprep.mubr.bf16.mxu0 0
    %1237 = vmatmul.mubr.bf16.gmra.mrb[0].mxu0 %v1079
    %v1238 = vpop.f32.mrb[0].mxu0
    %v1239 = vadd.f32 %v1032, %v1238
    %v1240 = vpop.f32.mrb[0].mxu0
    %v1241 = vpop.f32.mrb[0].mxu0
    %v1242 = vadd.f32 %v1032, %v1241
    %v1243 = vpop.f32.mrb[0].mxu0
    %1244 = vdwg.mxu0
    %v1245 = vmul.f32 %v1119, 0.5
    %v1246 = vmul.f32 %v1122, 0.5
    %v1247 = vmul.f32 %v1127, 0.5
    %v1248 = vmul.f32 %v1130, 0.5
    %v1249 = vmul.f32 %v1135, 0.5
    %v1250 = vmul.f32 %v1138, 0.5
    %v1251 = vmul.f32 %v1143, 0.5
    %v1252 = vmul.f32 %v1146, 0.5
    %v1253 = vmul.f32 %v1151, 0.5
    %v1254 = vmul.f32 %v1154, 0.5
    %v1255 = vmul.f32 %v1159, 0.5
    %v1256 = vmul.f32 %v1162, 0.5
    %v1257 = vmul.f32 %v1167, 0.5
    %v1258 = vmul.f32 %v1170, 0.5
    %v1259 = vmul.f32 %v1175, 0.5
    %v1260 = vmul.f32 %v1178, 0.5
    %v1261 = vmul.f32 %v1183, 0.5
    %v1262 = vmul.f32 %v1186, 0.5
    %v1263 = vmul.f32 %v1191, 0.5
    %v1264 = vmul.f32 %v1194, 0.5
    %v1265 = vmul.f32 %v1199, 0.5
    %v1266 = vmul.f32 %v1202, 0.5
    %v1267 = vmul.f32 %v1207, 0.5
    %v1268 = vmul.f32 %v1210, 0.5
    %v1269 = vmul.f32 %v1215, 0.5
    %v1270 = vmul.f32 %v1218, 0.5
    %v1271 = vmul.f32 %v1223, 0.5
    %v1272 = vmul.f32 %v1226, 0.5
    %v1273 = vmul.f32 %v1231, 0.5
    %v1274 = vmul.f32 %v1234, 0.5
    %v1275 = vmul.f32 %v1239, 0.5
    %v1276 = vmul.f32 %v1242, 0.5
    %v1277 = vrcp.pop 1.4142135
    %v1278 = vmul.f32 %v1119, %v1277
    %v1279 = vmul.f32 %v1122, %v1277
    %v1280 = vmul.f32 %v1127, %v1277
    %v1281 = vmul.f32 %v1130, %v1277
    %v1282 = vmul.f32 %v1135, %v1277
    %v1283 = vmul.f32 %v1138, %v1277
    %v1284 = vmul.f32 %v1143, %v1277
    %v1285 = vmul.f32 %v1146, %v1277
    %v1286 = vmul.f32 %v1151, %v1277
    %v1287 = vmul.f32 %v1154, %v1277
    %v1288 = vmul.f32 %v1159, %v1277
    %v1289 = vmul.f32 %v1162, %v1277
    %v1290 = vmul.f32 %v1167, %v1277
    %v1291 = vmul.f32 %v1170, %v1277
    %v1292 = vmul.f32 %v1175, %v1277
    %v1293 = vmul.f32 %v1178, %v1277
    %v1294 = vmul.f32 %v1183, %v1277
    %v1295 = vmul.f32 %v1186, %v1277
    %v1296 = vmul.f32 %v1191, %v1277
    %v1297 = vmul.f32 %v1194, %v1277
    %v1298 = vmul.f32 %v1199, %v1277
    %v1299 = vmul.f32 %v1202, %v1277
    %v1300 = vmul.f32 %v1207, %v1277
    %v1301 = vmul.f32 %v1210, %v1277
    %v1302 = vmul.f32 %v1215, %v1277
    %v1303 = vmul.f32 %v1218, %v1277
    %v1304 = vmul.f32 %v1223, %v1277
    %v1305 = vmul.f32 %v1226, %v1277
    %v1306 = vmul.f32 %v1231, %v1277
    %v1307 = vmul.f32 %v1234, %v1277
    %v1308 = vmul.f32 %v1239, %v1277
    %v1309 = vmul.f32 %v1242, %v1277
    %v1310 = verf.f32.pop %v1278
    %v1311 = verf.f32.pop %v1279
    %v1312 = verf.f32.pop %v1280
    %v1313 = verf.f32.pop %v1281
    %v1314 = verf.f32.pop %v1282
    %v1315 = verf.f32.pop %v1283
    %v1316 = verf.f32.pop %v1284
    %v1317 = verf.f32.pop %v1285
    %v1318 = verf.f32.pop %v1286
    %v1319 = verf.f32.pop %v1287
    %v1320 = verf.f32.pop %v1288
    %v1321 = verf.f32.pop %v1289
    %v1322 = verf.f32.pop %v1290
    %v1323 = verf.f32.pop %v1291
    %v1324 = verf.f32.pop %v1292
    %v1325 = verf.f32.pop %v1293
    %v1326 = verf.f32.pop %v1294
    %v1327 = verf.f32.pop %v1295
    %v1328 = verf.f32.pop %v1296
    %v1329 = verf.f32.pop %v1297
    %v1330 = verf.f32.pop %v1298
    %v1331 = verf.f32.pop %v1299
    %v1332 = verf.f32.pop %v1300
    %v1333 = verf.f32.pop %v1301
    %v1334 = verf.f32.pop %v1302
    %v1335 = verf.f32.pop %v1303
    %v1336 = verf.f32.pop %v1304
    %v1337 = verf.f32.pop %v1305
    %v1338 = verf.f32.pop %v1306
    %v1339 = verf.f32.pop %v1307
    %v1340 = verf.f32.pop %v1308
    %v1341 = verf.f32.pop %v1309
    %v1342 = vadd.f32 %v1310, 1.0
    %v1343 = vadd.f32 %v1311, 1.0
    %v1344 = vadd.f32 %v1312, 1.0
    %v1345 = vadd.f32 %v1313, 1.0
    %v1346 = vadd.f32 %v1314, 1.0
    %v1347 = vadd.f32 %v1315, 1.0
    %v1348 = vadd.f32 %v1316, 1.0
    %v1349 = vadd.f32 %v1317, 1.0
    %v1350 = vadd.f32 %v1318, 1.0
    %v1351 = vadd.f32 %v1319, 1.0
    %v1352 = vadd.f32 %v1320, 1.0
    %v1353 = vadd.f32 %v1321, 1.0
    %v1354 = vadd.f32 %v1322, 1.0
    %v1355 = vadd.f32 %v1323, 1.0
    %v1356 = vadd.f32 %v1324, 1.0
    %v1357 = vadd.f32 %v1325, 1.0
    %v1358 = vadd.f32 %v1326, 1.0
    %v1359 = vadd.f32 %v1327, 1.0
    %v1360 = vadd.f32 %v1328, 1.0
    %v1361 = vadd.f32 %v1329, 1.0
    %v1362 = vadd.f32 %v1330, 1.0
    %v1363 = vadd.f32 %v1331, 1.0
    %v1364 = vadd.f32 %v1332, 1.0
    %v1365 = vadd.f32 %v1333, 1.0
    %v1366 = vadd.f32 %v1334, 1.0
    %v1367 = vadd.f32 %v1335, 1.0
    %v1368 = vadd.f32 %v1336, 1.0
    %v1369 = vadd.f32 %v1337, 1.0
    %v1370 = vadd.f32 %v1338, 1.0
    %v1371 = vadd.f32 %v1339, 1.0
    %v1372 = vadd.f32 %v1340, 1.0
    %v1373 = vadd.f32 %v1341, 1.0
    %v1374 = vmul.f32 %v1245, %v1342
    %v1375 = vmul.f32 %v1246, %v1343
    %v1376 = vmul.f32 %v1247, %v1344
    %v1377 = vmul.f32 %v1248, %v1345
    %v1378 = vmul.f32 %v1249, %v1346
    %v1379 = vmul.f32 %v1250, %v1347
    %v1380 = vmul.f32 %v1251, %v1348
    %v1381 = vmul.f32 %v1252, %v1349
    %v1382 = vmul.f32 %v1253, %v1350
    %v1383 = vmul.f32 %v1254, %v1351
    %v1384 = vmul.f32 %v1255, %v1352
    %v1385 = vmul.f32 %v1256, %v1353
    %v1386 = vmul.f32 %v1257, %v1354
    %v1387 = vmul.f32 %v1258, %v1355
    %v1388 = vmul.f32 %v1259, %v1356
    %v1389 = vmul.f32 %v1260, %v1357
    %v1390 = vmul.f32 %v1261, %v1358
    %v1391 = vmul.f32 %v1262, %v1359
    %v1392 = vmul.f32 %v1263, %v1360
    %v1393 = vmul.f32 %v1264, %v1361
    %v1394 = vmul.f32 %v1265, %v1362
    %v1395 = vmul.f32 %v1266, %v1363
    %v1396 = vmul.f32 %v1267, %v1364
    %v1397 = vmul.f32 %v1268, %v1365
    %v1398 = vmul.f32 %v1269, %v1366
    %v1399 = vmul.f32 %v1270, %v1367
    %v1400 = vmul.f32 %v1271, %v1368
    %v1401 = vmul.f32 %v1272, %v1369
    %v1402 = vmul.f32 %v1273, %v1370
    %v1403 = vmul.f32 %v1274, %v1371
    %v1404 = vmul.f32 %v1275, %v1372
    %v1405 = vmul.f32 %v1276, %v1373
    %v1406 = vpack.c.bf16 %v1375, %v1374
    %v1407 = vpack.c.bf16 %v1377, %v1376
    %v1408 = vpack.c.bf16 %v1379, %v1378
    %v1409 = vpack.c.bf16 %v1381, %v1380
    %v1410 = vpack.c.bf16 %v1383, %v1382
    %v1411 = vpack.c.bf16 %v1385, %v1384
    %v1412 = vpack.c.bf16 %v1387, %v1386
    %v1413 = vpack.c.bf16 %v1389, %v1388
    %v1414 = vpack.c.bf16 %v1391, %v1390
    %v1415 = vpack.c.bf16 %v1393, %v1392
    %v1416 = vpack.c.bf16 %v1395, %v1394
    %v1417 = vpack.c.bf16 %v1397, %v1396
    %v1418 = vpack.c.bf16 %v1399, %v1398
    %v1419 = vpack.c.bf16 %v1401, %v1400
    %v1420 = vpack.c.bf16 %v1403, %v1402
    %v1421 = vpack.c.bf16 %v1405, %v1404
    %v1422 = vld [vmem:[#allocation2 + $0x8] sm:$0xf]
    %v1423 = vld [vmem:[#allocation2 + $0xc] sm:$0xf]
    %v1424 = vld [vmem:[#allocation5 + $0x20] sm:$0x1]
    %v1425 = vlaneseq
    %v1426 = vshrl.u32 %v1425, 7
    %v1427 = vsub.s32 0, %v1426
    %v1428 = vrot.slane %v1424, %v1427
    %v1431 = vunpack.c.l.b16 %v1422
    %v1432 = vunpack.c.l.b16 %v1423
    %v1433 = vpack.c.b16 %v1432, %v1431
    %vm1435 = vcmask 130048
    %v1437 = vsel %vm1435, %v1406, 0
    %v1440 = vsel %vm1435, %v1407, 0
    %v1443 = vsel %vm1435, %v1408, 0
    %v1446 = vsel %vm1435, %v1409, 0
    %v1449 = vsel %vm1435, %v1410, 0
    %v1452 = vsel %vm1435, %v1411, 0
    %v1455 = vsel %vm1435, %v1412, 0
    %v1458 = vsel %vm1435, %v1413, 0
    %v1461 = vsel %vm1435, %v1414, 0
    %v1464 = vsel %vm1435, %v1415, 0
    %v1467 = vsel %vm1435, %v1416, 0
    %v1470 = vsel %vm1435, %v1417, 0
    %v1473 = vsel %vm1435, %v1418, 0
    %v1476 = vsel %vm1435, %v1419, 0
    %v1479 = vsel %vm1435, %v1420, 0
    %v1482 = vsel %vm1435, %v1421, 0
    %1484 = vmatprep.subr.bf16.mxu0 0
    %1485 = vmatpush1.bf16.msra.mxu0 %v1433
    %1486 = vmatprep.subr.bf16.mxu0 0
    %1487 = vmatpush1.bf16.msra.mxu0 0
    %1488 = vmatprep.subr.bf16.mxu0 0
    %1489 = vmatpush1.bf16.msra.mxu0 0
    %1490 = vmatprep.subr.bf16.mxu0 0
    %1491 = vmatpush1.bf16.msra.mxu0 0
    %1492 = vmatprep.subr.bf16.mxu0 0
    %1493 = vmatpush1.bf16.msra.mxu0 0
    %1494 = vmatprep.subr.bf16.mxu0 0
    %1495 = vmatpush1.bf16.msra.mxu0 0
    %1496 = vmatprep.subr.bf16.mxu0 0
    %1497 = vmatpush1.bf16.msra.mxu0 0
    %1498 = vmatprep.subr.bf16.mxu0 0
    %1499 = vmatpush1.bf16.msra.mxu0 0
    %1500 = vmatprep.subr.bf16.mxu0 0
    %1501 = vmatpush1.bf16.msra.mxu0 0
    %1502 = vmatprep.subr.bf16.mxu0 0
    %1503 = vmatpush1.bf16.msra.mxu0 0
    %1504 = vmatprep.subr.bf16.mxu0 0
    %1505 = vmatpush1.bf16.msra.mxu0 0
    %1506 = vmatprep.subr.bf16.mxu0 0
    %1507 = vmatpush1.bf16.msra.mxu0 0
    %1508 = vmatprep.subr.bf16.mxu0 0
    %1509 = vmatpush1.bf16.msra.mxu0 0
    %1510 = vmatprep.subr.bf16.mxu0 0
    %1511 = vmatpush1.bf16.msra.mxu0 0
    %1512 = vmatprep.subr.bf16.mxu0 0
    %1513 = vmatpush1.bf16.msra.mxu0 0
    %1514 = vmatprep.subr.bf16.mxu0 0
    %1515 = vmatpush1.bf16.msra.mxu0 0
    %1516 = vmatprep.mubr.bf16.mxu0 0
    %1517 = vmatmul.mubr.bf16.gmra.mrb[0].mxu0 %v1437
    %v1518 = vpop.f32.mrb[0].mxu0
    %v1519 = vadd.f32 %v1428, %v1518
    %v1520 = vpop.f32.mrb[0].mxu0
    %v1521 = vpop.f32.mrb[0].mxu0
    %v1522 = vadd.f32 %v1428, %v1521
    %v1523 = vpop.f32.mrb[0].mxu0
    %1524 = vmatprep.mubr.bf16.mxu0 0
    %1525 = vmatmul.mubr.bf16.gmra.mrb[0].mxu0 %v1440
    %v1526 = vpop.f32.mrb[0].mxu0
    %v1527 = vadd.f32 %v1428, %v1526
    %v1528 = vpop.f32.mrb[0].mxu0
    %v1529 = vpop.f32.mrb[0].mxu0
    %v1530 = vadd.f32 %v1428, %v1529
    %v1531 = vpop.f32.mrb[0].mxu0
    %1532 = vmatprep.mubr.bf16.mxu0 0
    %1533 = vmatmul.mubr.bf16.gmra.mrb[0].mxu0 %v1443
    %v1534 = vpop.f32.mrb[0].mxu0
    %v1535 = vadd.f32 %v1428, %v1534
    %v1536 = vpop.f32.mrb[0].mxu0
    %v1537 = vpop.f32.mrb[0].mxu0
    %v1538 = vadd.f32 %v1428, %v1537
    %v1539 = vpop.f32.mrb[0].mxu0
    %1540 = vmatprep.mubr.bf16.mxu0 0
    %1541 = vmatmul.mubr.bf16.gmra.mrb[0].mxu0 %v1446
    %v1542 = vpop.f32.mrb[0].mxu0
    %v1543 = vadd.f32 %v1428, %v1542
    %v1544 = vpop.f32.mrb[0].mxu0
    %v1545 = vpop.f32.mrb[0].mxu0
    %v1546 = vadd.f32 %v1428, %v1545
    %v1547 = vpop.f32.mrb[0].mxu0
    %1548 = vmatprep.mubr.bf16.mxu0 0
    %1549 = vmatmul.mubr.bf16.gmra.mrb[0].mxu0 %v1449
    %v1550 = vpop.f32.mrb[0].mxu0
    %v1551 = vadd.f32 %v1428, %v1550
    %v1552 = vpop.f32.mrb[0].mxu0
    %v1553 = vpop.f32.mrb[0].mxu0
    %v1554 = vadd.f32 %v1428, %v1553
    %v1555 = vpop.f32.mrb[0].mxu0
    %1556 = vmatprep.mubr.bf16.mxu0 0
    %1557 = vmatmul.mubr.bf16.gmra.mrb[0].mxu0 %v1452
    %v1558 = vpop.f32.mrb[0].mxu0
    %v1559 = vadd.f32 %v1428, %v1558
    %v1560 = vpop.f32.mrb[0].mxu0
    %v1561 = vpop.f32.mrb[0].mxu0
    %v1562 = vadd.f32 %v1428, %v1561
    %v1563 = vpop.f32.mrb[0].mxu0
    %1564 = vmatprep.mubr.bf16.mxu0 0
    %1565 = vmatmul.mubr.bf16.gmra.mrb[0].mxu0 %v1455
    %v1566 = vpop.f32.mrb[0].mxu0
    %v1567 = vadd.f32 %v1428, %v1566
    %v1568 = vpop.f32.mrb[0].mxu0
    %v1569 = vpop.f32.mrb[0].mxu0
    %v1570 = vadd.f32 %v1428, %v1569
    %v1571 = vpop.f32.mrb[0].mxu0
    %1572 = vmatprep.mubr.bf16.mxu0 0
    %1573 = vmatmul.mubr.bf16.gmra.mrb[0].mxu0 %v1458
    %v1574 = vpop.f32.mrb[0].mxu0
    %v1575 = vadd.f32 %v1428, %v1574
    %v1576 = vpop.f32.mrb[0].mxu0
    %v1577 = vpop.f32.mrb[0].mxu0
    %v1578 = vadd.f32 %v1428, %v1577
    %v1579 = vpop.f32.mrb[0].mxu0
    %1580 = vmatprep.mubr.bf16.mxu0 0
    %1581 = vmatmul.mubr.bf16.gmra.mrb[0].mxu0 %v1461
    %v1582 = vpop.f32.mrb[0].mxu0
    %v1583 = vadd.f32 %v1428, %v1582
    %v1584 = vpop.f32.mrb[0].mxu0
    %v1585 = vpop.f32.mrb[0].mxu0
    %v1586 = vadd.f32 %v1428, %v1585
    %v1587 = vpop.f32.mrb[0].mxu0
    %1588 = vmatprep.mubr.bf16.mxu0 0
    %1589 = vmatmul.mubr.bf16.gmra.mrb[0].mxu0 %v1464
    %v1590 = vpop.f32.mrb[0].mxu0
    %v1591 = vadd.f32 %v1428, %v1590
    %v1592 = vpop.f32.mrb[0].mxu0
    %v1593 = vpop.f32.mrb[0].mxu0
    %v1594 = vadd.f32 %v1428, %v1593
    %v1595 = vpop.f32.mrb[0].mxu0
    %1596 = vmatprep.mubr.bf16.mxu0 0
    %1597 = vmatmul.mubr.bf16.gmra.mrb[0].mxu0 %v1467
    %v1598 = vpop.f32.mrb[0].mxu0
    %v1599 = vadd.f32 %v1428, %v1598
    %v1600 = vpop.f32.mrb[0].mxu0
    %v1601 = vpop.f32.mrb[0].mxu0
    %v1602 = vadd.f32 %v1428, %v1601
    %v1603 = vpop.f32.mrb[0].mxu0
    %1604 = vmatprep.mubr.bf16.mxu0 0
    %1605 = vmatmul.mubr.bf16.gmra.mrb[0].mxu0 %v1470
    %v1606 = vpop.f32.mrb[0].mxu0
    %v1607 = vadd.f32 %v1428, %v1606
    %v1608 = vpop.f32.mrb[0].mxu0
    %v1609 = vpop.f32.mrb[0].mxu0
    %v1610 = vadd.f32 %v1428, %v1609
    %v1611 = vpop.f32.mrb[0].mxu0
    %1612 = vmatprep.mubr.bf16.mxu0 0
    %1613 = vmatmul.mubr.bf16.gmra.mrb[0].mxu0 %v1473
    %v1614 = vpop.f32.mrb[0].mxu0
    %v1615 = vadd.f32 %v1428, %v1614
    %v1616 = vpop.f32.mrb[0].mxu0
    %v1617 = vpop.f32.mrb[0].mxu0
    %v1618 = vadd.f32 %v1428, %v1617
    %v1619 = vpop.f32.mrb[0].mxu0
    %1620 = vmatprep.mubr.bf16.mxu0 0
    %1621 = vmatmul.mubr.bf16.gmra.mrb[0].mxu0 %v1476
    %v1622 = vpop.f32.mrb[0].mxu0
    %v1623 = vadd.f32 %v1428, %v1622
    %v1624 = vpop.f32.mrb[0].mxu0
    %v1625 = vpop.f32.mrb[0].mxu0
    %v1626 = vadd.f32 %v1428, %v1625
    %v1627 = vpop.f32.mrb[0].mxu0
    %1628 = vmatprep.mubr.bf16.mxu0 0
    %1629 = vmatmul.mubr.bf16.gmra.mrb[0].mxu0 %v1479
    %v1630 = vpop.f32.mrb[0].mxu0
    %v1631 = vadd.f32 %v1428, %v1630
    %v1632 = vpop.f32.mrb[0].mxu0
    %v1633 = vpop.f32.mrb[0].mxu0
    %v1634 = vadd.f32 %v1428, %v1633
    %v1635 = vpop.f32.mrb[0].mxu0
    %1636 = vmatprep.mubr.bf16.mxu0 0
    %1637 = vmatmul.mubr.bf16.gmra.mrb[0].mxu0 %v1482
    %v1638 = vpop.f32.mrb[0].mxu0
    %v1639 = vadd.f32 %v1428, %v1638
    %v1640 = vpop.f32.mrb[0].mxu0
    %v1641 = vpop.f32.mrb[0].mxu0
    %v1642 = vadd.f32 %v1428, %v1641
    %v1643 = vpop.f32.mrb[0].mxu0
    %1644 = vdwg.mxu0
    %v1645 = vld [vmem:[#allocation2 + $0x10] sm:$0xf]
    %v1646 = vld [vmem:[#allocation2 + $0x14] sm:$0xf]
    %v1647 = vld [vmem:[#allocation5 + $0x28] sm:$0x1]
    %v1648 = vlaneseq
    %v1649 = vshrl.u32 %v1648, 7
    %v1650 = vsub.s32 0, %v1649
    %v1651 = vrot.slane %v1647, %v1650
    %v1654 = vunpack.c.l.b16 %v1645
    %v1655 = vunpack.c.l.b16 %v1646
    %v1656 = vpack.c.b16 %v1655, %v1654
    %1658 = vmatprep.subr.bf16.mxu0 0
    %1659 = vmatpush1.bf16.msra.mxu0 %v1656
    %1660 = vmatprep.subr.bf16.mxu0 0
    %1661 = vmatpush1.bf16.msra.mxu0 0
    %1662 = vmatprep.subr.bf16.mxu0 0
    %1663 = vmatpush1.bf16.msra.mxu0 0
    %1664 = vmatprep.subr.bf16.mxu0 0
    %1665 = vmatpush1.bf16.msra.mxu0 0
    %1666 = vmatprep.subr.bf16.mxu0 0
    %1667 = vmatpush1.bf16.msra.mxu0 0
    %1668 = vmatprep.subr.bf16.mxu0 0
    %1669 = vmatpush1.bf16.msra.mxu0 0
    %1670 = vmatprep.subr.bf16.mxu0 0
    %1671 = vmatpush1.bf16.msra.mxu0 0
    %1672 = vmatprep.subr.bf16.mxu0 0
    %1673 = vmatpush1.bf16.msra.mxu0 0
    %1674 = vmatprep.subr.bf16.mxu0 0
    %1675 = vmatpush1.bf16.msra.mxu0 0
    %1676 = vmatprep.subr.bf16.mxu0 0
    %1677 = vmatpush1.bf16.msra.mxu0 0
    %1678 = vmatprep.subr.bf16.mxu0 0
    %1679 = vmatpush1.bf16.msra.mxu0 0
    %1680 = vmatprep.subr.bf16.mxu0 0
    %1681 = vmatpush1.bf16.msra.mxu0 0
    %1682 = vmatprep.subr.bf16.mxu0 0
    %1683 = vmatpush1.bf16.msra.mxu0 0
    %1684 = vmatprep.subr.bf16.mxu0 0
    %1685 = vmatpush1.bf16.msra.mxu0 0
    %1686 = vmatprep.subr.bf16.mxu0 0
    %1687 = vmatpush1.bf16.msra.mxu0 0
    %1688 = vmatprep.subr.bf16.mxu0 0
    %1689 = vmatpush1.bf16.msra.mxu0 0
    %1690 = vmatprep.mubr.bf16.mxu0 0
    %1691 = vmatmul.mubr.bf16.gmra.mrb[0].mxu0 %v1437
    %v1692 = vpop.f32.mrb[0].mxu0
    %v1693 = vadd.f32 %v1651, %v1692
    %v1694 = vpop.f32.mrb[0].mxu0
    %v1695 = vpop.f32.mrb[0].mxu0
    %v1696 = vadd.f32 %v1651, %v1695
    %v1697 = vpop.f32.mrb[0].mxu0
    %1698 = vmatprep.mubr.bf16.mxu0 0
    %1699 = vmatmul.mubr.bf16.gmra.mrb[0].mxu0 %v1440
    %v1700 = vpop.f32.mrb[0].mxu0
    %v1701 = vadd.f32 %v1651, %v1700
    %v1702 = vpop.f32.mrb[0].mxu0
    %v1703 = vpop.f32.mrb[0].mxu0
    %v1704 = vadd.f32 %v1651, %v1703
    %v1705 = vpop.f32.mrb[0].mxu0
    %1706 = vmatprep.mubr.bf16.mxu0 0
    %1707 = vmatmul.mubr.bf16.gmra.mrb[0].mxu0 %v1443
    %v1708 = vpop.f32.mrb[0].mxu0
    %v1709 = vadd.f32 %v1651, %v1708
    %v1710 = vpop.f32.mrb[0].mxu0
    %v1711 = vpop.f32.mrb[0].mxu0
    %v1712 = vadd.f32 %v1651, %v1711
    %v1713 = vpop.f32.mrb[0].mxu0
    %1714 = vmatprep.mubr.bf16.mxu0 0
    %1715 = vmatmul.mubr.bf16.gmra.mrb[0].mxu0 %v1446
    %v1716 = vpop.f32.mrb[0].mxu0
    %v1717 = vadd.f32 %v1651, %v1716
    %v1718 = vpop.f32.mrb[0].mxu0
    %v1719 = vpop.f32.mrb[0].mxu0
    %v1720 = vadd.f32 %v1651, %v1719
    %v1721 = vpop.f32.mrb[0].mxu0
    %1722 = vmatprep.mubr.bf16.mxu0 0
    %1723 = vmatmul.mubr.bf16.gmra.mrb[0].mxu0 %v1449
    %v1724 = vpop.f32.mrb[0].mxu0
    %v1725 = vadd.f32 %v1651, %v1724
    %v1726 = vpop.f32.mrb[0].mxu0
    %v1727 = vpop.f32.mrb[0].mxu0
    %v1728 = vadd.f32 %v1651, %v1727
    %v1729 = vpop.f32.mrb[0].mxu0
    %1730 = vmatprep.mubr.bf16.mxu0 0
    %1731 = vmatmul.mubr.bf16.gmra.mrb[0].mxu0 %v1452
    %v1732 = vpop.f32.mrb[0].mxu0
    %v1733 = vadd.f32 %v1651, %v1732
    %v1734 = vpop.f32.mrb[0].mxu0
    %v1735 = vpop.f32.mrb[0].mxu0
    %v1736 = vadd.f32 %v1651, %v1735
    %v1737 = vpop.f32.mrb[0].mxu0
    %1738 = vmatprep.mubr.bf16.mxu0 0
    %1739 = vmatmul.mubr.bf16.gmra.mrb[0].mxu0 %v1455
    %v1740 = vpop.f32.mrb[0].mxu0
    %v1741 = vadd.f32 %v1651, %v1740
    %v1742 = vpop.f32.mrb[0].mxu0
    %v1743 = vpop.f32.mrb[0].mxu0
    %v1744 = vadd.f32 %v1651, %v1743
    %v1745 = vpop.f32.mrb[0].mxu0
    %1746 = vmatprep.mubr.bf16.mxu0 0
    %1747 = vmatmul.mubr.bf16.gmra.mrb[0].mxu0 %v1458
    %v1748 = vpop.f32.mrb[0].mxu0
    %v1749 = vadd.f32 %v1651, %v1748
    %v1750 = vpop.f32.mrb[0].mxu0
    %v1751 = vpop.f32.mrb[0].mxu0
    %v1752 = vadd.f32 %v1651, %v1751
    %v1753 = vpop.f32.mrb[0].mxu0
    %1754 = vmatprep.mubr.bf16.mxu0 0
    %1755 = vmatmul.mubr.bf16.gmra.mrb[0].mxu0 %v1461
    %v1756 = vpop.f32.mrb[0].mxu0
    %v1757 = vadd.f32 %v1651, %v1756
    %v1758 = vpop.f32.mrb[0].mxu0
    %v1759 = vpop.f32.mrb[0].mxu0
    %v1760 = vadd.f32 %v1651, %v1759
    %v1761 = vpop.f32.mrb[0].mxu0
    %1762 = vmatprep.mubr.bf16.mxu0 0
    %1763 = vmatmul.mubr.bf16.gmra.mrb[0].mxu0 %v1464
    %v1764 = vpop.f32.mrb[0].mxu0
    %v1765 = vadd.f32 %v1651, %v1764
    %v1766 = vpop.f32.mrb[0].mxu0
    %v1767 = vpop.f32.mrb[0].mxu0
    %v1768 = vadd.f32 %v1651, %v1767
    %v1769 = vpop.f32.mrb[0].mxu0
    %1770 = vmatprep.mubr.bf16.mxu0 0
    %1771 = vmatmul.mubr.bf16.gmra.mrb[0].mxu0 %v1467
    %v1772 = vpop.f32.mrb[0].mxu0
    %v1773 = vadd.f32 %v1651, %v1772
    %v1774 = vpop.f32.mrb[0].mxu0
    %v1775 = vpop.f32.mrb[0].mxu0
    %v1776 = vadd.f32 %v1651, %v1775
    %v1777 = vpop.f32.mrb[0].mxu0
    %1778 = vmatprep.mubr.bf16.mxu0 0
    %1779 = vmatmul.mubr.bf16.gmra.mrb[0].mxu0 %v1470
    %v1780 = vpop.f32.mrb[0].mxu0
    %v1781 = vadd.f32 %v1651, %v1780
    %v1782 = vpop.f32.mrb[0].mxu0
    %v1783 = vpop.f32.mrb[0].mxu0
    %v1784 = vadd.f32 %v1651, %v1783
    %v1785 = vpop.f32.mrb[0].mxu0
    %1786 = vmatprep.mubr.bf16.mxu0 0
    %1787 = vmatmul.mubr.bf16.gmra.mrb[0].mxu0 %v1473
    %v1788 = vpop.f32.mrb[0].mxu0
    %v1789 = vadd.f32 %v1651, %v1788
    %v1790 = vpop.f32.mrb[0].mxu0
    %v1791 = vpop.f32.mrb[0].mxu0
    %v1792 = vadd.f32 %v1651, %v1791
    %v1793 = vpop.f32.mrb[0].mxu0
    %1794 = vmatprep.mubr.bf16.mxu0 0
    %1795 = vmatmul.mubr.bf16.gmra.mrb[0].mxu0 %v1476
    %v1796 = vpop.f32.mrb[0].mxu0
    %v1797 = vadd.f32 %v1651, %v1796
    %v1798 = vpop.f32.mrb[0].mxu0
    %v1799 = vpop.f32.mrb[0].mxu0
    %v1800 = vadd.f32 %v1651, %v1799
    %v1801 = vpop.f32.mrb[0].mxu0
    %1802 = vmatprep.mubr.bf16.mxu0 0
    %1803 = vmatmul.mubr.bf16.gmra.mrb[0].mxu0 %v1479
    %v1804 = vpop.f32.mrb[0].mxu0
    %v1805 = vadd.f32 %v1651, %v1804
    %v1806 = vpop.f32.mrb[0].mxu0
    %v1807 = vpop.f32.mrb[0].mxu0
    %v1808 = vadd.f32 %v1651, %v1807
    %v1809 = vpop.f32.mrb[0].mxu0
    %1810 = vmatprep.mubr.bf16.mxu0 0
    %1811 = vmatmul.mubr.bf16.gmra.mrb[0].mxu0 %v1482
    %v1812 = vpop.f32.mrb[0].mxu0
    %v1813 = vadd.f32 %v1651, %v1812
    %v1814 = vpop.f32.mrb[0].mxu0
    %v1815 = vpop.f32.mrb[0].mxu0
    %v1816 = vadd.f32 %v1651, %v1815
    %v1817 = vpop.f32.mrb[0].mxu0
    %1818 = vdwg.mxu0
    %v1819 = vsel %vm66, %v1693, -inf
    %1820 = vmax.xlane.f32.xlu0 %v1819
    %v1821 = vpop.xlane.xlu0 %1820
    %v1822 = vsel %vm66, %v1696, -inf
    %1823 = vmax.xlane.f32.xlu0 %v1822
    %v1824 = vpop.xlane.xlu0 %1823
    %v1825 = vsel %vm66, %v1701, -inf
    %1826 = vmax.xlane.f32.xlu0 %v1825
    %v1827 = vpop.xlane.xlu0 %1826
    %v1828 = vsel %vm66, %v1704, -inf
    %1829 = vmax.xlane.f32.xlu0 %v1828
    %v1830 = vpop.xlane.xlu0 %1829
    %v1831 = vsel %vm66, %v1709, -inf
    %1832 = vmax.xlane.f32.xlu0 %v1831
    %v1833 = vpop.xlane.xlu0 %1832
    %v1834 = vsel %vm66, %v1712, -inf
    %1835 = vmax.xlane.f32.xlu0 %v1834
    %v1836 = vpop.xlane.xlu0 %1835
    %v1837 = vsel %vm66, %v1717, -inf
    %1838 = vmax.xlane.f32.xlu0 %v1837
    %v1839 = vpop.xlane.xlu0 %1838
    %v1840 = vsel %vm66, %v1720, -inf
    %1841 = vmax.xlane.f32.xlu0 %v1840
    %v1842 = vpop.xlane.xlu0 %1841
    %v1843 = vsel %vm66, %v1725, -inf
    %1844 = vmax.xlane.f32.xlu0 %v1843
    %v1845 = vpop.xlane.xlu0 %1844
    %v1846 = vsel %vm66, %v1728, -inf
    %1847 = vmax.xlane.f32.xlu0 %v1846
    %v1848 = vpop.xlane.xlu0 %1847
    %v1849 = vsel %vm66, %v1733, -inf
    %1850 = vmax.xlane.f32.xlu0 %v1849
    %v1851 = vpop.xlane.xlu0 %1850
    %v1852 = vsel %vm66, %v1736, -inf
    %1853 = vmax.xlane.f32.xlu0 %v1852
    %v1854 = vpop.xlane.xlu0 %1853
    %v1855 = vsel %vm66, %v1741, -inf
    %1856 = vmax.xlane.f32.xlu0 %v1855
    %v1857 = vpop.xlane.xlu0 %1856
    %v1858 = vsel %vm66, %v1744, -inf
    %1859 = vmax.xlane.f32.xlu0 %v1858
    %v1860 = vpop.xlane.xlu0 %1859
    %v1861 = vsel %vm66, %v1749, -inf
    %1862 = vmax.xlane.f32.xlu0 %v1861
    %v1863 = vpop.xlane.xlu0 %1862
    %v1864 = vsel %vm66, %v1752, -inf
    %1865 = vmax.xlane.f32.xlu0 %v1864
    %v1866 = vpop.xlane.xlu0 %1865
    %v1867 = vsel %vm66, %v1757, -inf
    %1868 = vmax.xlane.f32.xlu0 %v1867
    %v1869 = vpop.xlane.xlu0 %1868
    %v1870 = vsel %vm66, %v1760, -inf
    %1871 = vmax.xlane.f32.xlu0 %v1870
    %v1872 = vpop.xlane.xlu0 %1871
    %v1873 = vsel %vm66, %v1765, -inf
    %1874 = vmax.xlane.f32.xlu0 %v1873
    %v1875 = vpop.xlane.xlu0 %1874
    %v1876 = vsel %vm66, %v1768, -inf
    %1877 = vmax.xlane.f32.xlu0 %v1876
    %v1878 = vpop.xlane.xlu0 %1877
    %v1879 = vsel %vm66, %v1773, -inf
    %1880 = vmax.xlane.f32.xlu0 %v1879
    %v1881 = vpop.xlane.xlu0 %1880
    %v1882 = vsel %vm66, %v1776, -inf
    %1883 = vmax.xlane.f32.xlu0 %v1882
    %v1884 = vpop.xlane.xlu0 %1883
    %v1885 = vsel %vm66, %v1781, -inf
    %1886 = vmax.xlane.f32.xlu0 %v1885
    %v1887 = vpop.xlane.xlu0 %1886
    %v1888 = vsel %vm66, %v1784, -inf
    %1889 = vmax.xlane.f32.xlu0 %v1888
    %v1890 = vpop.xlane.xlu0 %1889
    %v1891 = vsel %vm66, %v1789, -inf
    %1892 = vmax.xlane.f32.xlu0 %v1891
    %v1893 = vpop.xlane.xlu0 %1892
    %v1894 = vsel %vm66, %v1792, -inf
    %1895 = vmax.xlane.f32.xlu0 %v1894
    %v1896 = vpop.xlane.xlu0 %1895
    %v1897 = vsel %vm66, %v1797, -inf
    %1898 = vmax.xlane.f32.xlu0 %v1897
    %v1899 = vpop.xlane.xlu0 %1898
    %v1900 = vsel %vm66, %v1800, -inf
    %1901 = vmax.xlane.f32.xlu0 %v1900
    %v1902 = vpop.xlane.xlu0 %1901
    %v1903 = vsel %vm66, %v1805, -inf
    %1904 = vmax.xlane.f32.xlu0 %v1903
    %v1905 = vpop.xlane.xlu0 %1904
    %v1906 = vsel %vm66, %v1808, -inf
    %1907 = vmax.xlane.f32.xlu0 %v1906
    %v1908 = vpop.xlane.xlu0 %1907
    %v1909 = vsel %vm66, %v1813, -inf
    %1910 = vmax.xlane.f32.xlu0 %v1909
    %v1911 = vpop.xlane.xlu0 %1910
    %v1912 = vsel %vm66, %v1816, -inf
    %1913 = vmax.xlane.f32.xlu0 %v1912
    %v1914 = vpop.xlane.xlu0 %1913
    %v1915 = vsub.f32 %v1693, %v1821
    %v1916 = vsub.f32 %v1696, %v1824
    %v1917 = vsub.f32 %v1701, %v1827
    %v1918 = vsub.f32 %v1704, %v1830
    %v1919 = vsub.f32 %v1709, %v1833
    %v1920 = vsub.f32 %v1712, %v1836
    %v1921 = vsub.f32 %v1717, %v1839
    %v1922 = vsub.f32 %v1720, %v1842
    %v1923 = vsub.f32 %v1725, %v1845
    %v1924 = vsub.f32 %v1728, %v1848
    %v1925 = vsub.f32 %v1733, %v1851
    %v1926 = vsub.f32 %v1736, %v1854
    %v1927 = vsub.f32 %v1741, %v1857
    %v1928 = vsub.f32 %v1744, %v1860
    %v1929 = vsub.f32 %v1749, %v1863
    %v1930 = vsub.f32 %v1752, %v1866
    %v1931 = vsub.f32 %v1757, %v1869
    %v1932 = vsub.f32 %v1760, %v1872
    %v1933 = vsub.f32 %v1765, %v1875
    %v1934 = vsub.f32 %v1768, %v1878
    %v1935 = vsub.f32 %v1773, %v1881
    %v1936 = vsub.f32 %v1776, %v1884
    %v1937 = vsub.f32 %v1781, %v1887
    %v1938 = vsub.f32 %v1784, %v1890
    %v1939 = vsub.f32 %v1789, %v1893
    %v1940 = vsub.f32 %v1792, %v1896
    %v1941 = vsub.f32 %v1797, %v1899
    %v1942 = vsub.f32 %v1800, %v1902
    %v1943 = vsub.f32 %v1805, %v1905
    %v1944 = vsub.f32 %v1808, %v1908
    %v1945 = vsub.f32 %v1813, %v1911
    %v1946 = vsub.f32 %v1816, %v1914
    %v1947 = vmul.f32 %v1915, 1.442695
    %v1948 = vpow.pop %v1947
    %v1949 = vmul.f32 %v1916, 1.442695
    %v1950 = vpow.pop %v1949
    %v1951 = vmul.f32 %v1917, 1.442695
    %v1952 = vpow.pop %v1951
    %v1953 = vmul.f32 %v1918, 1.442695
    %v1954 = vpow.pop %v1953
    %v1955 = vmul.f32 %v1919, 1.442695
    %v1956 = vpow.pop %v1955
    %v1957 = vmul.f32 %v1920, 1.442695
    %v1958 = vpow.pop %v1957
    %v1959 = vmul.f32 %v1921, 1.442695
    %v1960 = vpow.pop %v1959
    %v1961 = vmul.f32 %v1922, 1.442695
    %v1962 = vpow.pop %v1961
    %v1963 = vmul.f32 %v1923, 1.442695
    %v1964 = vpow.pop %v1963
    %v1965 = vmul.f32 %v1924, 1.442695
    %v1966 = vpow.pop %v1965
    %v1967 = vmul.f32 %v1925, 1.442695
    %v1968 = vpow.pop %v1967
    %v1969 = vmul.f32 %v1926, 1.442695
    %v1970 = vpow.pop %v1969
    %v1971 = vmul.f32 %v1927, 1.442695
    %v1972 = vpow.pop %v1971
    %v1973 = vmul.f32 %v1928, 1.442695
    %v1974 = vpow.pop %v1973
    %v1975 = vmul.f32 %v1929, 1.442695
    %v1976 = vpow.pop %v1975
    %v1977 = vmul.f32 %v1930, 1.442695
    %v1978 = vpow.pop %v1977
    %v1979 = vmul.f32 %v1931, 1.442695
    %v1980 = vpow.pop %v1979
    %v1981 = vmul.f32 %v1932, 1.442695
    %v1982 = vpow.pop %v1981
    %v1983 = vmul.f32 %v1933, 1.442695
    %v1984 = vpow.pop %v1983
    %v1985 = vmul.f32 %v1934, 1.442695
    %v1986 = vpow.pop %v1985
    %v1987 = vmul.f32 %v1935, 1.442695
    %v1988 = vpow.pop %v1987
    %v1989 = vmul.f32 %v1936, 1.442695
    %v1990 = vpow.pop %v1989
    %v1991 = vmul.f32 %v1937, 1.442695
    %v1992 = vpow.pop %v1991
    %v1993 = vmul.f32 %v1938, 1.442695
    %v1994 = vpow.pop %v1993
    %v1995 = vmul.f32 %v1939, 1.442695
    %v1996 = vpow.pop %v1995
    %v1997 = vmul.f32 %v1940, 1.442695
    %v1998 = vpow.pop %v1997
    %v1999 = vmul.f32 %v1941, 1.442695
    %v2000 = vpow.pop %v1999
    %v2001 = vmul.f32 %v1942, 1.442695
    %v2002 = vpow.pop %v2001
    %v2003 = vmul.f32 %v1943, 1.442695
    %v2004 = vpow.pop %v2003
    %v2005 = vmul.f32 %v1944, 1.442695
    %v2006 = vpow.pop %v2005
    %v2007 = vmul.f32 %v1945, 1.442695
    %v2008 = vpow.pop %v2007
    %v2009 = vmul.f32 %v1946, 1.442695
    %v2010 = vpow.pop %v2009
    %v2011 = vsel %vm66, %v1948, 0.0
    %2012 = vadd.xlane.f32.xlu0 %v2011
    %v2013 = vpop.xlane.xlu0 %2012
    %v2014 = vsel %vm66, %v1950, 0.0
    %2015 = vadd.xlane.f32.xlu0 %v2014
    %v2016 = vpop.xlane.xlu0 %2015
    %v2017 = vsel %vm66, %v1952, 0.0
    %2018 = vadd.xlane.f32.xlu0 %v2017
    %v2019 = vpop.xlane.xlu0 %2018
    %v2020 = vsel %vm66, %v1954, 0.0
    %2021 = vadd.xlane.f32.xlu0 %v2020
    %v2022 = vpop.xlane.xlu0 %2021
    %v2023 = vsel %vm66, %v1956, 0.0
    %2024 = vadd.xlane.f32.xlu0 %v2023
    %v2025 = vpop.xlane.xlu0 %2024
    %v2026 = vsel %vm66, %v1958, 0.0
    %2027 = vadd.xlane.f32.xlu0 %v2026
    %v2028 = vpop.xlane.xlu0 %2027
    %v2029 = vsel %vm66, %v1960, 0.0
    %2030 = vadd.xlane.f32.xlu0 %v2029
    %v2031 = vpop.xlane.xlu0 %2030
    %v2032 = vsel %vm66, %v1962, 0.0
    %2033 = vadd.xlane.f32.xlu0 %v2032
    %v2034 = vpop.xlane.xlu0 %2033
    %v2035 = vsel %vm66, %v1964, 0.0
    %2036 = vadd.xlane.f32.xlu0 %v2035
    %v2037 = vpop.xlane.xlu0 %2036
    %v2038 = vsel %vm66, %v1966, 0.0
    %2039 = vadd.xlane.f32.xlu0 %v2038
    %v2040 = vpop.xlane.xlu0 %2039
    %v2041 = vsel %vm66, %v1968, 0.0
    %2042 = vadd.xlane.f32.xlu0 %v2041
    %v2043 = vpop.xlane.xlu0 %2042
    %v2044 = vsel %vm66, %v1970, 0.0
    %2045 = vadd.xlane.f32.xlu0 %v2044
    %v2046 = vpop.xlane.xlu0 %2045
    %v2047 = vsel %vm66, %v1972, 0.0
    %2048 = vadd.xlane.f32.xlu0 %v2047
    %v2049 = vpop.xlane.xlu0 %2048
    %v2050 = vsel %vm66, %v1974, 0.0
    %2051 = vadd.xlane.f32.xlu0 %v2050
    %v2052 = vpop.xlane.xlu0 %2051
    %v2053 = vsel %vm66, %v1976, 0.0
    %2054 = vadd.xlane.f32.xlu0 %v2053
    %v2055 = vpop.xlane.xlu0 %2054
    %v2056 = vsel %vm66, %v1978, 0.0
    %2057 = vadd.xlane.f32.xlu0 %v2056
    %v2058 = vpop.xlane.xlu0 %2057
    %v2059 = vsel %vm66, %v1980, 0.0
    %2060 = vadd.xlane.f32.xlu0 %v2059
    %v2061 = vpop.xlane.xlu0 %2060
    %v2062 = vsel %vm66, %v1982, 0.0
    %2063 = vadd.xlane.f32.xlu0 %v2062
    %v2064 = vpop.xlane.xlu0 %2063
    %v2065 = vsel %vm66, %v1984, 0.0
    %2066 = vadd.xlane.f32.xlu0 %v2065
    %v2067 = vpop.xlane.xlu0 %2066
    %v2068 = vsel %vm66, %v1986, 0.0
    %2069 = vadd.xlane.f32.xlu0 %v2068
    %v2070 = vpop.xlane.xlu0 %2069
    %v2071 = vsel %vm66, %v1988, 0.0
    %2072 = vadd.xlane.f32.xlu0 %v2071
    %v2073 = vpop.xlane.xlu0 %2072
    %v2074 = vsel %vm66, %v1990, 0.0
    %2075 = vadd.xlane.f32.xlu0 %v2074
    %v2076 = vpop.xlane.xlu0 %2075
    %v2077 = vsel %vm66, %v1992, 0.0
    %2078 = vadd.xlane.f32.xlu0 %v2077
    %v2079 = vpop.xlane.xlu0 %2078
    %v2080 = vsel %vm66, %v1994, 0.0
    %2081 = vadd.xlane.f32.xlu0 %v2080
    %v2082 = vpop.xlane.xlu0 %2081
    %v2083 = vsel %vm66, %v1996, 0.0
    %2084 = vadd.xlane.f32.xlu0 %v2083
    %v2085 = vpop.xlane.xlu0 %2084
    %v2086 = vsel %vm66, %v1998, 0.0
    %2087 = vadd.xlane.f32.xlu0 %v2086
    %v2088 = vpop.xlane.xlu0 %2087
    %v2089 = vsel %vm66, %v2000, 0.0
    %2090 = vadd.xlane.f32.xlu0 %v2089
    %v2091 = vpop.xlane.xlu0 %2090
    %v2092 = vsel %vm66, %v2002, 0.0
    %2093 = vadd.xlane.f32.xlu0 %v2092
    %v2094 = vpop.xlane.xlu0 %2093
    %v2095 = vsel %vm66, %v2004, 0.0
    %2096 = vadd.xlane.f32.xlu0 %v2095
    %v2097 = vpop.xlane.xlu0 %2096
    %v2098 = vsel %vm66, %v2006, 0.0
    %2099 = vadd.xlane.f32.xlu0 %v2098
    %v2100 = vpop.xlane.xlu0 %2099
    %v2101 = vsel %vm66, %v2008, 0.0
    %2102 = vadd.xlane.f32.xlu0 %v2101
    %v2103 = vpop.xlane.xlu0 %2102
    %v2104 = vsel %vm66, %v2010, 0.0
    %2105 = vadd.xlane.f32.xlu0 %v2104
    %v2106 = vpop.xlane.xlu0 %2105
    %v2107 = vrcp.pop %v2013
    %v2108 = vrcp.pop %v2016
    %v2109 = vrcp.pop %v2019
    %v2110 = vrcp.pop %v2022
    %v2111 = vrcp.pop %v2025
    %v2112 = vrcp.pop %v2028
    %v2113 = vrcp.pop %v2031
    %v2114 = vrcp.pop %v2034
    %v2115 = vrcp.pop %v2037
    %v2116 = vrcp.pop %v2040
    %v2117 = vrcp.pop %v2043
    %v2118 = vrcp.pop %v2046
    %v2119 = vrcp.pop %v2049
    %v2120 = vrcp.pop %v2052
    %v2121 = vrcp.pop %v2055
    %v2122 = vrcp.pop %v2058
    %v2123 = vrcp.pop %v2061
    %v2124 = vrcp.pop %v2064
    %v2125 = vrcp.pop %v2067
    %v2126 = vrcp.pop %v2070
    %v2127 = vrcp.pop %v2073
    %v2128 = vrcp.pop %v2076
    %v2129 = vrcp.pop %v2079
    %v2130 = vrcp.pop %v2082
    %v2131 = vrcp.pop %v2085
    %v2132 = vrcp.pop %v2088
    %v2133 = vrcp.pop %v2091
    %v2134 = vrcp.pop %v2094
    %v2135 = vrcp.pop %v2097
    %v2136 = vrcp.pop %v2100
    %v2137 = vrcp.pop %v2103
    %v2138 = vrcp.pop %v2106
    %v2139 = vmul.f32 %v1948, %v2107
    %v2140 = vmul.f32 %v1950, %v2108
    %v2141 = vmul.f32 %v1952, %v2109
    %v2142 = vmul.f32 %v1954, %v2110
    %v2143 = vmul.f32 %v1956, %v2111
    %v2144 = vmul.f32 %v1958, %v2112
    %v2145 = vmul.f32 %v1960, %v2113
    %v2146 = vmul.f32 %v1962, %v2114
    %v2147 = vmul.f32 %v1964, %v2115
    %v2148 = vmul.f32 %v1966, %v2116
    %v2149 = vmul.f32 %v1968, %v2117
    %v2150 = vmul.f32 %v1970, %v2118
    %v2151 = vmul.f32 %v1972, %v2119
    %v2152 = vmul.f32 %v1974, %v2120
    %v2153 = vmul.f32 %v1976, %v2121
    %v2154 = vmul.f32 %v1978, %v2122
    %v2155 = vmul.f32 %v1980, %v2123
    %v2156 = vmul.f32 %v1982, %v2124
    %v2157 = vmul.f32 %v1984, %v2125
    %v2158 = vmul.f32 %v1986, %v2126
    %v2159 = vmul.f32 %v1988, %v2127
    %v2160 = vmul.f32 %v1990, %v2128
    %v2161 = vmul.f32 %v1992, %v2129
    %v2162 = vmul.f32 %v1994, %v2130
    %v2163 = vmul.f32 %v1996, %v2131
    %v2164 = vmul.f32 %v1998, %v2132
    %v2165 = vmul.f32 %v2000, %v2133
    %v2166 = vmul.f32 %v2002, %v2134
    %v2167 = vmul.f32 %v2004, %v2135
    %v2168 = vmul.f32 %v2006, %v2136
    %v2169 = vmul.f32 %v2008, %v2137
    %v2170 = vmul.f32 %v2010, %v2138
    %v2171 = vmul.f32 %v1519, %v2139
    %v2172 = vmul.f32 %v1522, %v2140
    %v2173 = vmul.f32 %v1527, %v2141
    %v2174 = vmul.f32 %v1530, %v2142
    %v2175 = vmul.f32 %v1535, %v2143
    %v2176 = vmul.f32 %v1538, %v2144
    %v2177 = vmul.f32 %v1543, %v2145
    %v2178 = vmul.f32 %v1546, %v2146
    %v2179 = vmul.f32 %v1551, %v2147
    %v2180 = vmul.f32 %v1554, %v2148
    %v2181 = vmul.f32 %v1559, %v2149
    %v2182 = vmul.f32 %v1562, %v2150
    %v2183 = vmul.f32 %v1567, %v2151
    %v2184 = vmul.f32 %v1570, %v2152
    %v2185 = vmul.f32 %v1575, %v2153
    %v2186 = vmul.f32 %v1578, %v2154
    %v2187 = vmul.f32 %v1583, %v2155
    %v2188 = vmul.f32 %v1586, %v2156
    %v2189 = vmul.f32 %v1591, %v2157
    %v2190 = vmul.f32 %v1594, %v2158
    %v2191 = vmul.f32 %v1599, %v2159
    %v2192 = vmul.f32 %v1602, %v2160
    %v2193 = vmul.f32 %v1607, %v2161
    %v2194 = vmul.f32 %v1610, %v2162
    %v2195 = vmul.f32 %v1615, %v2163
    %v2196 = vmul.f32 %v1618, %v2164
    %v2197 = vmul.f32 %v1623, %v2165
    %v2198 = vmul.f32 %v1626, %v2166
    %v2199 = vmul.f32 %v1631, %v2167
    %v2200 = vmul.f32 %v1634, %v2168
    %v2201 = vmul.f32 %v1639, %v2169
    %v2202 = vmul.f32 %v1642, %v2170
    %2203 = vxpose.xlu0.b32.start [1/16] %v2171, 128
    %2204 = vxpose.xlu0.b32.cont [2/16] %v2172, 128
    %2205 = vxpose.xlu0.b32.cont [3/16] %v2173, 128
    %2206 = vxpose.xlu0.b32.cont [4/16] %v2174, 128
    %2207 = vxpose.xlu0.b32.cont [5/16] 0.0, 128
    %2208 = vxpose.xlu0.b32.cont [6/16] 0.0, 128
    %2209 = vxpose.xlu0.b32.cont [7/16] 0.0, 128
    %2210 = vxpose.xlu0.b32.cont [8/16] 0.0, 128
    %2211 = vxpose.xlu0.b32.cont [9/16] 0.0, 128
    %2212 = vxpose.xlu0.b32.cont [10/16] 0.0, 128
    %2213 = vxpose.xlu0.b32.cont [11/16] 0.0, 128
    %2214 = vxpose.xlu0.b32.cont [12/16] 0.0, 128
    %2215 = vxpose.xlu0.b32.cont [13/16] 0.0, 128
    %2216 = vxpose.xlu0.b32.cont [14/16] 0.0, 128
    %2217 = vxpose.xlu0.b32.cont [15/16] 0.0, 128
    %2218 = vxpose.xlu0.b32.end [16/16] 0.0, 128
    %v2219 = vpop.trf.xlu0
    %v2220 = vpop.trf.xlu0
    %v2221 = vpop.trf.xlu0
    %v2222 = vpop.trf.xlu0
    %v2223 = vpop.trf.xlu0
    %v2224 = vpop.trf.xlu0
    %v2225 = vpop.trf.xlu0
    %v2226 = vpop.trf.xlu0
    %v2227 = vpop.trf.xlu0
    %v2228 = vpop.trf.xlu0
    %v2229 = vpop.trf.xlu0
    %v2230 = vpop.trf.xlu0
    %v2231 = vpop.trf.xlu0
    %v2232 = vpop.trf.xlu0
    %v2233 = vpop.trf.xlu0
    %v2234 = vpop.trf.xlu0
    %2235 = vxpose.xlu0.b32.start [1/16] %v2175, 128
    %2236 = vxpose.xlu0.b32.cont [2/16] %v2176, 128
    %2237 = vxpose.xlu0.b32.cont [3/16] %v2177, 128
    %2238 = vxpose.xlu0.b32.cont [4/16] %v2178, 128
    %2239 = vxpose.xlu0.b32.cont [5/16] 0.0, 128
    %2240 = vxpose.xlu0.b32.cont [6/16] 0.0, 128
    %2241 = vxpose.xlu0.b32.cont [7/16] 0.0, 128
    %2242 = vxpose.xlu0.b32.cont [8/16] 0.0, 128
    %2243 = vxpose.xlu0.b32.cont [9/16] 0.0, 128
    %2244 = vxpose.xlu0.b32.cont [10/16] 0.0, 128
    %2245 = vxpose.xlu0.b32.cont [11/16] 0.0, 128
    %2246 = vxpose.xlu0.b32.cont [12/16] 0.0, 128
    %2247 = vxpose.xlu0.b32.cont [13/16] 0.0, 128
    %2248 = vxpose.xlu0.b32.cont [14/16] 0.0, 128
    %2249 = vxpose.xlu0.b32.cont [15/16] 0.0, 128
    %2250 = vxpose.xlu0.b32.end [16/16] 0.0, 128
    %v2251 = vpop.trf.xlu0
    %v2252 = vpop.trf.xlu0
    %v2253 = vpop.trf.xlu0
    %v2254 = vpop.trf.xlu0
    %v2255 = vpop.trf.xlu0
    %v2256 = vpop.trf.xlu0
    %v2257 = vpop.trf.xlu0
    %v2258 = vpop.trf.xlu0
    %v2259 = vpop.trf.xlu0
    %v2260 = vpop.trf.xlu0
    %v2261 = vpop.trf.xlu0
    %v2262 = vpop.trf.xlu0
    %v2263 = vpop.trf.xlu0
    %v2264 = vpop.trf.xlu0
    %v2265 = vpop.trf.xlu0
    %v2266 = vpop.trf.xlu0
    %2267 = vxpose.xlu0.b32.start [1/16] %v2179, 128
    %2268 = vxpose.xlu0.b32.cont [2/16] %v2180, 128
    %2269 = vxpose.xlu0.b32.cont [3/16] %v2181, 128
    %2270 = vxpose.xlu0.b32.cont [4/16] %v2182, 128
    %2271 = vxpose.xlu0.b32.cont [5/16] 0.0, 128
    %2272 = vxpose.xlu0.b32.cont [6/16] 0.0, 128
    %2273 = vxpose.xlu0.b32.cont [7/16] 0.0, 128
    %2274 = vxpose.xlu0.b32.cont [8/16] 0.0, 128
    %2275 = vxpose.xlu0.b32.cont [9/16] 0.0, 128
    %2276 = vxpose.xlu0.b32.cont [10/16] 0.0, 128
    %2277 = vxpose.xlu0.b32.cont [11/16] 0.0, 128
    %2278 = vxpose.xlu0.b32.cont [12/16] 0.0, 128
    %2279 = vxpose.xlu0.b32.cont [13/16] 0.0, 128
    %2280 = vxpose.xlu0.b32.cont [14/16] 0.0, 128
    %2281 = vxpose.xlu0.b32.cont [15/16] 0.0, 128
    %2282 = vxpose.xlu0.b32.end [16/16] 0.0, 128
    %v2283 = vpop.trf.xlu0
    %v2284 = vpop.trf.xlu0
    %v2285 = vpop.trf.xlu0
    %v2286 = vpop.trf.xlu0
    %v2287 = vpop.trf.xlu0
    %v2288 = vpop.trf.xlu0
    %v2289 = vpop.trf.xlu0
    %v2290 = vpop.trf.xlu0
    %v2291 = vpop.trf.xlu0
    %v2292 = vpop.trf.xlu0
    %v2293 = vpop.trf.xlu0
    %v2294 = vpop.trf.xlu0
    %v2295 = vpop.trf.xlu0
    %v2296 = vpop.trf.xlu0
    %v2297 = vpop.trf.xlu0
    %v2298 = vpop.trf.xlu0
    %2299 = vxpose.xlu0.b32.start [1/16] %v2183, 128
    %2300 = vxpose.xlu0.b32.cont [2/16] %v2184, 128
    %2301 = vxpose.xlu0.b32.cont [3/16] %v2185, 128
    %2302 = vxpose.xlu0.b32.cont [4/16] %v2186, 128
    %2303 = vxpose.xlu0.b32.cont [5/16] 0.0, 128
    %2304 = vxpose.xlu0.b32.cont [6/16] 0.0, 128
    %2305 = vxpose.xlu0.b32.cont [7/16] 0.0, 128
    %2306 = vxpose.xlu0.b32.cont [8/16] 0.0, 128
    %2307 = vxpose.xlu0.b32.cont [9/16] 0.0, 128
    %2308 = vxpose.xlu0.b32.cont [10/16] 0.0, 128
    %2309 = vxpose.xlu0.b32.cont [11/16] 0.0, 128
    %2310 = vxpose.xlu0.b32.cont [12/16] 0.0, 128
    %2311 = vxpose.xlu0.b32.cont [13/16] 0.0, 128
    %2312 = vxpose.xlu0.b32.cont [14/16] 0.0, 128
    %2313 = vxpose.xlu0.b32.cont [15/16] 0.0, 128
    %2314 = vxpose.xlu0.b32.end [16/16] 0.0, 128
    %v2315 = vpop.trf.xlu0
    %v2316 = vpop.trf.xlu0
    %v2317 = vpop.trf.xlu0
    %v2318 = vpop.trf.xlu0
    %v2319 = vpop.trf.xlu0
    %v2320 = vpop.trf.xlu0
    %v2321 = vpop.trf.xlu0
    %v2322 = vpop.trf.xlu0
    %v2323 = vpop.trf.xlu0
    %v2324 = vpop.trf.xlu0
    %v2325 = vpop.trf.xlu0
    %v2326 = vpop.trf.xlu0
    %v2327 = vpop.trf.xlu0
    %v2328 = vpop.trf.xlu0
    %v2329 = vpop.trf.xlu0
    %v2330 = vpop.trf.xlu0
    %2331 = vxpose.xlu0.b32.start [1/16] %v2187, 128
    %2332 = vxpose.xlu0.b32.cont [2/16] %v2188, 128
    %2333 = vxpose.xlu0.b32.cont [3/16] %v2189, 128
    %2334 = vxpose.xlu0.b32.cont [4/16] %v2190, 128
    %2335 = vxpose.xlu0.b32.cont [5/16] 0.0, 128
    %2336 = vxpose.xlu0.b32.cont [6/16] 0.0, 128
    %2337 = vxpose.xlu0.b32.cont [7/16] 0.0, 128
    %2338 = vxpose.xlu0.b32.cont [8/16] 0.0, 128
    %2339 = vxpose.xlu0.b32.cont [9/16] 0.0, 128
    %2340 = vxpose.xlu0.b32.cont [10/16] 0.0, 128
    %2341 = vxpose.xlu0.b32.cont [11/16] 0.0, 128
    %2342 = vxpose.xlu0.b32.cont [12/16] 0.0, 128
    %2343 = vxpose.xlu0.b32.cont [13/16] 0.0, 128
    %2344 = vxpose.xlu0.b32.cont [14/16] 0.0, 128
    %2345 = vxpose.xlu0.b32.cont [15/16] 0.0, 128
    %2346 = vxpose.xlu0.b32.end [16/16] 0.0, 128
    %v2347 = vpop.trf.xlu0
    %v2348 = vpop.trf.xlu0
    %v2349 = vpop.trf.xlu0
    %v2350 = vpop.trf.xlu0
    %v2351 = vpop.trf.xlu0
    %v2352 = vpop.trf.xlu0
    %v2353 = vpop.trf.xlu0
    %v2354 = vpop.trf.xlu0
    %v2355 = vpop.trf.xlu0
    %v2356 = vpop.trf.xlu0
    %v2357 = vpop.trf.xlu0
    %v2358 = vpop.trf.xlu0
    %v2359 = vpop.trf.xlu0
    %v2360 = vpop.trf.xlu0
    %v2361 = vpop.trf.xlu0
    %v2362 = vpop.trf.xlu0
    %2363 = vxpose.xlu0.b32.start [1/16] %v2191, 128
    %2364 = vxpose.xlu0.b32.cont [2/16] %v2192, 128
    %2365 = vxpose.xlu0.b32.cont [3/16] %v2193, 128
    %2366 = vxpose.xlu0.b32.cont [4/16] %v2194, 128
    %2367 = vxpose.xlu0.b32.cont [5/16] 0.0, 128
    %2368 = vxpose.xlu0.b32.cont [6/16] 0.0, 128
    %2369 = vxpose.xlu0.b32.cont [7/16] 0.0, 128
    %2370 = vxpose.xlu0.b32.cont [8/16] 0.0, 128
    %2371 = vxpose.xlu0.b32.cont [9/16] 0.0, 128
    %2372 = vxpose.xlu0.b32.cont [10/16] 0.0, 128
    %2373 = vxpose.xlu0.b32.cont [11/16] 0.0, 128
    %2374 = vxpose.xlu0.b32.cont [12/16] 0.0, 128
    %2375 = vxpose.xlu0.b32.cont [13/16] 0.0, 128
    %2376 = vxpose.xlu0.b32.cont [14/16] 0.0, 128
    %2377 = vxpose.xlu0.b32.cont [15/16] 0.0, 128
    %2378 = vxpose.xlu0.b32.end [16/16] 0.0, 128
    %v2379 = vpop.trf.xlu0
    %v2380 = vpop.trf.xlu0
    %v2381 = vpop.trf.xlu0
    %v2382 = vpop.trf.xlu0
    %v2383 = vpop.trf.xlu0
    %v2384 = vpop.trf.xlu0
    %v2385 = vpop.trf.xlu0
    %v2386 = vpop.trf.xlu0
    %v2387 = vpop.trf.xlu0
    %v2388 = vpop.trf.xlu0
    %v2389 = vpop.trf.xlu0
    %v2390 = vpop.trf.xlu0
    %v2391 = vpop.trf.xlu0
    %v2392 = vpop.trf.xlu0
    %v2393 = vpop.trf.xlu0
    %v2394 = vpop.trf.xlu0
    %2395 = vxpose.xlu0.b32.start [1/16] %v2195, 128
    %2396 = vxpose.xlu0.b32.cont [2/16] %v2196, 128
    %2397 = vxpose.xlu0.b32.cont [3/16] %v2197, 128
    %2398 = vxpose.xlu0.b32.cont [4/16] %v2198, 128
    %2399 = vxpose.xlu0.b32.cont [5/16] 0.0, 128
    %2400 = vxpose.xlu0.b32.cont [6/16] 0.0, 128
    %2401 = vxpose.xlu0.b32.cont [7/16] 0.0, 128
    %2402 = vxpose.xlu0.b32.cont [8/16] 0.0, 128
    %2403 = vxpose.xlu0.b32.cont [9/16] 0.0, 128
    %2404 = vxpose.xlu0.b32.cont [10/16] 0.0, 128
    %2405 = vxpose.xlu0.b32.cont [11/16] 0.0, 128
    %2406 = vxpose.xlu0.b32.cont [12/16] 0.0, 128
    %2407 = vxpose.xlu0.b32.cont [13/16] 0.0, 128
    %2408 = vxpose.xlu0.b32.cont [14/16] 0.0, 128
    %2409 = vxpose.xlu0.b32.cont [15/16] 0.0, 128
    %2410 = vxpose.xlu0.b32.end [16/16] 0.0, 128
    %v2411 = vpop.trf.xlu0
    %v2412 = vpop.trf.xlu0
    %v2413 = vpop.trf.xlu0
    %v2414 = vpop.trf.xlu0
    %v2415 = vpop.trf.xlu0
    %v2416 = vpop.trf.xlu0
    %v2417 = vpop.trf.xlu0
    %v2418 = vpop.trf.xlu0
    %v2419 = vpop.trf.xlu0
    %v2420 = vpop.trf.xlu0
    %v2421 = vpop.trf.xlu0
    %v2422 = vpop.trf.xlu0
    %v2423 = vpop.trf.xlu0
    %v2424 = vpop.trf.xlu0
    %v2425 = vpop.trf.xlu0
    %v2426 = vpop.trf.xlu0
    %2427 = vxpose.xlu0.b32.start [1/16] %v2199, 128
    %2428 = vxpose.xlu0.b32.cont [2/16] %v2200, 128
    %2429 = vxpose.xlu0.b32.cont [3/16] %v2201, 128
    %2430 = vxpose.xlu0.b32.cont [4/16] %v2202, 128
    %2431 = vxpose.xlu0.b32.cont [5/16] 0.0, 128
    %2432 = vxpose.xlu0.b32.cont [6/16] 0.0, 128
    %2433 = vxpose.xlu0.b32.cont [7/16] 0.0, 128
    %2434 = vxpose.xlu0.b32.cont [8/16] 0.0, 128
    %2435 = vxpose.xlu0.b32.cont [9/16] 0.0, 128
    %2436 = vxpose.xlu0.b32.cont [10/16] 0.0, 128
    %2437 = vxpose.xlu0.b32.cont [11/16] 0.0, 128
    %2438 = vxpose.xlu0.b32.cont [12/16] 0.0, 128
    %2439 = vxpose.xlu0.b32.cont [13/16] 0.0, 128
    %2440 = vxpose.xlu0.b32.cont [14/16] 0.0, 128
    %2441 = vxpose.xlu0.b32.cont [15/16] 0.0, 128
    %2442 = vxpose.xlu0.b32.end [16/16] 0.0, 128
    %v2443 = vpop.trf.xlu0
    %v2444 = vpop.trf.xlu0
    %v2445 = vpop.trf.xlu0
    %v2446 = vpop.trf.xlu0
    %v2447 = vpop.trf.xlu0
    %v2448 = vpop.trf.xlu0
    %v2449 = vpop.trf.xlu0
    %v2450 = vpop.trf.xlu0
    %v2451 = vpop.trf.xlu0
    %v2452 = vpop.trf.xlu0
    %v2453 = vpop.trf.xlu0
    %v2454 = vpop.trf.xlu0
    %v2455 = vpop.trf.xlu0
    %v2456 = vpop.trf.xlu0
    %v2457 = vpop.trf.xlu0
    %v2458 = vpop.trf.xlu0
    %v2459 = vadd.f32 %v537, %v2219
    %v2460 = vadd.f32 %v540, %v2251
    %v2461 = vadd.f32 %v545, %v2283
    %v2462 = vadd.f32 %v548, %v2315
    %v2463 = vadd.f32 %v553, %v2347
    %v2464 = vadd.f32 %v556, %v2379
    %v2465 = vadd.f32 %v561, %v2411
    %v2466 = vadd.f32 %v564, %v2443
    %v2467 = vld [vmem:[#allocation5 + $0x30] sm:$0x1]
    %v2468 = vld [vmem:[#allocation5 + $0x38] sm:$0x1]
    %v2469 = vsel %vm569, %v2459, 0.0
    %2470 = vadd.xlane.f32.xlu0 %v2469
    %v2471 = vpop.xlane.xlu0 %2470
    %v2472 = vsel %vm569, %v2460, 0.0
    %2473 = vadd.xlane.f32.xlu0 %v2472
    %v2474 = vpop.xlane.xlu0 %2473
    %v2475 = vsel %vm569, %v2461, 0.0
    %2476 = vadd.xlane.f32.xlu0 %v2475
    %v2477 = vpop.xlane.xlu0 %2476
    %v2478 = vsel %vm569, %v2462, 0.0
    %2479 = vadd.xlane.f32.xlu0 %v2478
    %v2480 = vpop.xlane.xlu0 %2479
    %v2481 = vsel %vm569, %v2463, 0.0
    %2482 = vadd.xlane.f32.xlu0 %v2481
    %v2483 = vpop.xlane.xlu0 %2482
    %v2484 = vsel %vm569, %v2464, 0.0
    %2485 = vadd.xlane.f32.xlu0 %v2484
    %v2486 = vpop.xlane.xlu0 %2485
    %v2487 = vsel %vm569, %v2465, 0.0
    %2488 = vadd.xlane.f32.xlu0 %v2487
    %v2489 = vpop.xlane.xlu0 %2488
    %v2490 = vsel %vm569, %v2466, 0.0
    %2491 = vadd.xlane.f32.xlu0 %v2490
    %v2492 = vpop.xlane.xlu0 %2491
    %v2493 = vmul.f32 %v2471, %v594
    %v2494 = vmul.f32 %v2474, %v594
    %v2495 = vmul.f32 %v2477, %v594
    %v2496 = vmul.f32 %v2480, %v594
    %v2497 = vmul.f32 %v2483, %v594
    %v2498 = vmul.f32 %v2486, %v594
    %v2499 = vmul.f32 %v2489, %v594
    %v2500 = vmul.f32 %v2492, %v594
    %v2501 = vsub.f32 %v2459, %v2493
    %v2502 = vsub.f32 %v2460, %v2494
    %v2503 = vsub.f32 %v2461, %v2495
    %v2504 = vsub.f32 %v2462, %v2496
    %v2505 = vsub.f32 %v2463, %v2497
    %v2506 = vsub.f32 %v2464, %v2498
    %v2507 = vsub.f32 %v2465, %v2499
    %v2508 = vsub.f32 %v2466, %v2500
    %v2509 = vmul.f32 %v2501, %v2501
    %v2510 = vmul.f32 %v2502, %v2502
    %v2511 = vmul.f32 %v2503, %v2503
    %v2512 = vmul.f32 %v2504, %v2504
    %v2513 = vmul.f32 %v2505, %v2505
    %v2514 = vmul.f32 %v2506, %v2506
    %v2515 = vmul.f32 %v2507, %v2507
    %v2516 = vmul.f32 %v2508, %v2508
    %v2517 = vsel %vm569, %v2509, 0.0
    %2518 = vadd.xlane.f32.xlu0 %v2517
    %v2519 = vpop.xlane.xlu0 %2518
    %v2520 = vsel %vm569, %v2510, 0.0
    %2521 = vadd.xlane.f32.xlu0 %v2520
    %v2522 = vpop.xlane.xlu0 %2521
    %v2523 = vsel %vm569, %v2511, 0.0
    %2524 = vadd.xlane.f32.xlu0 %v2523
    %v2525 = vpop.xlane.xlu0 %2524
    %v2526 = vsel %vm569, %v2512, 0.0
    %2527 = vadd.xlane.f32.xlu0 %v2526
    %v2528 = vpop.xlane.xlu0 %2527
    %v2529 = vsel %vm569, %v2513, 0.0
    %2530 = vadd.xlane.f32.xlu0 %v2529
    %v2531 = vpop.xlane.xlu0 %2530
    %v2532 = vsel %vm569, %v2514, 0.0
    %2533 = vadd.xlane.f32.xlu0 %v2532
    %v2534 = vpop.xlane.xlu0 %2533
    %v2535 = vsel %vm569, %v2515, 0.0
    %2536 = vadd.xlane.f32.xlu0 %v2535
    %v2537 = vpop.xlane.xlu0 %2536
    %v2538 = vsel %vm569, %v2516, 0.0
    %2539 = vadd.xlane.f32.xlu0 %v2538
    %v2540 = vpop.xlane.xlu0 %2539
    %v2541 = vmul.f32 %v2519, %v594
    %v2542 = vmul.f32 %v2522, %v594
    %v2543 = vmul.f32 %v2525, %v594
    %v2544 = vmul.f32 %v2528, %v594
    %v2545 = vmul.f32 %v2531, %v594
    %v2546 = vmul.f32 %v2534, %v594
    %v2547 = vmul.f32 %v2537, %v594
    %v2548 = vmul.f32 %v2540, %v594
    %v2549 = vadd.f32 %v2541, 1e-05
    %v2550 = vadd.f32 %v2542, 1e-05
    %v2551 = vadd.f32 %v2543, 1e-05
    %v2552 = vadd.f32 %v2544, 1e-05
    %v2553 = vadd.f32 %v2545, 1e-05
    %v2554 = vadd.f32 %v2546, 1e-05
    %v2555 = vadd.f32 %v2547, 1e-05
    %v2556 = vadd.f32 %v2548, 1e-05
    %v2557 = vrsqrt.pop %v2549
    %v2558 = vmul.f32 %v2549, %v2557
    %vm2559 = vcmp.eq.f32.partialorder %v2549, inf
    %v2560 = vsel %vm2559, %v2549, %v2558
    %vm2561 = vcmp.eq.f32.partialorder %v2549, 0.0
    %v2562 = vand.u32 %v2549, 2147483648
    %v2563 = vsel %vm2561, %v2562, %v2560
    %v2564 = vrsqrt.pop %v2550
    %v2565 = vmul.f32 %v2550, %v2564
    %vm2566 = vcmp.eq.f32.partialorder %v2550, inf
    %v2567 = vsel %vm2566, %v2550, %v2565
    %vm2568 = vcmp.eq.f32.partialorder %v2550, 0.0
    %v2569 = vand.u32 %v2550, 2147483648
    %v2570 = vsel %vm2568, %v2569, %v2567
    %v2571 = vrsqrt.pop %v2551
    %v2572 = vmul.f32 %v2551, %v2571
    %vm2573 = vcmp.eq.f32.partialorder %v2551, inf
    %v2574 = vsel %vm2573, %v2551, %v2572
    %vm2575 = vcmp.eq.f32.partialorder %v2551, 0.0
    %v2576 = vand.u32 %v2551, 2147483648
    %v2577 = vsel %vm2575, %v2576, %v2574
    %v2578 = vrsqrt.pop %v2552
    %v2579 = vmul.f32 %v2552, %v2578
    %vm2580 = vcmp.eq.f32.partialorder %v2552, inf
    %v2581 = vsel %vm2580, %v2552, %v2579
    %vm2582 = vcmp.eq.f32.partialorder %v2552, 0.0
    %v2583 = vand.u32 %v2552, 2147483648
    %v2584 = vsel %vm2582, %v2583, %v2581
    %v2585 = vrsqrt.pop %v2553
    %v2586 = vmul.f32 %v2553, %v2585
    %vm2587 = vcmp.eq.f32.partialorder %v2553, inf
    %v2588 = vsel %vm2587, %v2553, %v2586
    %vm2589 = vcmp.eq.f32.partialorder %v2553, 0.0
    %v2590 = vand.u32 %v2553, 2147483648
    %v2591 = vsel %vm2589, %v2590, %v2588
    %v2592 = vrsqrt.pop %v2554
    %v2593 = vmul.f32 %v2554, %v2592
    %vm2594 = vcmp.eq.f32.partialorder %v2554, inf
    %v2595 = vsel %vm2594, %v2554, %v2593
    %vm2596 = vcmp.eq.f32.partialorder %v2554, 0.0
    %v2597 = vand.u32 %v2554, 2147483648
    %v2598 = vsel %vm2596, %v2597, %v2595
    %v2599 = vrsqrt.pop %v2555
    %v2600 = vmul.f32 %v2555, %v2599
    %vm2601 = vcmp.eq.f32.partialorder %v2555, inf
    %v2602 = vsel %vm2601, %v2555, %v2600
    %vm2603 = vcmp.eq.f32.partialorder %v2555, 0.0
    %v2604 = vand.u32 %v2555, 2147483648
    %v2605 = vsel %vm2603, %v2604, %v2602
    %v2606 = vrsqrt.pop %v2556
    %v2607 = vmul.f32 %v2556, %v2606
    %vm2608 = vcmp.eq.f32.partialorder %v2556, inf
    %v2609 = vsel %vm2608, %v2556, %v2607
    %vm2610 = vcmp.eq.f32.partialorder %v2556, 0.0
    %v2611 = vand.u32 %v2556, 2147483648
    %v2612 = vsel %vm2610, %v2611, %v2609
    %v2613 = vrcp.pop %v2563
    %v2614 = vmul.f32 %v2501, %v2613
    %v2615 = vrcp.pop %v2570
    %v2616 = vmul.f32 %v2502, %v2615
    %v2617 = vrcp.pop %v2577
    %v2618 = vmul.f32 %v2503, %v2617
    %v2619 = vrcp.pop %v2584
    %v2620 = vmul.f32 %v2504, %v2619
    %v2621 = vrcp.pop %v2591
    %v2622 = vmul.f32 %v2505, %v2621
    %v2623 = vrcp.pop %v2598
    %v2624 = vmul.f32 %v2506, %v2623
    %v2625 = vrcp.pop %v2605
    %v2626 = vmul.f32 %v2507, %v2625
    %v2627 = vrcp.pop %v2612
    %v2628 = vmul.f32 %v2508, %v2627
    %v2629 = vlaneseq
    %v2630 = vshrl.u32 %v2629, 7
    %v2631 = vsub.s32 0, %v2630
    %v2632 = vrot.slane %v2467, %v2631
    %v2633 = vmul.f32 %v2614, %v2632
    %v2634 = vmul.f32 %v2616, %v2632
    %v2635 = vmul.f32 %v2618, %v2632
    %v2636 = vmul.f32 %v2620, %v2632
    %v2637 = vmul.f32 %v2622, %v2632
    %v2638 = vmul.f32 %v2624, %v2632
    %v2639 = vmul.f32 %v2626, %v2632
    %v2640 = vmul.f32 %v2628, %v2632
    %v2641 = vlaneseq
    %v2642 = vshrl.u32 %v2641, 7
    %v2643 = vsub.s32 0, %v2642
    %v2644 = vrot.slane %v2468, %v2643
    %v2645 = vadd.f32 %v2633, %v2644
    %v2646 = vadd.f32 %v2634, %v2644
    %v2647 = vadd.f32 %v2635, %v2644
    %v2648 = vadd.f32 %v2636, %v2644
    %v2649 = vadd.f32 %v2637, %v2644
    %v2650 = vadd.f32 %v2638, %v2644
    %v2651 = vadd.f32 %v2639, %v2644
    %v2652 = vadd.f32 %v2640, %v2644
    %v2653 = vpack.c.bf16 %v2646, %v2645
    %v2654 = vpack.c.bf16 %v2648, %v2647
    %v2655 = vpack.c.bf16 %v2650, %v2649
    %v2656 = vpack.c.bf16 %v2652, %v2651
    %v2657 = vld [vmem:[#allocation2 + $0x18] sm:$0xf]
    %v2658 = vld [vmem:[#allocation2 + $0x1c] sm:$0xf]
    %v2659 = vld [vmem:[#allocation2 + $0x20] sm:$0xf]
    %v2660 = vld [vmem:[#allocation2 + $0x24] sm:$0xf]
    %v2661 = vld [vmem:[#allocation5 + $0x40] sm:$0x1]
    %v2662 = vlaneseq
    %v2663 = vshrl.u32 %v2662, 7
    %v2664 = vsub.s32 0, %v2663
    %v2665 = vrot.slane %v2661, %v2664
    %v2670 = vunpack.c.l.b16 %v2657
    %v2671 = vunpack.c.l.b16 %v2658
    %v2672 = vunpack.c.l.b16 %v2659
    %v2673 = vunpack.c.l.b16 %v2660
    %v2674 = vpack.c.b16 %v2671, %v2670
    %v2675 = vpack.c.b16 %v2673, %v2672
    %v2679 = vsel %vm569, %v2653, 0
    %v2682 = vsel %vm569, %v2654, 0
    %v2685 = vsel %vm569, %v2655, 0
    %v2688 = vsel %vm569, %v2656, 0
    %2690 = vmatprep.subr.bf16.mxu0 0
    %2691 = vmatpush1.bf16.msra.mxu0 %v2674
    %2692 = vmatprep.subr.bf16.mxu0 0
    %2693 = vmatpush1.bf16.msra.mxu0 %v2675
    %2694 = vmatprep.subr.bf16.mxu0 0
    %2695 = vmatpush1.bf16.msra.mxu0 0
    %2696 = vmatprep.subr.bf16.mxu0 0
    %2697 = vmatpush1.bf16.msra.mxu0 0
    %2698 = vmatprep.subr.bf16.mxu0 0
    %2699 = vmatpush1.bf16.msra.mxu0 0
    %2700 = vmatprep.subr.bf16.mxu0 0
    %2701 = vmatpush1.bf16.msra.mxu0 0
    %2702 = vmatprep.subr.bf16.mxu0 0
    %2703 = vmatpush1.bf16.msra.mxu0 0
    %2704 = vmatprep.subr.bf16.mxu0 0
    %2705 = vmatpush1.bf16.msra.mxu0 0
    %2706 = vmatprep.subr.bf16.mxu0 0
    %2707 = vmatpush1.bf16.msra.mxu0 0
    %2708 = vmatprep.subr.bf16.mxu0 0
    %2709 = vmatpush1.bf16.msra.mxu0 0
    %2710 = vmatprep.subr.bf16.mxu0 0
    %2711 = vmatpush1.bf16.msra.mxu0 0
    %2712 = vmatprep.subr.bf16.mxu0 0
    %2713 = vmatpush1.bf16.msra.mxu0 0
    %2714 = vmatprep.subr.bf16.mxu0 0
    %2715 = vmatpush1.bf16.msra.mxu0 0
    %2716 = vmatprep.subr.bf16.mxu0 0
    %2717 = vmatpush1.bf16.msra.mxu0 0
    %2718 = vmatprep.subr.bf16.mxu0 0
    %2719 = vmatpush1.bf16.msra.mxu0 0
    %2720 = vmatprep.subr.bf16.mxu0 0
    %2721 = vmatpush1.bf16.msra.mxu0 0
    %2722 = vmatprep.mubr.bf16.mxu0 0
    %2723 = vmatmul.mubr.bf16.gmra.mrb[0].mxu0 %v2679
    %v2724 = vpop.f32.mrb[0].mxu0
    %v2725 = vadd.f32 %v2665, %v2724
    %v2726 = vpop.f32.mrb[0].mxu0
    %v2727 = vpop.f32.mrb[0].mxu0
    %v2728 = vadd.f32 %v2665, %v2727
    %v2729 = vpop.f32.mrb[0].mxu0
    %2730 = vmatprep.mubr.bf16.mxu0 0
    %2731 = vmatmul.mubr.bf16.gmra.mrb[0].mxu0 %v2682
    %v2732 = vpop.f32.mrb[0].mxu0
    %v2733 = vadd.f32 %v2665, %v2732
    %v2734 = vpop.f32.mrb[0].mxu0
    %v2735 = vpop.f32.mrb[0].mxu0
    %v2736 = vadd.f32 %v2665, %v2735
    %v2737 = vpop.f32.mrb[0].mxu0
    %2738 = vmatprep.mubr.bf16.mxu0 0
    %2739 = vmatmul.mubr.bf16.gmra.mrb[0].mxu0 %v2685
    %v2740 = vpop.f32.mrb[0].mxu0
    %v2741 = vadd.f32 %v2665, %v2740
    %v2742 = vpop.f32.mrb[0].mxu0
    %v2743 = vpop.f32.mrb[0].mxu0
    %v2744 = vadd.f32 %v2665, %v2743
    %v2745 = vpop.f32.mrb[0].mxu0
    %2746 = vmatprep.mubr.bf16.mxu0 0
    %2747 = vmatmul.mubr.bf16.gmra.mrb[0].mxu0 %v2688
    %v2748 = vpop.f32.mrb[0].mxu0
    %v2749 = vadd.f32 %v2665, %v2748
    %v2750 = vpop.f32.mrb[0].mxu0
    %v2751 = vpop.f32.mrb[0].mxu0
    %v2752 = vadd.f32 %v2665, %v2751
    %v2753 = vpop.f32.mrb[0].mxu0
    %2754 = vdwg.mxu0
    %v2755 = vmul.f32 %v2725, 0.5
    %v2756 = vmul.f32 %v2728, 0.5
    %v2757 = vmul.f32 %v2733, 0.5
    %v2758 = vmul.f32 %v2736, 0.5
    %v2759 = vmul.f32 %v2741, 0.5
    %v2760 = vmul.f32 %v2744, 0.5
    %v2761 = vmul.f32 %v2749, 0.5
    %v2762 = vmul.f32 %v2752, 0.5
    %v2763 = vmul.f32 %v2725, %v1277
    %v2764 = vmul.f32 %v2728, %v1277
    %v2765 = vmul.f32 %v2733, %v1277
    %v2766 = vmul.f32 %v2736, %v1277
    %v2767 = vmul.f32 %v2741, %v1277
    %v2768 = vmul.f32 %v2744, %v1277
    %v2769 = vmul.f32 %v2749, %v1277
    %v2770 = vmul.f32 %v2752, %v1277
    %v2771 = verf.f32.pop %v2763
    %v2772 = verf.f32.pop %v2764
    %v2773 = verf.f32.pop %v2765
    %v2774 = verf.f32.pop %v2766
    %v2775 = verf.f32.pop %v2767
    %v2776 = verf.f32.pop %v2768
    %v2777 = verf.f32.pop %v2769
    %v2778 = verf.f32.pop %v2770
    %v2779 = vadd.f32 %v2771, 1.0
    %v2780 = vadd.f32 %v2772, 1.0
    %v2781 = vadd.f32 %v2773, 1.0
    %v2782 = vadd.f32 %v2774, 1.0
    %v2783 = vadd.f32 %v2775, 1.0
    %v2784 = vadd.f32 %v2776, 1.0
    %v2785 = vadd.f32 %v2777, 1.0
    %v2786 = vadd.f32 %v2778, 1.0
    %v2787 = vmul.f32 %v2755, %v2779
    %v2788 = vmul.f32 %v2756, %v2780
    %v2789 = vmul.f32 %v2757, %v2781
    %v2790 = vmul.f32 %v2758, %v2782
    %v2791 = vmul.f32 %v2759, %v2783
    %v2792 = vmul.f32 %v2760, %v2784
    %v2793 = vmul.f32 %v2761, %v2785
    %v2794 = vmul.f32 %v2762, %v2786
    %v2795 = vpack.c.bf16 %v2788, %v2787
    %v2796 = vpack.c.bf16 %v2790, %v2789
    %v2797 = vpack.c.bf16 %v2792, %v2791
    %v2798 = vpack.c.bf16 %v2794, %v2793
    %v2799 = vld [vmem:[#allocation2 + $0x28] sm:$0xf]
    %v2800 = vld [vmem:[#allocation2 + $0x2c] sm:$0xf]
    %v2801 = vld [vmem:[#allocation2 + $0x30] sm:$0xf]
    %v2802 = vld [vmem:[#allocation2 + $0x34] sm:$0xf]
    %v2803 = vld [vmem:[#allocation2 + $0x38] sm:$0xf]
    %v2804 = vld [vmem:[#allocation2 + $0x3c] sm:$0xf]
    %v2805 = vld [vmem:[#allocation2 + $0x40] sm:$0xf]
    %v2806 = vld [vmem:[#allocation2 + $0x44] sm:$0xf]
    %v2807 = vld [vmem:[#allocation5 + $0x48] sm:$0x1]
    %v2808 = vlaneseq
    %v2809 = vshrl.u32 %v2808, 7
    %v2810 = vsub.s32 0, %v2809
    %v2811 = vrot.slane %v2807, %v2810
    %v2820 = vunpack.c.l.b16 %v2799
    %v2821 = vunpack.c.l.b16 %v2800
    %v2822 = vunpack.c.l.b16 %v2801
    %v2823 = vunpack.c.l.b16 %v2802
    %v2824 = vunpack.c.l.b16 %v2803
    %v2825 = vunpack.c.l.b16 %v2804
    %v2826 = vunpack.c.l.b16 %v2805
    %v2827 = vunpack.c.l.b16 %v2806
    %v2828 = vpack.c.b16 %v2821, %v2820
    %v2829 = vpack.c.b16 %v2823, %v2822
    %v2830 = vpack.c.b16 %v2825, %v2824
    %v2831 = vpack.c.b16 %v2827, %v2826
    %vm2836 = vcmask 523264
    %v2838 = vsel %vm2836, %v2795, 0
    %v2841 = vsel %vm2836, %v2796, 0
    %v2844 = vsel %vm2836, %v2797, 0
    %v2847 = vsel %vm2836, %v2798, 0
    %2849 = vmatprep.subr.bf16.mxu0 0
    %2850 = vmatpush1.bf16.msra.mxu0 %v2828
    %2851 = vmatprep.subr.bf16.mxu0 0
    %2852 = vmatpush1.bf16.msra.mxu0 %v2829
    %2853 = vmatprep.subr.bf16.mxu0 0
    %2854 = vmatpush1.bf16.msra.mxu0 %v2830
    %2855 = vmatprep.subr.bf16.mxu0 0
    %2856 = vmatpush1.bf16.msra.mxu0 %v2831
    %2857 = vmatprep.subr.bf16.mxu0 0
    %2858 = vmatpush1.bf16.msra.mxu0 0
    %2859 = vmatprep.subr.bf16.mxu0 0
    %2860 = vmatpush1.bf16.msra.mxu0 0
    %2861 = vmatprep.subr.bf16.mxu0 0
    %2862 = vmatpush1.bf16.msra.mxu0 0
    %2863 = vmatprep.subr.bf16.mxu0 0
    %2864 = vmatpush1.bf16.msra.mxu0 0
    %2865 = vmatprep.subr.bf16.mxu0 0
    %2866 = vmatpush1.bf16.msra.mxu0 0
    %2867 = vmatprep.subr.bf16.mxu0 0
    %2868 = vmatpush1.bf16.msra.mxu0 0
    %2869 = vmatprep.subr.bf16.mxu0 0
    %2870 = vmatpush1.bf16.msra.mxu0 0
    %2871 = vmatprep.subr.bf16.mxu0 0
    %2872 = vmatpush1.bf16.msra.mxu0 0
    %2873 = vmatprep.subr.bf16.mxu0 0
    %2874 = vmatpush1.bf16.msra.mxu0 0
    %2875 = vmatprep.subr.bf16.mxu0 0
    %2876 = vmatpush1.bf16.msra.mxu0 0
    %2877 = vmatprep.subr.bf16.mxu0 0
    %2878 = vmatpush1.bf16.msra.mxu0 0
    %2879 = vmatprep.subr.bf16.mxu0 0
    %2880 = vmatpush1.bf16.msra.mxu0 0
    %2881 = vmatprep.mubr.bf16.mxu0 0
    %2882 = vmatmul.mubr.bf16.gmra.mrb[0].mxu0 %v2838
    %v2883 = vpop.f32.mrb[0].mxu0
    %v2884 = vadd.f32 %v2811, %v2883
    %v2885 = vpop.f32.mrb[0].mxu0
    %v2886 = vpop.f32.mrb[0].mxu0
    %v2887 = vadd.f32 %v2811, %v2886
    %v2888 = vpop.f32.mrb[0].mxu0
    %2889 = vmatprep.mubr.bf16.mxu0 0
    %2890 = vmatmul.mubr.bf16.gmra.mrb[0].mxu0 %v2841
    %v2891 = vpop.f32.mrb[0].mxu0
    %v2892 = vadd.f32 %v2811, %v2891
    %v2893 = vpop.f32.mrb[0].mxu0
    %v2894 = vpop.f32.mrb[0].mxu0
    %v2895 = vadd.f32 %v2811, %v2894
    %v2896 = vpop.f32.mrb[0].mxu0
    %2897 = vmatprep.mubr.bf16.mxu0 0
    %2898 = vmatmul.mubr.bf16.gmra.mrb[0].mxu0 %v2844
    %v2899 = vpop.f32.mrb[0].mxu0
    %v2900 = vadd.f32 %v2811, %v2899
    %v2901 = vpop.f32.mrb[0].mxu0
    %v2902 = vpop.f32.mrb[0].mxu0
    %v2903 = vadd.f32 %v2811, %v2902
    %v2904 = vpop.f32.mrb[0].mxu0
    %2905 = vmatprep.mubr.bf16.mxu0 0
    %2906 = vmatmul.mubr.bf16.gmra.mrb[0].mxu0 %v2847
    %v2907 = vpop.f32.mrb[0].mxu0
    %v2908 = vadd.f32 %v2811, %v2907
    %v2909 = vpop.f32.mrb[0].mxu0
    %v2910 = vpop.f32.mrb[0].mxu0
    %v2911 = vadd.f32 %v2811, %v2910
    %v2912 = vpop.f32.mrb[0].mxu0
    %2913 = vdwg.mxu0
    %v2914 = vld [vmem:[#allocation2 + $0x48] sm:$0xf]
    %v2915 = vld [vmem:[#allocation2 + $0x4c] sm:$0xf]
    %v2916 = vld [vmem:[#allocation2 + $0x50] sm:$0xf]
    %v2917 = vld [vmem:[#allocation2 + $0x54] sm:$0xf]
    %v2918 = vld [vmem:[#allocation2 + $0x58] sm:$0xf]
    %v2919 = vld [vmem:[#allocation2 + $0x5c] sm:$0xf]
    %v2920 = vld [vmem:[#allocation2 + $0x60] sm:$0xf]
    %v2921 = vld [vmem:[#allocation2 + $0x64] sm:$0xf]
    %v2922 = vld [vmem:[#allocation5 + $0x50] sm:$0x1]
    %v2923 = vlaneseq
    %v2924 = vshrl.u32 %v2923, 7
    %v2925 = vsub.s32 0, %v2924
    %v2926 = vrot.slane %v2922, %v2925
    %v2935 = vunpack.c.l.b16 %v2914
    %v2936 = vunpack.c.l.b16 %v2915
    %v2937 = vunpack.c.l.b16 %v2916
    %v2938 = vunpack.c.l.b16 %v2917
    %v2939 = vunpack.c.l.b16 %v2918
    %v2940 = vunpack.c.l.b16 %v2919
    %v2941 = vunpack.c.l.b16 %v2920
    %v2942 = vunpack.c.l.b16 %v2921
    %v2943 = vpack.c.b16 %v2936, %v2935
    %v2944 = vpack.c.b16 %v2938, %v2937
    %v2945 = vpack.c.b16 %v2940, %v2939
    %v2946 = vpack.c.b16 %v2942, %v2941
    %2951 = vmatprep.subr.bf16.mxu0 0
    %2952 = vmatpush1.bf16.msra.mxu0 %v2943
    %2953 = vmatprep.subr.bf16.mxu0 0
    %2954 = vmatpush1.bf16.msra.mxu0 %v2944
    %2955 = vmatprep.subr.bf16.mxu0 0
    %2956 = vmatpush1.bf16.msra.mxu0 %v2945
    %2957 = vmatprep.subr.bf16.mxu0 0
    %2958 = vmatpush1.bf16.msra.mxu0 %v2946
    %2959 = vmatprep.subr.bf16.mxu0 0
    %2960 = vmatpush1.bf16.msra.mxu0 0
    %2961 = vmatprep.subr.bf16.mxu0 0
    %2962 = vmatpush1.bf16.msra.mxu0 0
    %2963 = vmatprep.subr.bf16.mxu0 0
    %2964 = vmatpush1.bf16.msra.mxu0 0
    %2965 = vmatprep.subr.bf16.mxu0 0
    %2966 = vmatpush1.bf16.msra.mxu0 0
    %2967 = vmatprep.subr.bf16.mxu0 0
    %2968 = vmatpush1.bf16.msra.mxu0 0
    %2969 = vmatprep.subr.bf16.mxu0 0
    %2970 = vmatpush1.bf16.msra.mxu0 0
    %2971 = vmatprep.subr.bf16.mxu0 0
    %2972 = vmatpush1.bf16.msra.mxu0 0
    %2973 = vmatprep.subr.bf16.mxu0 0
    %2974 = vmatpush1.bf16.msra.mxu0 0
    %2975 = vmatprep.subr.bf16.mxu0 0
    %2976 = vmatpush1.bf16.msra.mxu0 0
    %2977 = vmatprep.subr.bf16.mxu0 0
    %2978 = vmatpush1.bf16.msra.mxu0 0
    %2979 = vmatprep.subr.bf16.mxu0 0
    %2980 = vmatpush1.bf16.msra.mxu0 0
    %2981 = vmatprep.subr.bf16.mxu0 0
    %2982 = vmatpush1.bf16.msra.mxu0 0
    %2983 = vmatprep.mubr.bf16.mxu0 0
    %2984 = vmatmul.mubr.bf16.gmra.mrb[0].mxu0 %v2838
    %v2985 = vpop.f32.mrb[0].mxu0
    %v2986 = vadd.f32 %v2926, %v2985
    %v2987 = vpop.f32.mrb[0].mxu0
    %v2988 = vpop.f32.mrb[0].mxu0
    %v2989 = vadd.f32 %v2926, %v2988
    %v2990 = vpop.f32.mrb[0].mxu0
    %2991 = vmatprep.mubr.bf16.mxu0 0
    %2992 = vmatmul.mubr.bf16.gmra.mrb[0].mxu0 %v2841
    %v2993 = vpop.f32.mrb[0].mxu0
    %v2994 = vadd.f32 %v2926, %v2993
    %v2995 = vpop.f32.mrb[0].mxu0
    %v2996 = vpop.f32.mrb[0].mxu0
    %v2997 = vadd.f32 %v2926, %v2996
    %v2998 = vpop.f32.mrb[0].mxu0
    %2999 = vmatprep.mubr.bf16.mxu0 0
    %3000 = vmatmul.mubr.bf16.gmra.mrb[0].mxu0 %v2844
    %v3001 = vpop.f32.mrb[0].mxu0
    %v3002 = vadd.f32 %v2926, %v3001
    %v3003 = vpop.f32.mrb[0].mxu0
    %v3004 = vpop.f32.mrb[0].mxu0
    %v3005 = vadd.f32 %v2926, %v3004
    %v3006 = vpop.f32.mrb[0].mxu0
    %3007 = vmatprep.mubr.bf16.mxu0 0
    %3008 = vmatmul.mubr.bf16.gmra.mrb[0].mxu0 %v2847
    %v3009 = vpop.f32.mrb[0].mxu0
    %v3010 = vadd.f32 %v2926, %v3009
    %v3011 = vpop.f32.mrb[0].mxu0
    %v3012 = vpop.f32.mrb[0].mxu0
    %v3013 = vadd.f32 %v2926, %v3012
    %v3014 = vpop.f32.mrb[0].mxu0
    %3015 = vdwg.mxu0
    %v3016 = vsel %vm569, %v2986, -inf
    %3017 = vmax.xlane.f32.xlu0 %v3016
    %v3018 = vpop.xlane.xlu0 %3017
    %v3019 = vsel %vm569, %v2989, -inf
    %3020 = vmax.xlane.f32.xlu0 %v3019
    %v3021 = vpop.xlane.xlu0 %3020
    %v3022 = vsel %vm569, %v2994, -inf
    %3023 = vmax.xlane.f32.xlu0 %v3022
    %v3024 = vpop.xlane.xlu0 %3023
    %v3025 = vsel %vm569, %v2997, -inf
    %3026 = vmax.xlane.f32.xlu0 %v3025
    %v3027 = vpop.xlane.xlu0 %3026
    %v3028 = vsel %vm569, %v3002, -inf
    %3029 = vmax.xlane.f32.xlu0 %v3028
    %v3030 = vpop.xlane.xlu0 %3029
    %v3031 = vsel %vm569, %v3005, -inf
    %3032 = vmax.xlane.f32.xlu0 %v3031
    %v3033 = vpop.xlane.xlu0 %3032
    %v3034 = vsel %vm569, %v3010, -inf
    %3035 = vmax.xlane.f32.xlu0 %v3034
    %v3036 = vpop.xlane.xlu0 %3035
    %v3037 = vsel %vm569, %v3013, -inf
    %3038 = vmax.xlane.f32.xlu0 %v3037
    %v3039 = vpop.xlane.xlu0 %3038
    %v3040 = vsub.f32 %v2986, %v3018
    %v3041 = vsub.f32 %v2989, %v3021
    %v3042 = vsub.f32 %v2994, %v3024
    %v3043 = vsub.f32 %v2997, %v3027
    %v3044 = vsub.f32 %v3002, %v3030
    %v3045 = vsub.f32 %v3005, %v3033
    %v3046 = vsub.f32 %v3010, %v3036
    %v3047 = vsub.f32 %v3013, %v3039
    %v3048 = vmul.f32 %v3040, 1.442695
    %v3049 = vpow.pop %v3048
    %v3050 = vmul.f32 %v3041, 1.442695
    %v3051 = vpow.pop %v3050
    %v3052 = vmul.f32 %v3042, 1.442695
    %v3053 = vpow.pop %v3052
    %v3054 = vmul.f32 %v3043, 1.442695
    %v3055 = vpow.pop %v3054
    %v3056 = vmul.f32 %v3044, 1.442695
    %v3057 = vpow.pop %v3056
    %v3058 = vmul.f32 %v3045, 1.442695
    %v3059 = vpow.pop %v3058
    %v3060 = vmul.f32 %v3046, 1.442695
    %v3061 = vpow.pop %v3060
    %v3062 = vmul.f32 %v3047, 1.442695
    %v3063 = vpow.pop %v3062
    %v3064 = vsel %vm569, %v3049, 0.0
    %3065 = vadd.xlane.f32.xlu0 %v3064
    %v3066 = vpop.xlane.xlu0 %3065
    %v3067 = vsel %vm569, %v3051, 0.0
    %3068 = vadd.xlane.f32.xlu0 %v3067
    %v3069 = vpop.xlane.xlu0 %3068
    %v3070 = vsel %vm569, %v3053, 0.0
    %3071 = vadd.xlane.f32.xlu0 %v3070
    %v3072 = vpop.xlane.xlu0 %3071
    %v3073 = vsel %vm569, %v3055, 0.0
    %3074 = vadd.xlane.f32.xlu0 %v3073
    %v3075 = vpop.xlane.xlu0 %3074
    %v3076 = vsel %vm569, %v3057, 0.0
    %3077 = vadd.xlane.f32.xlu0 %v3076
    %v3078 = vpop.xlane.xlu0 %3077
    %v3079 = vsel %vm569, %v3059, 0.0
    %3080 = vadd.xlane.f32.xlu0 %v3079
    %v3081 = vpop.xlane.xlu0 %3080
    %v3082 = vsel %vm569, %v3061, 0.0
    %3083 = vadd.xlane.f32.xlu0 %v3082
    %v3084 = vpop.xlane.xlu0 %3083
    %v3085 = vsel %vm569, %v3063, 0.0
    %3086 = vadd.xlane.f32.xlu0 %v3085
    %v3087 = vpop.xlane.xlu0 %3086
    %v3088 = vrcp.pop %v3066
    %v3089 = vrcp.pop %v3069
    %v3090 = vrcp.pop %v3072
    %v3091 = vrcp.pop %v3075
    %v3092 = vrcp.pop %v3078
    %v3093 = vrcp.pop %v3081
    %v3094 = vrcp.pop %v3084
    %v3095 = vrcp.pop %v3087
    %v3096 = vmul.f32 %v3049, %v3088
    %v3097 = vmul.f32 %v3051, %v3089
    %v3098 = vmul.f32 %v3053, %v3090
    %v3099 = vmul.f32 %v3055, %v3091
    %v3100 = vmul.f32 %v3057, %v3092
    %v3101 = vmul.f32 %v3059, %v3093
    %v3102 = vmul.f32 %v3061, %v3094
    %v3103 = vmul.f32 %v3063, %v3095
    %v3104 = vmul.f32 %v2884, %v3096
    %v3105 = vmul.f32 %v2887, %v3097
    %v3106 = vmul.f32 %v2892, %v3098
    %v3107 = vmul.f32 %v2895, %v3099
    %v3108 = vmul.f32 %v2900, %v3100
    %v3109 = vmul.f32 %v2903, %v3101
    %v3110 = vmul.f32 %v2908, %v3102
    %v3111 = vmul.f32 %v2911, %v3103
    %v3112 = vadd.f32 %v2459, %v3104
    %v3113 = vadd.f32 %v2460, %v3105
    %v3114 = vadd.f32 %v2461, %v3106
    %v3115 = vadd.f32 %v2462, %v3107
    %v3116 = vadd.f32 %v2463, %v3108
    %v3117 = vadd.f32 %v2464, %v3109
    %v3118 = vadd.f32 %v2465, %v3110
    %v3119 = vadd.f32 %v2466, %v3111
    %v3120 = vld [vmem:[#allocation5 + $0x58] sm:$0x1]
    %v3121 = vld [vmem:[#allocation5 + $0x60] sm:$0x1]
    %v3122 = vsel %vm569, %v3112, 0.0
    %3123 = vadd.xlane.f32.xlu0 %v3122
    %v3124 = vpop.xlane.xlu0 %3123
    %v3125 = vsel %vm569, %v3113, 0.0
    %3126 = vadd.xlane.f32.xlu0 %v3125
    %v3127 = vpop.xlane.xlu0 %3126
    %v3128 = vsel %vm569, %v3114, 0.0
    %3129 = vadd.xlane.f32.xlu0 %v3128
    %v3130 = vpop.xlane.xlu0 %3129
    %v3131 = vsel %vm569, %v3115, 0.0
    %3132 = vadd.xlane.f32.xlu0 %v3131
    %v3133 = vpop.xlane.xlu0 %3132
    %v3134 = vsel %vm569, %v3116, 0.0
    %3135 = vadd.xlane.f32.xlu0 %v3134
    %v3136 = vpop.xlane.xlu0 %3135
    %v3137 = vsel %vm569, %v3117, 0.0
    %3138 = vadd.xlane.f32.xlu0 %v3137
    %v3139 = vpop.xlane.xlu0 %3138
    %v3140 = vsel %vm569, %v3118, 0.0
    %3141 = vadd.xlane.f32.xlu0 %v3140
    %v3142 = vpop.xlane.xlu0 %3141
    %v3143 = vsel %vm569, %v3119, 0.0
    %3144 = vadd.xlane.f32.xlu0 %v3143
    %v3145 = vpop.xlane.xlu0 %3144
    %v3146 = vmul.f32 %v3124, %v594
    %v3147 = vmul.f32 %v3127, %v594
    %v3148 = vmul.f32 %v3130, %v594
    %v3149 = vmul.f32 %v3133, %v594
    %v3150 = vmul.f32 %v3136, %v594
    %v3151 = vmul.f32 %v3139, %v594
    %v3152 = vmul.f32 %v3142, %v594
    %v3153 = vmul.f32 %v3145, %v594
    %v3154 = vsub.f32 %v3112, %v3146
    %v3155 = vsub.f32 %v3113, %v3147
    %v3156 = vsub.f32 %v3114, %v3148
    %v3157 = vsub.f32 %v3115, %v3149
    %v3158 = vsub.f32 %v3116, %v3150
    %v3159 = vsub.f32 %v3117, %v3151
    %v3160 = vsub.f32 %v3118, %v3152
    %v3161 = vsub.f32 %v3119, %v3153
    %v3162 = vmul.f32 %v3154, %v3154
    %v3163 = vmul.f32 %v3155, %v3155
    %v3164 = vmul.f32 %v3156, %v3156
    %v3165 = vmul.f32 %v3157, %v3157
    %v3166 = vmul.f32 %v3158, %v3158
    %v3167 = vmul.f32 %v3159, %v3159
    %v3168 = vmul.f32 %v3160, %v3160
    %v3169 = vmul.f32 %v3161, %v3161
    %v3170 = vsel %vm569, %v3162, 0.0
    %3171 = vadd.xlane.f32.xlu0 %v3170
    %v3172 = vpop.xlane.xlu0 %3171
    %v3173 = vsel %vm569, %v3163, 0.0
    %3174 = vadd.xlane.f32.xlu0 %v3173
    %v3175 = vpop.xlane.xlu0 %3174
    %v3176 = vsel %vm569, %v3164, 0.0
    %3177 = vadd.xlane.f32.xlu0 %v3176
    %v3178 = vpop.xlane.xlu0 %3177
    %v3179 = vsel %vm569, %v3165, 0.0
    %3180 = vadd.xlane.f32.xlu0 %v3179
    %v3181 = vpop.xlane.xlu0 %3180
    %v3182 = vsel %vm569, %v3166, 0.0
    %3183 = vadd.xlane.f32.xlu0 %v3182
    %v3184 = vpop.xlane.xlu0 %3183
    %v3185 = vsel %vm569, %v3167, 0.0
    %3186 = vadd.xlane.f32.xlu0 %v3185
    %v3187 = vpop.xlane.xlu0 %3186
    %v3188 = vsel %vm569, %v3168, 0.0
    %3189 = vadd.xlane.f32.xlu0 %v3188
    %v3190 = vpop.xlane.xlu0 %3189
    %v3191 = vsel %vm569, %v3169, 0.0
    %3192 = vadd.xlane.f32.xlu0 %v3191
    %v3193 = vpop.xlane.xlu0 %3192
    %v3194 = vmul.f32 %v3172, %v594
    %v3195 = vmul.f32 %v3175, %v594
    %v3196 = vmul.f32 %v3178, %v594
    %v3197 = vmul.f32 %v3181, %v594
    %v3198 = vmul.f32 %v3184, %v594
    %v3199 = vmul.f32 %v3187, %v594
    %v3200 = vmul.f32 %v3190, %v594
    %v3201 = vmul.f32 %v3193, %v594
    %v3202 = vadd.f32 %v3194, 1e-05
    %v3203 = vadd.f32 %v3195, 1e-05
    %v3204 = vadd.f32 %v3196, 1e-05
    %v3205 = vadd.f32 %v3197, 1e-05
    %v3206 = vadd.f32 %v3198, 1e-05
    %v3207 = vadd.f32 %v3199, 1e-05
    %v3208 = vadd.f32 %v3200, 1e-05
    %v3209 = vadd.f32 %v3201, 1e-05
    %v3210 = vrsqrt.pop %v3202
    %v3211 = vmul.f32 %v3202, %v3210
    %vm3212 = vcmp.eq.f32.partialorder %v3202, inf
    %v3213 = vsel %vm3212, %v3202, %v3211
    %vm3214 = vcmp.eq.f32.partialorder %v3202, 0.0
    %v3215 = vand.u32 %v3202, 2147483648
    %v3216 = vsel %vm3214, %v3215, %v3213
    %v3217 = vrsqrt.pop %v3203
    %v3218 = vmul.f32 %v3203, %v3217
    %vm3219 = vcmp.eq.f32.partialorder %v3203, inf
    %v3220 = vsel %vm3219, %v3203, %v3218
    %vm3221 = vcmp.eq.f32.partialorder %v3203, 0.0
    %v3222 = vand.u32 %v3203, 2147483648
    %v3223 = vsel %vm3221, %v3222, %v3220
    %v3224 = vrsqrt.pop %v3204
    %v3225 = vmul.f32 %v3204, %v3224
    %vm3226 = vcmp.eq.f32.partialorder %v3204, inf
    %v3227 = vsel %vm3226, %v3204, %v3225
    %vm3228 = vcmp.eq.f32.partialorder %v3204, 0.0
    %v3229 = vand.u32 %v3204, 2147483648
    %v3230 = vsel %vm3228, %v3229, %v3227
    %v3231 = vrsqrt.pop %v3205
    %v3232 = vmul.f32 %v3205, %v3231
    %vm3233 = vcmp.eq.f32.partialorder %v3205, inf
    %v3234 = vsel %vm3233, %v3205, %v3232
    %vm3235 = vcmp.eq.f32.partialorder %v3205, 0.0
    %v3236 = vand.u32 %v3205, 2147483648
    %v3237 = vsel %vm3235, %v3236, %v3234
    %v3238 = vrsqrt.pop %v3206
    %v3239 = vmul.f32 %v3206, %v3238
    %vm3240 = vcmp.eq.f32.partialorder %v3206, inf
    %v3241 = vsel %vm3240, %v3206, %v3239
    %vm3242 = vcmp.eq.f32.partialorder %v3206, 0.0
    %v3243 = vand.u32 %v3206, 2147483648
    %v3244 = vsel %vm3242, %v3243, %v3241
    %v3245 = vrsqrt.pop %v3207
    %v3246 = vmul.f32 %v3207, %v3245
    %vm3247 = vcmp.eq.f32.partialorder %v3207, inf
    %v3248 = vsel %vm3247, %v3207, %v3246
    %vm3249 = vcmp.eq.f32.partialorder %v3207, 0.0
    %v3250 = vand.u32 %v3207, 2147483648
    %v3251 = vsel %vm3249, %v3250, %v3248
    %v3252 = vrsqrt.pop %v3208
    %v3253 = vmul.f32 %v3208, %v3252
    %vm3254 = vcmp.eq.f32.partialorder %v3208, inf
    %v3255 = vsel %vm3254, %v3208, %v3253
    %vm3256 = vcmp.eq.f32.partialorder %v3208, 0.0
    %v3257 = vand.u32 %v3208, 2147483648
    %v3258 = vsel %vm3256, %v3257, %v3255
    %v3259 = vrsqrt.pop %v3209
    %v3260 = vmul.f32 %v3209, %v3259
    %vm3261 = vcmp.eq.f32.partialorder %v3209, inf
    %v3262 = vsel %vm3261, %v3209, %v3260
    %vm3263 = vcmp.eq.f32.partialorder %v3209, 0.0
    %v3264 = vand.u32 %v3209, 2147483648
    %v3265 = vsel %vm3263, %v3264, %v3262
    %v3266 = vrcp.pop %v3216
    %v3267 = vmul.f32 %v3154, %v3266
    %v3268 = vrcp.pop %v3223
    %v3269 = vmul.f32 %v3155, %v3268
    %v3270 = vrcp.pop %v3230
    %v3271 = vmul.f32 %v3156, %v3270
    %v3272 = vrcp.pop %v3237
    %v3273 = vmul.f32 %v3157, %v3272
    %v3274 = vrcp.pop %v3244
    %v3275 = vmul.f32 %v3158, %v3274
    %v3276 = vrcp.pop %v3251
    %v3277 = vmul.f32 %v3159, %v3276
    %v3278 = vrcp.pop %v3258
    %v3279 = vmul.f32 %v3160, %v3278
    %v3280 = vrcp.pop %v3265
    %v3281 = vmul.f32 %v3161, %v3280
    %v3282 = vlaneseq
    %v3283 = vshrl.u32 %v3282, 7
    %v3284 = vsub.s32 0, %v3283
    %v3285 = vrot.slane %v3120, %v3284
    %v3286 = vmul.f32 %v3267, %v3285
    %v3287 = vmul.f32 %v3269, %v3285
    %v3288 = vmul.f32 %v3271, %v3285
    %v3289 = vmul.f32 %v3273, %v3285
    %v3290 = vmul.f32 %v3275, %v3285
    %v3291 = vmul.f32 %v3277, %v3285
    %v3292 = vmul.f32 %v3279, %v3285
    %v3293 = vmul.f32 %v3281, %v3285
    %v3294 = vlaneseq
    %v3295 = vshrl.u32 %v3294, 7
    %v3296 = vsub.s32 0, %v3295
    %v3297 = vrot.slane %v3121, %v3296
    %v3298 = vadd.f32 %v3286, %v3297
    %v3299 = vadd.f32 %v3287, %v3297
    %v3300 = vadd.f32 %v3288, %v3297
    %v3301 = vadd.f32 %v3289, %v3297
    %v3302 = vadd.f32 %v3290, %v3297
    %v3303 = vadd.f32 %v3291, %v3297
    %v3304 = vadd.f32 %v3292, %v3297
    %v3305 = vadd.f32 %v3293, %v3297
    %3306 = vxpose.xlu0.b32.start [1/16] %v3298, 128
    %3307 = vxpose.xlu0.b32.cont [2/16] 0.0, 128
    %3308 = vxpose.xlu0.b32.cont [3/16] 0.0, 128
    %3309 = vxpose.xlu0.b32.cont [4/16] 0.0, 128
    %3310 = vxpose.xlu0.b32.cont [5/16] 0.0, 128
    %3311 = vxpose.xlu0.b32.cont [6/16] 0.0, 128
    %3312 = vxpose.xlu0.b32.cont [7/16] 0.0, 128
    %3313 = vxpose.xlu0.b32.cont [8/16] 0.0, 128
    %3314 = vxpose.xlu0.b32.cont [9/16] 0.0, 128
    %3315 = vxpose.xlu0.b32.cont [10/16] 0.0, 128
    %3316 = vxpose.xlu0.b32.cont [11/16] 0.0, 128
    %3317 = vxpose.xlu0.b32.cont [12/16] 0.0, 128
    %3318 = vxpose.xlu0.b32.cont [13/16] 0.0, 128
    %3319 = vxpose.xlu0.b32.cont [14/16] 0.0, 128
    %3320 = vxpose.xlu0.b32.cont [15/16] 0.0, 128
    %3321 = vxpose.xlu0.b32.end [16/16] 0.0, 128
    %v3322 = vpop.trf.xlu0
    %v3323 = vpop.trf.xlu0
    %v3324 = vpop.trf.xlu0
    %v3325 = vpop.trf.xlu0
    %v3326 = vpop.trf.xlu0
    %v3327 = vpop.trf.xlu0
    %v3328 = vpop.trf.xlu0
    %v3329 = vpop.trf.xlu0
    %v3330 = vpop.trf.xlu0
    %v3331 = vpop.trf.xlu0
    %v3332 = vpop.trf.xlu0
    %v3333 = vpop.trf.xlu0
    %v3334 = vpop.trf.xlu0
    %v3335 = vpop.trf.xlu0
    %v3336 = vpop.trf.xlu0
    %v3337 = vpop.trf.xlu0
    %3338 = vxpose.xlu0.b32.start [1/16] %v3299, 128
    %3339 = vxpose.xlu0.b32.cont [2/16] 0.0, 128
    %3340 = vxpose.xlu0.b32.cont [3/16] 0.0, 128
    %3341 = vxpose.xlu0.b32.cont [4/16] 0.0, 128
    %3342 = vxpose.xlu0.b32.cont [5/16] 0.0, 128
    %3343 = vxpose.xlu0.b32.cont [6/16] 0.0, 128
    %3344 = vxpose.xlu0.b32.cont [7/16] 0.0, 128
    %3345 = vxpose.xlu0.b32.cont [8/16] 0.0, 128
    %3346 = vxpose.xlu0.b32.cont [9/16] 0.0, 128
    %3347 = vxpose.xlu0.b32.cont [10/16] 0.0, 128
    %3348 = vxpose.xlu0.b32.cont [11/16] 0.0, 128
    %3349 = vxpose.xlu0.b32.cont [12/16] 0.0, 128
    %3350 = vxpose.xlu0.b32.cont [13/16] 0.0, 128
    %3351 = vxpose.xlu0.b32.cont [14/16] 0.0, 128
    %3352 = vxpose.xlu0.b32.cont [15/16] 0.0, 128
    %3353 = vxpose.xlu0.b32.end [16/16] 0.0, 128
    %v3354 = vpop.trf.xlu0
    %v3355 = vpop.trf.xlu0
    %v3356 = vpop.trf.xlu0
    %v3357 = vpop.trf.xlu0
    %v3358 = vpop.trf.xlu0
    %v3359 = vpop.trf.xlu0
    %v3360 = vpop.trf.xlu0
    %v3361 = vpop.trf.xlu0
    %v3362 = vpop.trf.xlu0
    %v3363 = vpop.trf.xlu0
    %v3364 = vpop.trf.xlu0
    %v3365 = vpop.trf.xlu0
    %v3366 = vpop.trf.xlu0
    %v3367 = vpop.trf.xlu0
    %v3368 = vpop.trf.xlu0
    %v3369 = vpop.trf.xlu0
    %3370 = vxpose.xlu0.b32.start [1/16] %v3300, 128
    %3371 = vxpose.xlu0.b32.cont [2/16] 0.0, 128
    %3372 = vxpose.xlu0.b32.cont [3/16] 0.0, 128
    %3373 = vxpose.xlu0.b32.cont [4/16] 0.0, 128
    %3374 = vxpose.xlu0.b32.cont [5/16] 0.0, 128
    %3375 = vxpose.xlu0.b32.cont [6/16] 0.0, 128
    %3376 = vxpose.xlu0.b32.cont [7/16] 0.0, 128
    %3377 = vxpose.xlu0.b32.cont [8/16] 0.0, 128
    %3378 = vxpose.xlu0.b32.cont [9/16] 0.0, 128
    %3379 = vxpose.xlu0.b32.cont [10/16] 0.0, 128
    %3380 = vxpose.xlu0.b32.cont [11/16] 0.0, 128
    %3381 = vxpose.xlu0.b32.cont [12/16] 0.0, 128
    %3382 = vxpose.xlu0.b32.cont [13/16] 0.0, 128
    %3383 = vxpose.xlu0.b32.cont [14/16] 0.0, 128
    %3384 = vxpose.xlu0.b32.cont [15/16] 0.0, 128
    %3385 = vxpose.xlu0.b32.end [16/16] 0.0, 128
    %v3386 = vpop.trf.xlu0
    %v3387 = vpop.trf.xlu0
    %v3388 = vpop.trf.xlu0
    %v3389 = vpop.trf.xlu0
    %v3390 = vpop.trf.xlu0
    %v3391 = vpop.trf.xlu0
    %v3392 = vpop.trf.xlu0
    %v3393 = vpop.trf.xlu0
    %v3394 = vpop.trf.xlu0
    %v3395 = vpop.trf.xlu0
    %v3396 = vpop.trf.xlu0
    %v3397 = vpop.trf.xlu0
    %v3398 = vpop.trf.xlu0
    %v3399 = vpop.trf.xlu0
    %v3400 = vpop.trf.xlu0
    %v3401 = vpop.trf.xlu0
    %3402 = vxpose.xlu0.b32.start [1/16] %v3301, 128
    %3403 = vxpose.xlu0.b32.cont [2/16] 0.0, 128
    %3404 = vxpose.xlu0.b32.cont [3/16] 0.0, 128
    %3405 = vxpose.xlu0.b32.cont [4/16] 0.0, 128
    %3406 = vxpose.xlu0.b32.cont [5/16] 0.0, 128
    %3407 = vxpose.xlu0.b32.cont [6/16] 0.0, 128
    %3408 = vxpose.xlu0.b32.cont [7/16] 0.0, 128
    %3409 = vxpose.xlu0.b32.cont [8/16] 0.0, 128
    %3410 = vxpose.xlu0.b32.cont [9/16] 0.0, 128
    %3411 = vxpose.xlu0.b32.cont [10/16] 0.0, 128
    %3412 = vxpose.xlu0.b32.cont [11/16] 0.0, 128
    %3413 = vxpose.xlu0.b32.cont [12/16] 0.0, 128
    %3414 = vxpose.xlu0.b32.cont [13/16] 0.0, 128
    %3415 = vxpose.xlu0.b32.cont [14/16] 0.0, 128
    %3416 = vxpose.xlu0.b32.cont [15/16] 0.0, 128
    %3417 = vxpose.xlu0.b32.end [16/16] 0.0, 128
    %v3418 = vpop.trf.xlu0
    %v3419 = vpop.trf.xlu0
    %v3420 = vpop.trf.xlu0
    %v3421 = vpop.trf.xlu0
    %v3422 = vpop.trf.xlu0
    %v3423 = vpop.trf.xlu0
    %v3424 = vpop.trf.xlu0
    %v3425 = vpop.trf.xlu0
    %v3426 = vpop.trf.xlu0
    %v3427 = vpop.trf.xlu0
    %v3428 = vpop.trf.xlu0
    %v3429 = vpop.trf.xlu0
    %v3430 = vpop.trf.xlu0
    %v3431 = vpop.trf.xlu0
    %v3432 = vpop.trf.xlu0
    %v3433 = vpop.trf.xlu0
    %3434 = vxpose.xlu0.b32.start [1/16] %v3302, 128
    %3435 = vxpose.xlu0.b32.cont [2/16] 0.0, 128
    %3436 = vxpose.xlu0.b32.cont [3/16] 0.0, 128
    %3437 = vxpose.xlu0.b32.cont [4/16] 0.0, 128
    %3438 = vxpose.xlu0.b32.cont [5/16] 0.0, 128
    %3439 = vxpose.xlu0.b32.cont [6/16] 0.0, 128
    %3440 = vxpose.xlu0.b32.cont [7/16] 0.0, 128
    %3441 = vxpose.xlu0.b32.cont [8/16] 0.0, 128
    %3442 = vxpose.xlu0.b32.cont [9/16] 0.0, 128
    %3443 = vxpose.xlu0.b32.cont [10/16] 0.0, 128
    %3444 = vxpose.xlu0.b32.cont [11/16] 0.0, 128
    %3445 = vxpose.xlu0.b32.cont [12/16] 0.0, 128
    %3446 = vxpose.xlu0.b32.cont [13/16] 0.0, 128
    %3447 = vxpose.xlu0.b32.cont [14/16] 0.0, 128
    %3448 = vxpose.xlu0.b32.cont [15/16] 0.0, 128
    %3449 = vxpose.xlu0.b32.end [16/16] 0.0, 128
    %v3450 = vpop.trf.xlu0
    %v3451 = vpop.trf.xlu0
    %v3452 = vpop.trf.xlu0
    %v3453 = vpop.trf.xlu0
    %v3454 = vpop.trf.xlu0
    %v3455 = vpop.trf.xlu0
    %v3456 = vpop.trf.xlu0
    %v3457 = vpop.trf.xlu0
    %v3458 = vpop.trf.xlu0
    %v3459 = vpop.trf.xlu0
    %v3460 = vpop.trf.xlu0
    %v3461 = vpop.trf.xlu0
    %v3462 = vpop.trf.xlu0
    %v3463 = vpop.trf.xlu0
    %v3464 = vpop.trf.xlu0
    %v3465 = vpop.trf.xlu0
    %3466 = vxpose.xlu0.b32.start [1/16] %v3303, 128
    %3467 = vxpose.xlu0.b32.cont [2/16] 0.0, 128
    %3468 = vxpose.xlu0.b32.cont [3/16] 0.0, 128
    %3469 = vxpose.xlu0.b32.cont [4/16] 0.0, 128
    %3470 = vxpose.xlu0.b32.cont [5/16] 0.0, 128
    %3471 = vxpose.xlu0.b32.cont [6/16] 0.0, 128
    %3472 = vxpose.xlu0.b32.cont [7/16] 0.0, 128
    %3473 = vxpose.xlu0.b32.cont [8/16] 0.0, 128
    %3474 = vxpose.xlu0.b32.cont [9/16] 0.0, 128
    %3475 = vxpose.xlu0.b32.cont [10/16] 0.0, 128
    %3476 = vxpose.xlu0.b32.cont [11/16] 0.0, 128
    %3477 = vxpose.xlu0.b32.cont [12/16] 0.0, 128
    %3478 = vxpose.xlu0.b32.cont [13/16] 0.0, 128
    %3479 = vxpose.xlu0.b32.cont [14/16] 0.0, 128
    %3480 = vxpose.xlu0.b32.cont [15/16] 0.0, 128
    %3481 = vxpose.xlu0.b32.end [16/16] 0.0, 128
    %v3482 = vpop.trf.xlu0
    %v3483 = vpop.trf.xlu0
    %v3484 = vpop.trf.xlu0
    %v3485 = vpop.trf.xlu0
    %v3486 = vpop.trf.xlu0
    %v3487 = vpop.trf.xlu0
    %v3488 = vpop.trf.xlu0
    %v3489 = vpop.trf.xlu0
    %v3490 = vpop.trf.xlu0
    %v3491 = vpop.trf.xlu0
    %v3492 = vpop.trf.xlu0
    %v3493 = vpop.trf.xlu0
    %v3494 = vpop.trf.xlu0
    %v3495 = vpop.trf.xlu0
    %v3496 = vpop.trf.xlu0
    %v3497 = vpop.trf.xlu0
    %3498 = vxpose.xlu0.b32.start [1/16] %v3304, 128
    %3499 = vxpose.xlu0.b32.cont [2/16] 0.0, 128
    %3500 = vxpose.xlu0.b32.cont [3/16] 0.0, 128
    %3501 = vxpose.xlu0.b32.cont [4/16] 0.0, 128
    %3502 = vxpose.xlu0.b32.cont [5/16] 0.0, 128
    %3503 = vxpose.xlu0.b32.cont [6/16] 0.0, 128
    %3504 = vxpose.xlu0.b32.cont [7/16] 0.0, 128
    %3505 = vxpose.xlu0.b32.cont [8/16] 0.0, 128
    %3506 = vxpose.xlu0.b32.cont [9/16] 0.0, 128
    %3507 = vxpose.xlu0.b32.cont [10/16] 0.0, 128
    %3508 = vxpose.xlu0.b32.cont [11/16] 0.0, 128
    %3509 = vxpose.xlu0.b32.cont [12/16] 0.0, 128
    %3510 = vxpose.xlu0.b32.cont [13/16] 0.0, 128
    %3511 = vxpose.xlu0.b32.cont [14/16] 0.0, 128
    %3512 = vxpose.xlu0.b32.cont [15/16] 0.0, 128
    %3513 = vxpose.xlu0.b32.end [16/16] 0.0, 128
    %v3514 = vpop.trf.xlu0
    %v3515 = vpop.trf.xlu0
    %v3516 = vpop.trf.xlu0
    %v3517 = vpop.trf.xlu0
    %v3518 = vpop.trf.xlu0
    %v3519 = vpop.trf.xlu0
    %v3520 = vpop.trf.xlu0
    %v3521 = vpop.trf.xlu0
    %v3522 = vpop.trf.xlu0
    %v3523 = vpop.trf.xlu0
    %v3524 = vpop.trf.xlu0
    %v3525 = vpop.trf.xlu0
    %v3526 = vpop.trf.xlu0
    %v3527 = vpop.trf.xlu0
    %v3528 = vpop.trf.xlu0
    %v3529 = vpop.trf.xlu0
    %3530 = vxpose.xlu0.b32.start [1/16] %v3305, 128
    %3531 = vxpose.xlu0.b32.cont [2/16] 0.0, 128
    %3532 = vxpose.xlu0.b32.cont [3/16] 0.0, 128
    %3533 = vxpose.xlu0.b32.cont [4/16] 0.0, 128
    %3534 = vxpose.xlu0.b32.cont [5/16] 0.0, 128
    %3535 = vxpose.xlu0.b32.cont [6/16] 0.0, 128
    %3536 = vxpose.xlu0.b32.cont [7/16] 0.0, 128
    %3537 = vxpose.xlu0.b32.cont [8/16] 0.0, 128
    %3538 = vxpose.xlu0.b32.cont [9/16] 0.0, 128
    %3539 = vxpose.xlu0.b32.cont [10/16] 0.0, 128
    %3540 = vxpose.xlu0.b32.cont [11/16] 0.0, 128
    %3541 = vxpose.xlu0.b32.cont [12/16] 0.0, 128
    %3542 = vxpose.xlu0.b32.cont [13/16] 0.0, 128
    %3543 = vxpose.xlu0.b32.cont [14/16] 0.0, 128
    %3544 = vxpose.xlu0.b32.cont [15/16] 0.0, 128
    %3545 = vxpose.xlu0.b32.end [16/16] 0.0, 128
    %v3546 = vpop.trf.xlu0
    %v3547 = vpop.trf.xlu0
    %v3548 = vpop.trf.xlu0
    %v3549 = vpop.trf.xlu0
    %v3550 = vpop.trf.xlu0
    %v3551 = vpop.trf.xlu0
    %v3552 = vpop.trf.xlu0
    %v3553 = vpop.trf.xlu0
    %v3554 = vpop.trf.xlu0
    %v3555 = vpop.trf.xlu0
    %v3556 = vpop.trf.xlu0
    %v3557 = vpop.trf.xlu0
    %v3558 = vpop.trf.xlu0
    %v3559 = vpop.trf.xlu0
    %v3560 = vpop.trf.xlu0
    %v3561 = vpop.trf.xlu0
    %v3562 = vpack.c.bf16 %v3323, %v3322
    %v3563 = vpack.c.bf16 %v3325, %v3324
    %v3564 = vpack.c.bf16 %v3355, %v3354
    %v3565 = vpack.c.bf16 %v3357, %v3356
    %v3566 = vpack.c.bf16 %v3387, %v3386
    %v3567 = vpack.c.bf16 %v3389, %v3388
    %v3568 = vpack.c.bf16 %v3419, %v3418
    %v3569 = vpack.c.bf16 %v3421, %v3420
    %v3570 = vpack.c.bf16 %v3451, %v3450
    %v3571 = vpack.c.bf16 %v3453, %v3452
    %v3572 = vpack.c.bf16 %v3483, %v3482
    %v3573 = vpack.c.bf16 %v3485, %v3484
    %v3574 = vpack.c.bf16 %v3515, %v3514
    %v3575 = vpack.c.bf16 %v3517, %v3516
    %v3576 = vpack.c.bf16 %v3547, %v3546
    %v3577 = vpack.c.bf16 %v3549, %v3548
    %v3578 = vld [vmem:[#allocation2 + $0x68] sm:$0xf]
    %v3579 = vld [vmem:[#allocation5 + $0x68] sm:$0x1]
    %v3580 = vlaneseq
    %v3581 = vshrl.u32 %v3580, 7
    %v3582 = vsub.s32 0, %v3581
    %v3583 = vrot.slane %v3579, %v3582
    %v3585 = vsel %vm66, %v3562, 0
    %v3588 = vsel %vm66, %v3563, 0
    %v3591 = vsel %vm66, %v3564, 0
    %v3594 = vsel %vm66, %v3565, 0
    %v3597 = vsel %vm66, %v3566, 0
    %v3600 = vsel %vm66, %v3567, 0
    %v3603 = vsel %vm66, %v3568, 0
    %v3606 = vsel %vm66, %v3569, 0
    %v3609 = vsel %vm66, %v3570, 0
    %v3612 = vsel %vm66, %v3571, 0
    %v3615 = vsel %vm66, %v3572, 0
    %v3618 = vsel %vm66, %v3573, 0
    %v3621 = vsel %vm66, %v3574, 0
    %v3624 = vsel %vm66, %v3575, 0
    %v3627 = vsel %vm66, %v3576, 0
    %v3630 = vsel %vm66, %v3577, 0
    %v3633 = vsel %vm498, %v3578, 0
    %3635 = vmatprep.subr.bf16.mxu0 0
    %3636 = vmatpush1.bf16.msra.mxu0 %v3633
    %3637 = vmatprep.subr.bf16.mxu0 0
    %3638 = vmatpush1.bf16.msra.mxu0 0
    %3639 = vmatprep.subr.bf16.mxu0 0
    %3640 = vmatpush1.bf16.msra.mxu0 0
    %3641 = vmatprep.subr.bf16.mxu0 0
    %3642 = vmatpush1.bf16.msra.mxu0 0
    %3643 = vmatprep.subr.bf16.mxu0 0
    %3644 = vmatpush1.bf16.msra.mxu0 0
    %3645 = vmatprep.subr.bf16.mxu0 0
    %3646 = vmatpush1.bf16.msra.mxu0 0
    %3647 = vmatprep.subr.bf16.mxu0 0
    %3648 = vmatpush1.bf16.msra.mxu0 0
    %3649 = vmatprep.subr.bf16.mxu0 0
    %3650 = vmatpush1.bf16.msra.mxu0 0
    %3651 = vmatprep.subr.bf16.mxu0 0
    %3652 = vmatpush1.bf16.msra.mxu0 0
    %3653 = vmatprep.subr.bf16.mxu0 0
    %3654 = vmatpush1.bf16.msra.mxu0 0
    %3655 = vmatprep.subr.bf16.mxu0 0
    %3656 = vmatpush1.bf16.msra.mxu0 0
    %3657 = vmatprep.subr.bf16.mxu0 0
    %3658 = vmatpush1.bf16.msra.mxu0 0
    %3659 = vmatprep.subr.bf16.mxu0 0
    %3660 = vmatpush1.bf16.msra.mxu0 0
    %3661 = vmatprep.subr.bf16.mxu0 0
    %3662 = vmatpush1.bf16.msra.mxu0 0
    %3663 = vmatprep.subr.bf16.mxu0 0
    %3664 = vmatpush1.bf16.msra.mxu0 0
    %3665 = vmatprep.subr.bf16.mxu0 0
    %3666 = vmatpush1.bf16.msra.mxu0 0
    %3667 = vmatprep.mubr.bf16.mxu0 0
    %3668 = vmatmul.mubr.bf16.gmra.mrb[0].mxu0 %v3585
    %v3669 = vpop.f32.mrb[0].mxu0
    %v3670 = vadd.f32 %v3583, %v3669
    %v3671 = vpop.f32.mrb[0].mxu0
    %v3672 = vpop.f32.mrb[0].mxu0
    %v3673 = vadd.f32 %v3583, %v3672
    %v3674 = vpop.f32.mrb[0].mxu0
    %3675 = vmatprep.mubr.bf16.mxu0 0
    %3676 = vmatmul.mubr.bf16.gmra.mrb[0].mxu0 %v3588
    %v3677 = vpop.f32.mrb[0].mxu0
    %v3678 = vadd.f32 %v3583, %v3677
    %v3679 = vpop.f32.mrb[0].mxu0
    %v3680 = vpop.f32.mrb[0].mxu0
    %v3681 = vadd.f32 %v3583, %v3680
    %v3682 = vpop.f32.mrb[0].mxu0
    %3683 = vmatprep.mubr.bf16.mxu0 0
    %3684 = vmatmul.mubr.bf16.gmra.mrb[0].mxu0 %v3591
    %v3685 = vpop.f32.mrb[0].mxu0
    %v3686 = vadd.f32 %v3583, %v3685
    %v3687 = vpop.f32.mrb[0].mxu0
    %v3688 = vpop.f32.mrb[0].mxu0
    %v3689 = vadd.f32 %v3583, %v3688
    %v3690 = vpop.f32.mrb[0].mxu0
    %3691 = vmatprep.mubr.bf16.mxu0 0
    %3692 = vmatmul.mubr.bf16.gmra.mrb[0].mxu0 %v3594
    %v3693 = vpop.f32.mrb[0].mxu0
    %v3694 = vadd.f32 %v3583, %v3693
    %v3695 = vpop.f32.mrb[0].mxu0
    %v3696 = vpop.f32.mrb[0].mxu0
    %v3697 = vadd.f32 %v3583, %v3696
    %v3698 = vpop.f32.mrb[0].mxu0
    %3699 = vmatprep.mubr.bf16.mxu0 0
    %3700 = vmatmul.mubr.bf16.gmra.mrb[0].mxu0 %v3597
    %v3701 = vpop.f32.mrb[0].mxu0
    %v3702 = vadd.f32 %v3583, %v3701
    %v3703 = vpop.f32.mrb[0].mxu0
    %v3704 = vpop.f32.mrb[0].mxu0
    %v3705 = vadd.f32 %v3583, %v3704
    %v3706 = vpop.f32.mrb[0].mxu0
    %3707 = vmatprep.mubr.bf16.mxu0 0
    %3708 = vmatmul.mubr.bf16.gmra.mrb[0].mxu0 %v3600
    %v3709 = vpop.f32.mrb[0].mxu0
    %v3710 = vadd.f32 %v3583, %v3709
    %v3711 = vpop.f32.mrb[0].mxu0
    %v3712 = vpop.f32.mrb[0].mxu0
    %v3713 = vadd.f32 %v3583, %v3712
    %v3714 = vpop.f32.mrb[0].mxu0
    %3715 = vmatprep.mubr.bf16.mxu0 0
    %3716 = vmatmul.mubr.bf16.gmra.mrb[0].mxu0 %v3603
    %v3717 = vpop.f32.mrb[0].mxu0
    %v3718 = vadd.f32 %v3583, %v3717
    %v3719 = vpop.f32.mrb[0].mxu0
    %v3720 = vpop.f32.mrb[0].mxu0
    %v3721 = vadd.f32 %v3583, %v3720
    %v3722 = vpop.f32.mrb[0].mxu0
    %3723 = vmatprep.mubr.bf16.mxu0 0
    %3724 = vmatmul.mubr.bf16.gmra.mrb[0].mxu0 %v3606
    %v3725 = vpop.f32.mrb[0].mxu0
    %v3726 = vadd.f32 %v3583, %v3725
    %v3727 = vpop.f32.mrb[0].mxu0
    %v3728 = vpop.f32.mrb[0].mxu0
    %v3729 = vadd.f32 %v3583, %v3728
    %v3730 = vpop.f32.mrb[0].mxu0
    %3731 = vmatprep.mubr.bf16.mxu0 0
    %3732 = vmatmul.mubr.bf16.gmra.mrb[0].mxu0 %v3609
    %v3733 = vpop.f32.mrb[0].mxu0
    %v3734 = vadd.f32 %v3583, %v3733
    %v3735 = vpop.f32.mrb[0].mxu0
    %v3736 = vpop.f32.mrb[0].mxu0
    %v3737 = vadd.f32 %v3583, %v3736
    %v3738 = vpop.f32.mrb[0].mxu0
    %3739 = vmatprep.mubr.bf16.mxu0 0
    %3740 = vmatmul.mubr.bf16.gmra.mrb[0].mxu0 %v3612
    %v3741 = vpop.f32.mrb[0].mxu0
    %v3742 = vadd.f32 %v3583, %v3741
    %v3743 = vpop.f32.mrb[0].mxu0
    %v3744 = vpop.f32.mrb[0].mxu0
    %v3745 = vadd.f32 %v3583, %v3744
    %v3746 = vpop.f32.mrb[0].mxu0
    %3747 = vmatprep.mubr.bf16.mxu0 0
    %3748 = vmatmul.mubr.bf16.gmra.mrb[0].mxu0 %v3615
    %v3749 = vpop.f32.mrb[0].mxu0
    %v3750 = vadd.f32 %v3583, %v3749
    %v3751 = vpop.f32.mrb[0].mxu0
    %v3752 = vpop.f32.mrb[0].mxu0
    %v3753 = vadd.f32 %v3583, %v3752
    %v3754 = vpop.f32.mrb[0].mxu0
    %3755 = vmatprep.mubr.bf16.mxu0 0
    %3756 = vmatmul.mubr.bf16.gmra.mrb[0].mxu0 %v3618
    %v3757 = vpop.f32.mrb[0].mxu0
    %v3758 = vadd.f32 %v3583, %v3757
    %v3759 = vpop.f32.mrb[0].mxu0
    %v3760 = vpop.f32.mrb[0].mxu0
    %v3761 = vadd.f32 %v3583, %v3760
    %v3762 = vpop.f32.mrb[0].mxu0
    %3763 = vmatprep.mubr.bf16.mxu0 0
    %3764 = vmatmul.mubr.bf16.gmra.mrb[0].mxu0 %v3621
    %v3765 = vpop.f32.mrb[0].mxu0
    %v3766 = vadd.f32 %v3583, %v3765
    %v3767 = vpop.f32.mrb[0].mxu0
    %v3768 = vpop.f32.mrb[0].mxu0
    %v3769 = vadd.f32 %v3583, %v3768
    %v3770 = vpop.f32.mrb[0].mxu0
    %3771 = vmatprep.mubr.bf16.mxu0 0
    %3772 = vmatmul.mubr.bf16.gmra.mrb[0].mxu0 %v3624
    %v3773 = vpop.f32.mrb[0].mxu0
    %v3774 = vadd.f32 %v3583, %v3773
    %v3775 = vpop.f32.mrb[0].mxu0
    %v3776 = vpop.f32.mrb[0].mxu0
    %v3777 = vadd.f32 %v3583, %v3776
    %v3778 = vpop.f32.mrb[0].mxu0
    %3779 = vmatprep.mubr.bf16.mxu0 0
    %3780 = vmatmul.mubr.bf16.gmra.mrb[0].mxu0 %v3627
    %v3781 = vpop.f32.mrb[0].mxu0
    %v3782 = vadd.f32 %v3583, %v3781
    %v3783 = vpop.f32.mrb[0].mxu0
    %v3784 = vpop.f32.mrb[0].mxu0
    %v3785 = vadd.f32 %v3583, %v3784
    %v3786 = vpop.f32.mrb[0].mxu0
    %3787 = vmatprep.mubr.bf16.mxu0 0
    %3788 = vmatmul.mubr.bf16.gmra.mrb[0].mxu0 %v3630
    %v3789 = vpop.f32.mrb[0].mxu0
    %v3790 = vadd.f32 %v3583, %v3789
    %v3791 = vpop.f32.mrb[0].mxu0
    %v3792 = vpop.f32.mrb[0].mxu0
    %v3793 = vadd.f32 %v3583, %v3792
    %v3794 = vpop.f32.mrb[0].mxu0
    %3795 = vdwg.mxu0
    %v3796 = vmul.f32 %v3670, 0.5
    %v3797 = vmul.f32 %v3673, 0.5
    %v3798 = vmul.f32 %v3678, 0.5
    %v3799 = vmul.f32 %v3681, 0.5
    %v3800 = vmul.f32 %v3686, 0.5
    %v3801 = vmul.f32 %v3689, 0.5
    %v3802 = vmul.f32 %v3694, 0.5
    %v3803 = vmul.f32 %v3697, 0.5
    %v3804 = vmul.f32 %v3702, 0.5
    %v3805 = vmul.f32 %v3705, 0.5
    %v3806 = vmul.f32 %v3710, 0.5
    %v3807 = vmul.f32 %v3713, 0.5
    %v3808 = vmul.f32 %v3718, 0.5
    %v3809 = vmul.f32 %v3721, 0.5
    %v3810 = vmul.f32 %v3726, 0.5
    %v3811 = vmul.f32 %v3729, 0.5
    %v3812 = vmul.f32 %v3734, 0.5
    %v3813 = vmul.f32 %v3737, 0.5
    %v3814 = vmul.f32 %v3742, 0.5
    %v3815 = vmul.f32 %v3745, 0.5
    %v3816 = vmul.f32 %v3750, 0.5
    %v3817 = vmul.f32 %v3753, 0.5
    %v3818 = vmul.f32 %v3758, 0.5
    %v3819 = vmul.f32 %v3761, 0.5
    %v3820 = vmul.f32 %v3766, 0.5
    %v3821 = vmul.f32 %v3769, 0.5
    %v3822 = vmul.f32 %v3774, 0.5
    %v3823 = vmul.f32 %v3777, 0.5
    %v3824 = vmul.f32 %v3782, 0.5
    %v3825 = vmul.f32 %v3785, 0.5
    %v3826 = vmul.f32 %v3790, 0.5
    %v3827 = vmul.f32 %v3793, 0.5
    %v3828 = vmul.f32 %v3670, %v1277
    %v3829 = vmul.f32 %v3673, %v1277
    %v3830 = vmul.f32 %v3678, %v1277
    %v3831 = vmul.f32 %v3681, %v1277
    %v3832 = vmul.f32 %v3686, %v1277
    %v3833 = vmul.f32 %v3689, %v1277
    %v3834 = vmul.f32 %v3694, %v1277
    %v3835 = vmul.f32 %v3697, %v1277
    %v3836 = vmul.f32 %v3702, %v1277
    %v3837 = vmul.f32 %v3705, %v1277
    %v3838 = vmul.f32 %v3710, %v1277
    %v3839 = vmul.f32 %v3713, %v1277
    %v3840 = vmul.f32 %v3718, %v1277
    %v3841 = vmul.f32 %v3721, %v1277
    %v3842 = vmul.f32 %v3726, %v1277
    %v3843 = vmul.f32 %v3729, %v1277
    %v3844 = vmul.f32 %v3734, %v1277
    %v3845 = vmul.f32 %v3737, %v1277
    %v3846 = vmul.f32 %v3742, %v1277
    %v3847 = vmul.f32 %v3745, %v1277
    %v3848 = vmul.f32 %v3750, %v1277
    %v3849 = vmul.f32 %v3753, %v1277
    %v3850 = vmul.f32 %v3758, %v1277
    %v3851 = vmul.f32 %v3761, %v1277
    %v3852 = vmul.f32 %v3766, %v1277
    %v3853 = vmul.f32 %v3769, %v1277
    %v3854 = vmul.f32 %v3774, %v1277
    %v3855 = vmul.f32 %v3777, %v1277
    %v3856 = vmul.f32 %v3782, %v1277
    %v3857 = vmul.f32 %v3785, %v1277
    %v3858 = vmul.f32 %v3790, %v1277
    %v3859 = vmul.f32 %v3793, %v1277
    %v3860 = verf.f32.pop %v3828
    %v3861 = verf.f32.pop %v3829
    %v3862 = verf.f32.pop %v3830
    %v3863 = verf.f32.pop %v3831
    %v3864 = verf.f32.pop %v3832
    %v3865 = verf.f32.pop %v3833
    %v3866 = verf.f32.pop %v3834
    %v3867 = verf.f32.pop %v3835
    %v3868 = verf.f32.pop %v3836
    %v3869 = verf.f32.pop %v3837
    %v3870 = verf.f32.pop %v3838
    %v3871 = verf.f32.pop %v3839
    %v3872 = verf.f32.pop %v3840
    %v3873 = verf.f32.pop %v3841
    %v3874 = verf.f32.pop %v3842
    %v3875 = verf.f32.pop %v3843
    %v3876 = verf.f32.pop %v3844
    %v3877 = verf.f32.pop %v3845
    %v3878 = verf.f32.pop %v3846
    %v3879 = verf.f32.pop %v3847
    %v3880 = verf.f32.pop %v3848
    %v3881 = verf.f32.pop %v3849
    %v3882 = verf.f32.pop %v3850
    %v3883 = verf.f32.pop %v3851
    %v3884 = verf.f32.pop %v3852
    %v3885 = verf.f32.pop %v3853
    %v3886 = verf.f32.pop %v3854
    %v3887 = verf.f32.pop %v3855
    %v3888 = verf.f32.pop %v3856
    %v3889 = verf.f32.pop %v3857
    %v3890 = verf.f32.pop %v3858
    %v3891 = verf.f32.pop %v3859
    %v3892 = vadd.f32 %v3860, 1.0
    %v3893 = vadd.f32 %v3861, 1.0
    %v3894 = vadd.f32 %v3862, 1.0
    %v3895 = vadd.f32 %v3863, 1.0
    %v3896 = vadd.f32 %v3864, 1.0
    %v3897 = vadd.f32 %v3865, 1.0
    %v3898 = vadd.f32 %v3866, 1.0
    %v3899 = vadd.f32 %v3867, 1.0
    %v3900 = vadd.f32 %v3868, 1.0
    %v3901 = vadd.f32 %v3869, 1.0
    %v3902 = vadd.f32 %v3870, 1.0
    %v3903 = vadd.f32 %v3871, 1.0
    %v3904 = vadd.f32 %v3872, 1.0
    %v3905 = vadd.f32 %v3873, 1.0
    %v3906 = vadd.f32 %v3874, 1.0
    %v3907 = vadd.f32 %v3875, 1.0
    %v3908 = vadd.f32 %v3876, 1.0
    %v3909 = vadd.f32 %v3877, 1.0
    %v3910 = vadd.f32 %v3878, 1.0
    %v3911 = vadd.f32 %v3879, 1.0
    %v3912 = vadd.f32 %v3880, 1.0
    %v3913 = vadd.f32 %v3881, 1.0
    %v3914 = vadd.f32 %v3882, 1.0
    %v3915 = vadd.f32 %v3883, 1.0
    %v3916 = vadd.f32 %v3884, 1.0
    %v3917 = vadd.f32 %v3885, 1.0
    %v3918 = vadd.f32 %v3886, 1.0
    %v3919 = vadd.f32 %v3887, 1.0
    %v3920 = vadd.f32 %v3888, 1.0
    %v3921 = vadd.f32 %v3889, 1.0
    %v3922 = vadd.f32 %v3890, 1.0
    %v3923 = vadd.f32 %v3891, 1.0
    %v3924 = vmul.f32 %v3796, %v3892
    %v3925 = vmul.f32 %v3797, %v3893
    %v3926 = vmul.f32 %v3798, %v3894
    %v3927 = vmul.f32 %v3799, %v3895
    %v3928 = vmul.f32 %v3800, %v3896
    %v3929 = vmul.f32 %v3801, %v3897
    %v3930 = vmul.f32 %v3802, %v3898
    %v3931 = vmul.f32 %v3803, %v3899
    %v3932 = vmul.f32 %v3804, %v3900
    %v3933 = vmul.f32 %v3805, %v3901
    %v3934 = vmul.f32 %v3806, %v3902
    %v3935 = vmul.f32 %v3807, %v3903
    %v3936 = vmul.f32 %v3808, %v3904
    %v3937 = vmul.f32 %v3809, %v3905
    %v3938 = vmul.f32 %v3810, %v3906
    %v3939 = vmul.f32 %v3811, %v3907
    %v3940 = vmul.f32 %v3812, %v3908
    %v3941 = vmul.f32 %v3813, %v3909
    %v3942 = vmul.f32 %v3814, %v3910
    %v3943 = vmul.f32 %v3815, %v3911
    %v3944 = vmul.f32 %v3816, %v3912
    %v3945 = vmul.f32 %v3817, %v3913
    %v3946 = vmul.f32 %v3818, %v3914
    %v3947 = vmul.f32 %v3819, %v3915
    %v3948 = vmul.f32 %v3820, %v3916
    %v3949 = vmul.f32 %v3821, %v3917
    %v3950 = vmul.f32 %v3822, %v3918
    %v3951 = vmul.f32 %v3823, %v3919
    %v3952 = vmul.f32 %v3824, %v3920
    %v3953 = vmul.f32 %v3825, %v3921
    %v3954 = vmul.f32 %v3826, %v3922
    %v3955 = vmul.f32 %v3827, %v3923
    %v3956 = vpack.c.bf16 %v3925, %v3924
    %v3957 = vpack.c.bf16 %v3927, %v3926
    %v3958 = vpack.c.bf16 %v3929, %v3928
    %v3959 = vpack.c.bf16 %v3931, %v3930
    %v3960 = vpack.c.bf16 %v3933, %v3932
    %v3961 = vpack.c.bf16 %v3935, %v3934
    %v3962 = vpack.c.bf16 %v3937, %v3936
    %v3963 = vpack.c.bf16 %v3939, %v3938
    %v3964 = vpack.c.bf16 %v3941, %v3940
    %v3965 = vpack.c.bf16 %v3943, %v3942
    %v3966 = vpack.c.bf16 %v3945, %v3944
    %v3967 = vpack.c.bf16 %v3947, %v3946
    %v3968 = vpack.c.bf16 %v3949, %v3948
    %v3969 = vpack.c.bf16 %v3951, %v3950
    %v3970 = vpack.c.bf16 %v3953, %v3952
    %v3971 = vpack.c.bf16 %v3955, %v3954
    %v3972 = vld [vmem:[#allocation2 + $0x6c] sm:$0xf]
    %v3973 = vld [vmem:[#allocation2 + $0x70] sm:$0xf]
    %v3974 = vld [vmem:[#allocation5 + $0x70] sm:$0x1]
    %v3975 = vlaneseq
    %v3976 = vshrl.u32 %v3975, 7
    %v3977 = vsub.s32 0, %v3976
    %v3978 = vrot.slane %v3974, %v3977
    %v3981 = vunpack.c.l.b16 %v3972
    %v3982 = vunpack.c.l.b16 %v3973
    %v3983 = vpack.c.b16 %v3982, %v3981
    %v3986 = vsel %vm1435, %v3956, 0
    %v3989 = vsel %vm1435, %v3957, 0
    %v3992 = vsel %vm1435, %v3958, 0
    %v3995 = vsel %vm1435, %v3959, 0
    %v3998 = vsel %vm1435, %v3960, 0
    %v4001 = vsel %vm1435, %v3961, 0
    %v4004 = vsel %vm1435, %v3962, 0
    %v4007 = vsel %vm1435, %v3963, 0
    %v4010 = vsel %vm1435, %v3964, 0
    %v4013 = vsel %vm1435, %v3965, 0
    %v4016 = vsel %vm1435, %v3966, 0
    %v4019 = vsel %vm1435, %v3967, 0
    %v4022 = vsel %vm1435, %v3968, 0
    %v4025 = vsel %vm1435, %v3969, 0
    %v4028 = vsel %vm1435, %v3970, 0
    %v4031 = vsel %vm1435, %v3971, 0
    %4033 = vmatprep.subr.bf16.mxu0 0
    %4034 = vmatpush1.bf16.msra.mxu0 %v3983
    %4035 = vmatprep.subr.bf16.mxu0 0
    %4036 = vmatpush1.bf16.msra.mxu0 0
    %4037 = vmatprep.subr.bf16.mxu0 0
    %4038 = vmatpush1.bf16.msra.mxu0 0
    %4039 = vmatprep.subr.bf16.mxu0 0
    %4040 = vmatpush1.bf16.msra.mxu0 0
    %4041 = vmatprep.subr.bf16.mxu0 0
    %4042 = vmatpush1.bf16.msra.mxu0 0
    %4043 = vmatprep.subr.bf16.mxu0 0
    %4044 = vmatpush1.bf16.msra.mxu0 0
    %4045 = vmatprep.subr.bf16.mxu0 0
    %4046 = vmatpush1.bf16.msra.mxu0 0
    %4047 = vmatprep.subr.bf16.mxu0 0
    %4048 = vmatpush1.bf16.msra.mxu0 0
    %4049 = vmatprep.subr.bf16.mxu0 0
    %4050 = vmatpush1.bf16.msra.mxu0 0
    %4051 = vmatprep.subr.bf16.mxu0 0
    %4052 = vmatpush1.bf16.msra.mxu0 0
    %4053 = vmatprep.subr.bf16.mxu0 0
    %4054 = vmatpush1.bf16.msra.mxu0 0
    %4055 = vmatprep.subr.bf16.mxu0 0
    %4056 = vmatpush1.bf16.msra.mxu0 0
    %4057 = vmatprep.subr.bf16.mxu0 0
    %4058 = vmatpush1.bf16.msra.mxu0 0
    %4059 = vmatprep.subr.bf16.mxu0 0
    %4060 = vmatpush1.bf16.msra.mxu0 0
    %4061 = vmatprep.subr.bf16.mxu0 0
    %4062 = vmatpush1.bf16.msra.mxu0 0
    %4063 = vmatprep.subr.bf16.mxu0 0
    %4064 = vmatpush1.bf16.msra.mxu0 0
    %4065 = vmatprep.mubr.bf16.mxu0 0
    %4066 = vmatmul.mubr.bf16.gmra.mrb[0].mxu0 %v3986
    %v4067 = vpop.f32.mrb[0].mxu0
    %v4068 = vadd.f32 %v3978, %v4067
    %v4069 = vpop.f32.mrb[0].mxu0
    %v4070 = vpop.f32.mrb[0].mxu0
    %v4071 = vadd.f32 %v3978, %v4070
    %v4072 = vpop.f32.mrb[0].mxu0
    %4073 = vmatprep.mubr.bf16.mxu0 0
    %4074 = vmatmul.mubr.bf16.gmra.mrb[0].mxu0 %v3989
    %v4075 = vpop.f32.mrb[0].mxu0
    %v4076 = vadd.f32 %v3978, %v4075
    %v4077 = vpop.f32.mrb[0].mxu0
    %v4078 = vpop.f32.mrb[0].mxu0
    %v4079 = vadd.f32 %v3978, %v4078
    %v4080 = vpop.f32.mrb[0].mxu0
    %4081 = vmatprep.mubr.bf16.mxu0 0
    %4082 = vmatmul.mubr.bf16.gmra.mrb[0].mxu0 %v3992
    %v4083 = vpop.f32.mrb[0].mxu0
    %v4084 = vadd.f32 %v3978, %v4083
    %v4085 = vpop.f32.mrb[0].mxu0
    %v4086 = vpop.f32.mrb[0].mxu0
    %v4087 = vadd.f32 %v3978, %v4086
    %v4088 = vpop.f32.mrb[0].mxu0
    %4089 = vmatprep.mubr.bf16.mxu0 0
    %4090 = vmatmul.mubr.bf16.gmra.mrb[0].mxu0 %v3995
    %v4091 = vpop.f32.mrb[0].mxu0
    %v4092 = vadd.f32 %v3978, %v4091
    %v4093 = vpop.f32.mrb[0].mxu0
    %v4094 = vpop.f32.mrb[0].mxu0
    %v4095 = vadd.f32 %v3978, %v4094
    %v4096 = vpop.f32.mrb[0].mxu0
    %4097 = vmatprep.mubr.bf16.mxu0 0
    %4098 = vmatmul.mubr.bf16.gmra.mrb[0].mxu0 %v3998
    %v4099 = vpop.f32.mrb[0].mxu0
    %v4100 = vadd.f32 %v3978, %v4099
    %v4101 = vpop.f32.mrb[0].mxu0
    %v4102 = vpop.f32.mrb[0].mxu0
    %v4103 = vadd.f32 %v3978, %v4102
    %v4104 = vpop.f32.mrb[0].mxu0
    %4105 = vmatprep.mubr.bf16.mxu0 0
    %4106 = vmatmul.mubr.bf16.gmra.mrb[0].mxu0 %v4001
    %v4107 = vpop.f32.mrb[0].mxu0
    %v4108 = vadd.f32 %v3978, %v4107
    %v4109 = vpop.f32.mrb[0].mxu0
    %v4110 = vpop.f32.mrb[0].mxu0
    %v4111 = vadd.f32 %v3978, %v4110
    %v4112 = vpop.f32.mrb[0].mxu0
    %4113 = vmatprep.mubr.bf16.mxu0 0
    %4114 = vmatmul.mubr.bf16.gmra.mrb[0].mxu0 %v4004
    %v4115 = vpop.f32.mrb[0].mxu0
    %v4116 = vadd.f32 %v3978, %v4115
    %v4117 = vpop.f32.mrb[0].mxu0
    %v4118 = vpop.f32.mrb[0].mxu0
    %v4119 = vadd.f32 %v3978, %v4118
    %v4120 = vpop.f32.mrb[0].mxu0
    %4121 = vmatprep.mubr.bf16.mxu0 0
    %4122 = vmatmul.mubr.bf16.gmra.mrb[0].mxu0 %v4007
    %v4123 = vpop.f32.mrb[0].mxu0
    %v4124 = vadd.f32 %v3978, %v4123
    %v4125 = vpop.f32.mrb[0].mxu0
    %v4126 = vpop.f32.mrb[0].mxu0
    %v4127 = vadd.f32 %v3978, %v4126
    %v4128 = vpop.f32.mrb[0].mxu0
    %4129 = vmatprep.mubr.bf16.mxu0 0
    %4130 = vmatmul.mubr.bf16.gmra.mrb[0].mxu0 %v4010
    %v4131 = vpop.f32.mrb[0].mxu0
    %v4132 = vadd.f32 %v3978, %v4131
    %v4133 = vpop.f32.mrb[0].mxu0
    %v4134 = vpop.f32.mrb[0].mxu0
    %v4135 = vadd.f32 %v3978, %v4134
    %v4136 = vpop.f32.mrb[0].mxu0
    %4137 = vmatprep.mubr.bf16.mxu0 0
    %4138 = vmatmul.mubr.bf16.gmra.mrb[0].mxu0 %v4013
    %v4139 = vpop.f32.mrb[0].mxu0
    %v4140 = vadd.f32 %v3978, %v4139
    %v4141 = vpop.f32.mrb[0].mxu0
    %v4142 = vpop.f32.mrb[0].mxu0
    %v4143 = vadd.f32 %v3978, %v4142
    %v4144 = vpop.f32.mrb[0].mxu0
    %4145 = vmatprep.mubr.bf16.mxu0 0
    %4146 = vmatmul.mubr.bf16.gmra.mrb[0].mxu0 %v4016
    %v4147 = vpop.f32.mrb[0].mxu0
    %v4148 = vadd.f32 %v3978, %v4147
    %v4149 = vpop.f32.mrb[0].mxu0
    %v4150 = vpop.f32.mrb[0].mxu0
    %v4151 = vadd.f32 %v3978, %v4150
    %v4152 = vpop.f32.mrb[0].mxu0
    %4153 = vmatprep.mubr.bf16.mxu0 0
    %4154 = vmatmul.mubr.bf16.gmra.mrb[0].mxu0 %v4019
    %v4155 = vpop.f32.mrb[0].mxu0
    %v4156 = vadd.f32 %v3978, %v4155
    %v4157 = vpop.f32.mrb[0].mxu0
    %v4158 = vpop.f32.mrb[0].mxu0
    %v4159 = vadd.f32 %v3978, %v4158
    %v4160 = vpop.f32.mrb[0].mxu0
    %4161 = vmatprep.mubr.bf16.mxu0 0
    %4162 = vmatmul.mubr.bf16.gmra.mrb[0].mxu0 %v4022
    %v4163 = vpop.f32.mrb[0].mxu0
    %v4164 = vadd.f32 %v3978, %v4163
    %v4165 = vpop.f32.mrb[0].mxu0
    %v4166 = vpop.f32.mrb[0].mxu0
    %v4167 = vadd.f32 %v3978, %v4166
    %v4168 = vpop.f32.mrb[0].mxu0
    %4169 = vmatprep.mubr.bf16.mxu0 0
    %4170 = vmatmul.mubr.bf16.gmra.mrb[0].mxu0 %v4025
    %v4171 = vpop.f32.mrb[0].mxu0
    %v4172 = vadd.f32 %v3978, %v4171
    %v4173 = vpop.f32.mrb[0].mxu0
    %v4174 = vpop.f32.mrb[0].mxu0
    %v4175 = vadd.f32 %v3978, %v4174
    %v4176 = vpop.f32.mrb[0].mxu0
    %4177 = vmatprep.mubr.bf16.mxu0 0
    %4178 = vmatmul.mubr.bf16.gmra.mrb[0].mxu0 %v4028
    %v4179 = vpop.f32.mrb[0].mxu0
    %v4180 = vadd.f32 %v3978, %v4179
    %v4181 = vpop.f32.mrb[0].mxu0
    %v4182 = vpop.f32.mrb[0].mxu0
    %v4183 = vadd.f32 %v3978, %v4182
    %v4184 = vpop.f32.mrb[0].mxu0
    %4185 = vmatprep.mubr.bf16.mxu0 0
    %4186 = vmatmul.mubr.bf16.gmra.mrb[0].mxu0 %v4031
    %v4187 = vpop.f32.mrb[0].mxu0
    %v4188 = vadd.f32 %v3978, %v4187
    %v4189 = vpop.f32.mrb[0].mxu0
    %v4190 = vpop.f32.mrb[0].mxu0
    %v4191 = vadd.f32 %v3978, %v4190
    %v4192 = vpop.f32.mrb[0].mxu0
    %4193 = vdwg.mxu0
    %v4194 = vld [vmem:[#allocation2 + $0x74] sm:$0xf]
    %v4195 = vld [vmem:[#allocation2 + $0x78] sm:$0xf]
    %v4196 = vld [vmem:[#allocation5 + $0x78] sm:$0x1]
    %v4197 = vlaneseq
    %v4198 = vshrl.u32 %v4197, 7
    %v4199 = vsub.s32 0, %v4198
    %v4200 = vrot.slane %v4196, %v4199
    %v4203 = vunpack.c.l.b16 %v4194
    %v4204 = vunpack.c.l.b16 %v4195
    %v4205 = vpack.c.b16 %v4204, %v4203
    %4207 = vmatprep.subr.bf16.mxu0 0
    %4208 = vmatpush1.bf16.msra.mxu0 %v4205
    %4209 = vmatprep.subr.bf16.mxu0 0
    %4210 = vmatpush1.bf16.msra.mxu0 0
    %4211 = vmatprep.subr.bf16.mxu0 0
    %4212 = vmatpush1.bf16.msra.mxu0 0
    %4213 = vmatprep.subr.bf16.mxu0 0
    %4214 = vmatpush1.bf16.msra.mxu0 0
    %4215 = vmatprep.subr.bf16.mxu0 0
    %4216 = vmatpush1.bf16.msra.mxu0 0
    %4217 = vmatprep.subr.bf16.mxu0 0
    %4218 = vmatpush1.bf16.msra.mxu0 0
    %4219 = vmatprep.subr.bf16.mxu0 0
    %4220 = vmatpush1.bf16.msra.mxu0 0
    %4221 = vmatprep.subr.bf16.mxu0 0
    %4222 = vmatpush1.bf16.msra.mxu0 0
    %4223 = vmatprep.subr.bf16.mxu0 0
    %4224 = vmatpush1.bf16.msra.mxu0 0
    %4225 = vmatprep.subr.bf16.mxu0 0
    %4226 = vmatpush1.bf16.msra.mxu0 0
    %4227 = vmatprep.subr.bf16.mxu0 0
    %4228 = vmatpush1.bf16.msra.mxu0 0
    %4229 = vmatprep.subr.bf16.mxu0 0
    %4230 = vmatpush1.bf16.msra.mxu0 0
    %4231 = vmatprep.subr.bf16.mxu0 0
    %4232 = vmatpush1.bf16.msra.mxu0 0
    %4233 = vmatprep.subr.bf16.mxu0 0
    %4234 = vmatpush1.bf16.msra.mxu0 0
    %4235 = vmatprep.subr.bf16.mxu0 0
    %4236 = vmatpush1.bf16.msra.mxu0 0
    %4237 = vmatprep.subr.bf16.mxu0 0
    %4238 = vmatpush1.bf16.msra.mxu0 0
    %4239 = vmatprep.mubr.bf16.mxu0 0
    %4240 = vmatmul.mubr.bf16.gmra.mrb[0].mxu0 %v3986
    %v4241 = vpop.f32.mrb[0].mxu0
    %v4242 = vadd.f32 %v4200, %v4241
    %v4243 = vpop.f32.mrb[0].mxu0
    %v4244 = vpop.f32.mrb[0].mxu0
    %v4245 = vadd.f32 %v4200, %v4244
    %v4246 = vpop.f32.mrb[0].mxu0
    %4247 = vmatprep.mubr.bf16.mxu0 0
    %4248 = vmatmul.mubr.bf16.gmra.mrb[0].mxu0 %v3989
    %v4249 = vpop.f32.mrb[0].mxu0
    %v4250 = vadd.f32 %v4200, %v4249
    %v4251 = vpop.f32.mrb[0].mxu0
    %v4252 = vpop.f32.mrb[0].mxu0
    %v4253 = vadd.f32 %v4200, %v4252
    %v4254 = vpop.f32.mrb[0].mxu0
    %4255 = vmatprep.mubr.bf16.mxu0 0
    %4256 = vmatmul.mubr.bf16.gmra.mrb[0].mxu0 %v3992
    %v4257 = vpop.f32.mrb[0].mxu0
    %v4258 = vadd.f32 %v4200, %v4257
    %v4259 = vpop.f32.mrb[0].mxu0
    %v4260 = vpop.f32.mrb[0].mxu0
    %v4261 = vadd.f32 %v4200, %v4260
    %v4262 = vpop.f32.mrb[0].mxu0
    %4263 = vmatprep.mubr.bf16.mxu0 0
    %4264 = vmatmul.mubr.bf16.gmra.mrb[0].mxu0 %v3995
    %v4265 = vpop.f32.mrb[0].mxu0
    %v4266 = vadd.f32 %v4200, %v4265
    %v4267 = vpop.f32.mrb[0].mxu0
    %v4268 = vpop.f32.mrb[0].mxu0
    %v4269 = vadd.f32 %v4200, %v4268
    %v4270 = vpop.f32.mrb[0].mxu0
    %4271 = vmatprep.mubr.bf16.mxu0 0
    %4272 = vmatmul.mubr.bf16.gmra.mrb[0].mxu0 %v3998
    %v4273 = vpop.f32.mrb[0].mxu0
    %v4274 = vadd.f32 %v4200, %v4273
    %v4275 = vpop.f32.mrb[0].mxu0
    %v4276 = vpop.f32.mrb[0].mxu0
    %v4277 = vadd.f32 %v4200, %v4276
    %v4278 = vpop.f32.mrb[0].mxu0
    %4279 = vmatprep.mubr.bf16.mxu0 0
    %4280 = vmatmul.mubr.bf16.gmra.mrb[0].mxu0 %v4001
    %v4281 = vpop.f32.mrb[0].mxu0
    %v4282 = vadd.f32 %v4200, %v4281
    %v4283 = vpop.f32.mrb[0].mxu0
    %v4284 = vpop.f32.mrb[0].mxu0
    %v4285 = vadd.f32 %v4200, %v4284
    %v4286 = vpop.f32.mrb[0].mxu0
    %4287 = vmatprep.mubr.bf16.mxu0 0
    %4288 = vmatmul.mubr.bf16.gmra.mrb[0].mxu0 %v4004
    %v4289 = vpop.f32.mrb[0].mxu0
    %v4290 = vadd.f32 %v4200, %v4289
    %v4291 = vpop.f32.mrb[0].mxu0
    %v4292 = vpop.f32.mrb[0].mxu0
    %v4293 = vadd.f32 %v4200, %v4292
    %v4294 = vpop.f32.mrb[0].mxu0
    %4295 = vmatprep.mubr.bf16.mxu0 0
    %4296 = vmatmul.mubr.bf16.gmra.mrb[0].mxu0 %v4007
    %v4297 = vpop.f32.mrb[0].mxu0
    %v4298 = vadd.f32 %v4200, %v4297
    %v4299 = vpop.f32.mrb[0].mxu0
    %v4300 = vpop.f32.mrb[0].mxu0
    %v4301 = vadd.f32 %v4200, %v4300
    %v4302 = vpop.f32.mrb[0].mxu0
    %4303 = vmatprep.mubr.bf16.mxu0 0
    %4304 = vmatmul.mubr.bf16.gmra.mrb[0].mxu0 %v4010
    %v4305 = vpop.f32.mrb[0].mxu0
    %v4306 = vadd.f32 %v4200, %v4305
    %v4307 = vpop.f32.mrb[0].mxu0
    %v4308 = vpop.f32.mrb[0].mxu0
    %v4309 = vadd.f32 %v4200, %v4308
    %v4310 = vpop.f32.mrb[0].mxu0
    %4311 = vmatprep.mubr.bf16.mxu0 0
    %4312 = vmatmul.mubr.bf16.gmra.mrb[0].mxu0 %v4013
    %v4313 = vpop.f32.mrb[0].mxu0
    %v4314 = vadd.f32 %v4200, %v4313
    %v4315 = vpop.f32.mrb[0].mxu0
    %v4316 = vpop.f32.mrb[0].mxu0
    %v4317 = vadd.f32 %v4200, %v4316
    %v4318 = vpop.f32.mrb[0].mxu0
    %4319 = vmatprep.mubr.bf16.mxu0 0
    %4320 = vmatmul.mubr.bf16.gmra.mrb[0].mxu0 %v4016
    %v4321 = vpop.f32.mrb[0].mxu0
    %v4322 = vadd.f32 %v4200, %v4321
    %v4323 = vpop.f32.mrb[0].mxu0
    %v4324 = vpop.f32.mrb[0].mxu0
    %v4325 = vadd.f32 %v4200, %v4324
    %v4326 = vpop.f32.mrb[0].mxu0
    %4327 = vmatprep.mubr.bf16.mxu0 0
    %4328 = vmatmul.mubr.bf16.gmra.mrb[0].mxu0 %v4019
    %v4329 = vpop.f32.mrb[0].mxu0
    %v4330 = vadd.f32 %v4200, %v4329
    %v4331 = vpop.f32.mrb[0].mxu0
    %v4332 = vpop.f32.mrb[0].mxu0
    %v4333 = vadd.f32 %v4200, %v4332
    %v4334 = vpop.f32.mrb[0].mxu0
    %4335 = vmatprep.mubr.bf16.mxu0 0
    %4336 = vmatmul.mubr.bf16.gmra.mrb[0].mxu0 %v4022
    %v4337 = vpop.f32.mrb[0].mxu0
    %v4338 = vadd.f32 %v4200, %v4337
    %v4339 = vpop.f32.mrb[0].mxu0
    %v4340 = vpop.f32.mrb[0].mxu0
    %v4341 = vadd.f32 %v4200, %v4340
    %v4342 = vpop.f32.mrb[0].mxu0
    %4343 = vmatprep.mubr.bf16.mxu0 0
    %4344 = vmatmul.mubr.bf16.gmra.mrb[0].mxu0 %v4025
    %v4345 = vpop.f32.mrb[0].mxu0
    %v4346 = vadd.f32 %v4200, %v4345
    %v4347 = vpop.f32.mrb[0].mxu0
    %v4348 = vpop.f32.mrb[0].mxu0
    %v4349 = vadd.f32 %v4200, %v4348
    %v4350 = vpop.f32.mrb[0].mxu0
    %4351 = vmatprep.mubr.bf16.mxu0 0
    %4352 = vmatmul.mubr.bf16.gmra.mrb[0].mxu0 %v4028
    %v4353 = vpop.f32.mrb[0].mxu0
    %v4354 = vadd.f32 %v4200, %v4353
    %v4355 = vpop.f32.mrb[0].mxu0
    %v4356 = vpop.f32.mrb[0].mxu0
    %v4357 = vadd.f32 %v4200, %v4356
    %v4358 = vpop.f32.mrb[0].mxu0
    %4359 = vmatprep.mubr.bf16.mxu0 0
    %4360 = vmatmul.mubr.bf16.gmra.mrb[0].mxu0 %v4031
    %v4361 = vpop.f32.mrb[0].mxu0
    %v4362 = vadd.f32 %v4200, %v4361
    %v4363 = vpop.f32.mrb[0].mxu0
    %v4364 = vpop.f32.mrb[0].mxu0
    %v4365 = vadd.f32 %v4200, %v4364
    %v4366 = vpop.f32.mrb[0].mxu0
    %4367 = vdwg.mxu0
    %v4368 = vsel %vm66, %v4242, -inf
    %4369 = vmax.xlane.f32.xlu0 %v4368
    %v4370 = vpop.xlane.xlu0 %4369
    %v4371 = vsel %vm66, %v4245, -inf
    %4372 = vmax.xlane.f32.xlu0 %v4371
    %v4373 = vpop.xlane.xlu0 %4372
    %v4374 = vsel %vm66, %v4250, -inf
    %4375 = vmax.xlane.f32.xlu0 %v4374
    %v4376 = vpop.xlane.xlu0 %4375
    %v4377 = vsel %vm66, %v4253, -inf
    %4378 = vmax.xlane.f32.xlu0 %v4377
    %v4379 = vpop.xlane.xlu0 %4378
    %v4380 = vsel %vm66, %v4258, -inf
    %4381 = vmax.xlane.f32.xlu0 %v4380
    %v4382 = vpop.xlane.xlu0 %4381
    %v4383 = vsel %vm66, %v4261, -inf
    %4384 = vmax.xlane.f32.xlu0 %v4383
    %v4385 = vpop.xlane.xlu0 %4384
    %v4386 = vsel %vm66, %v4266, -inf
    %4387 = vmax.xlane.f32.xlu0 %v4386
    %v4388 = vpop.xlane.xlu0 %4387
    %v4389 = vsel %vm66, %v4269, -inf
    %4390 = vmax.xlane.f32.xlu0 %v4389
    %v4391 = vpop.xlane.xlu0 %4390
    %v4392 = vsel %vm66, %v4274, -inf
    %4393 = vmax.xlane.f32.xlu0 %v4392
    %v4394 = vpop.xlane.xlu0 %4393
    %v4395 = vsel %vm66, %v4277, -inf
    %4396 = vmax.xlane.f32.xlu0 %v4395
    %v4397 = vpop.xlane.xlu0 %4396
    %v4398 = vsel %vm66, %v4282, -inf
    %4399 = vmax.xlane.f32.xlu0 %v4398
    %v4400 = vpop.xlane.xlu0 %4399
    %v4401 = vsel %vm66, %v4285, -inf
    %4402 = vmax.xlane.f32.xlu0 %v4401
    %v4403 = vpop.xlane.xlu0 %4402
    %v4404 = vsel %vm66, %v4290, -inf
    %4405 = vmax.xlane.f32.xlu0 %v4404
    %v4406 = vpop.xlane.xlu0 %4405
    %v4407 = vsel %vm66, %v4293, -inf
    %4408 = vmax.xlane.f32.xlu0 %v4407
    %v4409 = vpop.xlane.xlu0 %4408
    %v4410 = vsel %vm66, %v4298, -inf
    %4411 = vmax.xlane.f32.xlu0 %v4410
    %v4412 = vpop.xlane.xlu0 %4411
    %v4413 = vsel %vm66, %v4301, -inf
    %4414 = vmax.xlane.f32.xlu0 %v4413
    %v4415 = vpop.xlane.xlu0 %4414
    %v4416 = vsel %vm66, %v4306, -inf
    %4417 = vmax.xlane.f32.xlu0 %v4416
    %v4418 = vpop.xlane.xlu0 %4417
    %v4419 = vsel %vm66, %v4309, -inf
    %4420 = vmax.xlane.f32.xlu0 %v4419
    %v4421 = vpop.xlane.xlu0 %4420
    %v4422 = vsel %vm66, %v4314, -inf
    %4423 = vmax.xlane.f32.xlu0 %v4422
    %v4424 = vpop.xlane.xlu0 %4423
    %v4425 = vsel %vm66, %v4317, -inf
    %4426 = vmax.xlane.f32.xlu0 %v4425
    %v4427 = vpop.xlane.xlu0 %4426
    %v4428 = vsel %vm66, %v4322, -inf
    %4429 = vmax.xlane.f32.xlu0 %v4428
    %v4430 = vpop.xlane.xlu0 %4429
    %v4431 = vsel %vm66, %v4325, -inf
    %4432 = vmax.xlane.f32.xlu0 %v4431
    %v4433 = vpop.xlane.xlu0 %4432
    %v4434 = vsel %vm66, %v4330, -inf
    %4435 = vmax.xlane.f32.xlu0 %v4434
    %v4436 = vpop.xlane.xlu0 %4435
    %v4437 = vsel %vm66, %v4333, -inf
    %4438 = vmax.xlane.f32.xlu0 %v4437
    %v4439 = vpop.xlane.xlu0 %4438
    %v4440 = vsel %vm66, %v4338, -inf
    %4441 = vmax.xlane.f32.xlu0 %v4440
    %v4442 = vpop.xlane.xlu0 %4441
    %v4443 = vsel %vm66, %v4341, -inf
    %4444 = vmax.xlane.f32.xlu0 %v4443
    %v4445 = vpop.xlane.xlu0 %4444
    %v4446 = vsel %vm66, %v4346, -inf
    %4447 = vmax.xlane.f32.xlu0 %v4446
    %v4448 = vpop.xlane.xlu0 %4447
    %v4449 = vsel %vm66, %v4349, -inf
    %4450 = vmax.xlane.f32.xlu0 %v4449
    %v4451 = vpop.xlane.xlu0 %4450
    %v4452 = vsel %vm66, %v4354, -inf
    %4453 = vmax.xlane.f32.xlu0 %v4452
    %v4454 = vpop.xlane.xlu0 %4453
    %v4455 = vsel %vm66, %v4357, -inf
    %4456 = vmax.xlane.f32.xlu0 %v4455
    %v4457 = vpop.xlane.xlu0 %4456
    %v4458 = vsel %vm66, %v4362, -inf
    %4459 = vmax.xlane.f32.xlu0 %v4458
    %v4460 = vpop.xlane.xlu0 %4459
    %v4461 = vsel %vm66, %v4365, -inf
    %4462 = vmax.xlane.f32.xlu0 %v4461
    %v4463 = vpop.xlane.xlu0 %4462
    %v4464 = vsub.f32 %v4242, %v4370
    %v4465 = vsub.f32 %v4245, %v4373
    %v4466 = vsub.f32 %v4250, %v4376
    %v4467 = vsub.f32 %v4253, %v4379
    %v4468 = vsub.f32 %v4258, %v4382
    %v4469 = vsub.f32 %v4261, %v4385
    %v4470 = vsub.f32 %v4266, %v4388
    %v4471 = vsub.f32 %v4269, %v4391
    %v4472 = vsub.f32 %v4274, %v4394
    %v4473 = vsub.f32 %v4277, %v4397
    %v4474 = vsub.f32 %v4282, %v4400
    %v4475 = vsub.f32 %v4285, %v4403
    %v4476 = vsub.f32 %v4290, %v4406
    %v4477 = vsub.f32 %v4293, %v4409
    %v4478 = vsub.f32 %v4298, %v4412
    %v4479 = vsub.f32 %v4301, %v4415
    %v4480 = vsub.f32 %v4306, %v4418
    %v4481 = vsub.f32 %v4309, %v4421
    %v4482 = vsub.f32 %v4314, %v4424
    %v4483 = vsub.f32 %v4317, %v4427
    %v4484 = vsub.f32 %v4322, %v4430
    %v4485 = vsub.f32 %v4325, %v4433
    %v4486 = vsub.f32 %v4330, %v4436
    %v4487 = vsub.f32 %v4333, %v4439
    %v4488 = vsub.f32 %v4338, %v4442
    %v4489 = vsub.f32 %v4341, %v4445
    %v4490 = vsub.f32 %v4346, %v4448
    %v4491 = vsub.f32 %v4349, %v4451
    %v4492 = vsub.f32 %v4354, %v4454
    %v4493 = vsub.f32 %v4357, %v4457
    %v4494 = vsub.f32 %v4362, %v4460
    %v4495 = vsub.f32 %v4365, %v4463
    %v4496 = vmul.f32 %v4464, 1.442695
    %v4497 = vpow.pop %v4496
    %v4498 = vmul.f32 %v4465, 1.442695
    %v4499 = vpow.pop %v4498
    %v4500 = vmul.f32 %v4466, 1.442695
    %v4501 = vpow.pop %v4500
    %v4502 = vmul.f32 %v4467, 1.442695
    %v4503 = vpow.pop %v4502
    %v4504 = vmul.f32 %v4468, 1.442695
    %v4505 = vpow.pop %v4504
    %v4506 = vmul.f32 %v4469, 1.442695
    %v4507 = vpow.pop %v4506
    %v4508 = vmul.f32 %v4470, 1.442695
    %v4509 = vpow.pop %v4508
    %v4510 = vmul.f32 %v4471, 1.442695
    %v4511 = vpow.pop %v4510
    %v4512 = vmul.f32 %v4472, 1.442695
    %v4513 = vpow.pop %v4512
    %v4514 = vmul.f32 %v4473, 1.442695
    %v4515 = vpow.pop %v4514
    %v4516 = vmul.f32 %v4474, 1.442695
    %v4517 = vpow.pop %v4516
    %v4518 = vmul.f32 %v4475, 1.442695
    %v4519 = vpow.pop %v4518
    %v4520 = vmul.f32 %v4476, 1.442695
    %v4521 = vpow.pop %v4520
    %v4522 = vmul.f32 %v4477, 1.442695
    %v4523 = vpow.pop %v4522
    %v4524 = vmul.f32 %v4478, 1.442695
    %v4525 = vpow.pop %v4524
    %v4526 = vmul.f32 %v4479, 1.442695
    %v4527 = vpow.pop %v4526
    %v4528 = vmul.f32 %v4480, 1.442695
    %v4529 = vpow.pop %v4528
    %v4530 = vmul.f32 %v4481, 1.442695
    %v4531 = vpow.pop %v4530
    %v4532 = vmul.f32 %v4482, 1.442695
    %v4533 = vpow.pop %v4532
    %v4534 = vmul.f32 %v4483, 1.442695
    %v4535 = vpow.pop %v4534
    %v4536 = vmul.f32 %v4484, 1.442695
    %v4537 = vpow.pop %v4536
    %v4538 = vmul.f32 %v4485, 1.442695
    %v4539 = vpow.pop %v4538
    %v4540 = vmul.f32 %v4486, 1.442695
    %v4541 = vpow.pop %v4540
    %v4542 = vmul.f32 %v4487, 1.442695
    %v4543 = vpow.pop %v4542
    %v4544 = vmul.f32 %v4488, 1.442695
    %v4545 = vpow.pop %v4544
    %v4546 = vmul.f32 %v4489, 1.442695
    %v4547 = vpow.pop %v4546
    %v4548 = vmul.f32 %v4490, 1.442695
    %v4549 = vpow.pop %v4548
    %v4550 = vmul.f32 %v4491, 1.442695
    %v4551 = vpow.pop %v4550
    %v4552 = vmul.f32 %v4492, 1.442695
    %v4553 = vpow.pop %v4552
    %v4554 = vmul.f32 %v4493, 1.442695
    %v4555 = vpow.pop %v4554
    %v4556 = vmul.f32 %v4494, 1.442695
    %v4557 = vpow.pop %v4556
    %v4558 = vmul.f32 %v4495, 1.442695
    %v4559 = vpow.pop %v4558
    %v4560 = vsel %vm66, %v4497, 0.0
    %4561 = vadd.xlane.f32.xlu0 %v4560
    %v4562 = vpop.xlane.xlu0 %4561
    %v4563 = vsel %vm66, %v4499, 0.0
    %4564 = vadd.xlane.f32.xlu0 %v4563
    %v4565 = vpop.xlane.xlu0 %4564
    %v4566 = vsel %vm66, %v4501, 0.0
    %4567 = vadd.xlane.f32.xlu0 %v4566
    %v4568 = vpop.xlane.xlu0 %4567
    %v4569 = vsel %vm66, %v4503, 0.0
    %4570 = vadd.xlane.f32.xlu0 %v4569
    %v4571 = vpop.xlane.xlu0 %4570
    %v4572 = vsel %vm66, %v4505, 0.0
    %4573 = vadd.xlane.f32.xlu0 %v4572
    %v4574 = vpop.xlane.xlu0 %4573
    %v4575 = vsel %vm66, %v4507, 0.0
    %4576 = vadd.xlane.f32.xlu0 %v4575
    %v4577 = vpop.xlane.xlu0 %4576
    %v4578 = vsel %vm66, %v4509, 0.0
    %4579 = vadd.xlane.f32.xlu0 %v4578
    %v4580 = vpop.xlane.xlu0 %4579
    %v4581 = vsel %vm66, %v4511, 0.0
    %4582 = vadd.xlane.f32.xlu0 %v4581
    %v4583 = vpop.xlane.xlu0 %4582
    %v4584 = vsel %vm66, %v4513, 0.0
    %4585 = vadd.xlane.f32.xlu0 %v4584
    %v4586 = vpop.xlane.xlu0 %4585
    %v4587 = vsel %vm66, %v4515, 0.0
    %4588 = vadd.xlane.f32.xlu0 %v4587
    %v4589 = vpop.xlane.xlu0 %4588
    %v4590 = vsel %vm66, %v4517, 0.0
    %4591 = vadd.xlane.f32.xlu0 %v4590
    %v4592 = vpop.xlane.xlu0 %4591
    %v4593 = vsel %vm66, %v4519, 0.0
    %4594 = vadd.xlane.f32.xlu0 %v4593
    %v4595 = vpop.xlane.xlu0 %4594
    %v4596 = vsel %vm66, %v4521, 0.0
    %4597 = vadd.xlane.f32.xlu0 %v4596
    %v4598 = vpop.xlane.xlu0 %4597
    %v4599 = vsel %vm66, %v4523, 0.0
    %4600 = vadd.xlane.f32.xlu0 %v4599
    %v4601 = vpop.xlane.xlu0 %4600
    %v4602 = vsel %vm66, %v4525, 0.0
    %4603 = vadd.xlane.f32.xlu0 %v4602
    %v4604 = vpop.xlane.xlu0 %4603
    %v4605 = vsel %vm66, %v4527, 0.0
    %4606 = vadd.xlane.f32.xlu0 %v4605
    %v4607 = vpop.xlane.xlu0 %4606
    %v4608 = vsel %vm66, %v4529, 0.0
    %4609 = vadd.xlane.f32.xlu0 %v4608
    %v4610 = vpop.xlane.xlu0 %4609
    %v4611 = vsel %vm66, %v4531, 0.0
    %4612 = vadd.xlane.f32.xlu0 %v4611
    %v4613 = vpop.xlane.xlu0 %4612
    %v4614 = vsel %vm66, %v4533, 0.0
    %4615 = vadd.xlane.f32.xlu0 %v4614
    %v4616 = vpop.xlane.xlu0 %4615
    %v4617 = vsel %vm66, %v4535, 0.0
    %4618 = vadd.xlane.f32.xlu0 %v4617
    %v4619 = vpop.xlane.xlu0 %4618
    %v4620 = vsel %vm66, %v4537, 0.0
    %4621 = vadd.xlane.f32.xlu0 %v4620
    %v4622 = vpop.xlane.xlu0 %4621
    %v4623 = vsel %vm66, %v4539, 0.0
    %4624 = vadd.xlane.f32.xlu0 %v4623
    %v4625 = vpop.xlane.xlu0 %4624
    %v4626 = vsel %vm66, %v4541, 0.0
    %4627 = vadd.xlane.f32.xlu0 %v4626
    %v4628 = vpop.xlane.xlu0 %4627
    %v4629 = vsel %vm66, %v4543, 0.0
    %4630 = vadd.xlane.f32.xlu0 %v4629
    %v4631 = vpop.xlane.xlu0 %4630
    %v4632 = vsel %vm66, %v4545, 0.0
    %4633 = vadd.xlane.f32.xlu0 %v4632
    %v4634 = vpop.xlane.xlu0 %4633
    %v4635 = vsel %vm66, %v4547, 0.0
    %4636 = vadd.xlane.f32.xlu0 %v4635
    %v4637 = vpop.xlane.xlu0 %4636
    %v4638 = vsel %vm66, %v4549, 0.0
    %4639 = vadd.xlane.f32.xlu0 %v4638
    %v4640 = vpop.xlane.xlu0 %4639
    %v4641 = vsel %vm66, %v4551, 0.0
    %4642 = vadd.xlane.f32.xlu0 %v4641
    %v4643 = vpop.xlane.xlu0 %4642
    %v4644 = vsel %vm66, %v4553, 0.0
    %4645 = vadd.xlane.f32.xlu0 %v4644
    %v4646 = vpop.xlane.xlu0 %4645
    %v4647 = vsel %vm66, %v4555, 0.0
    %4648 = vadd.xlane.f32.xlu0 %v4647
    %v4649 = vpop.xlane.xlu0 %4648
    %v4650 = vsel %vm66, %v4557, 0.0
    %4651 = vadd.xlane.f32.xlu0 %v4650
    %v4652 = vpop.xlane.xlu0 %4651
    %v4653 = vsel %vm66, %v4559, 0.0
    %4654 = vadd.xlane.f32.xlu0 %v4653
    %v4655 = vpop.xlane.xlu0 %4654
    %v4656 = vrcp.pop %v4562
    %v4657 = vrcp.pop %v4565
    %v4658 = vrcp.pop %v4568
    %v4659 = vrcp.pop %v4571
    %v4660 = vrcp.pop %v4574
    %v4661 = vrcp.pop %v4577
    %v4662 = vrcp.pop %v4580
    %v4663 = vrcp.pop %v4583
    %v4664 = vrcp.pop %v4586
    %v4665 = vrcp.pop %v4589
    %v4666 = vrcp.pop %v4592
    %v4667 = vrcp.pop %v4595
    %v4668 = vrcp.pop %v4598
    %v4669 = vrcp.pop %v4601
    %v4670 = vrcp.pop %v4604
    %v4671 = vrcp.pop %v4607
    %v4672 = vrcp.pop %v4610
    %v4673 = vrcp.pop %v4613
    %v4674 = vrcp.pop %v4616
    %v4675 = vrcp.pop %v4619
    %v4676 = vrcp.pop %v4622
    %v4677 = vrcp.pop %v4625
    %v4678 = vrcp.pop %v4628
    %v4679 = vrcp.pop %v4631
    %v4680 = vrcp.pop %v4634
    %v4681 = vrcp.pop %v4637
    %v4682 = vrcp.pop %v4640
    %v4683 = vrcp.pop %v4643
    %v4684 = vrcp.pop %v4646
    %v4685 = vrcp.pop %v4649
    %v4686 = vrcp.pop %v4652
    %v4687 = vrcp.pop %v4655
    %v4688 = vmul.f32 %v4497, %v4656
    %v4689 = vmul.f32 %v4499, %v4657
    %v4690 = vmul.f32 %v4501, %v4658
    %v4691 = vmul.f32 %v4503, %v4659
    %v4692 = vmul.f32 %v4505, %v4660
    %v4693 = vmul.f32 %v4507, %v4661
    %v4694 = vmul.f32 %v4509, %v4662
    %v4695 = vmul.f32 %v4511, %v4663
    %v4696 = vmul.f32 %v4513, %v4664
    %v4697 = vmul.f32 %v4515, %v4665
    %v4698 = vmul.f32 %v4517, %v4666
    %v4699 = vmul.f32 %v4519, %v4667
    %v4700 = vmul.f32 %v4521, %v4668
    %v4701 = vmul.f32 %v4523, %v4669
    %v4702 = vmul.f32 %v4525, %v4670
    %v4703 = vmul.f32 %v4527, %v4671
    %v4704 = vmul.f32 %v4529, %v4672
    %v4705 = vmul.f32 %v4531, %v4673
    %v4706 = vmul.f32 %v4533, %v4674
    %v4707 = vmul.f32 %v4535, %v4675
    %v4708 = vmul.f32 %v4537, %v4676
    %v4709 = vmul.f32 %v4539, %v4677
    %v4710 = vmul.f32 %v4541, %v4678
    %v4711 = vmul.f32 %v4543, %v4679
    %v4712 = vmul.f32 %v4545, %v4680
    %v4713 = vmul.f32 %v4547, %v4681
    %v4714 = vmul.f32 %v4549, %v4682
    %v4715 = vmul.f32 %v4551, %v4683
    %v4716 = vmul.f32 %v4553, %v4684
    %v4717 = vmul.f32 %v4555, %v4685
    %v4718 = vmul.f32 %v4557, %v4686
    %v4719 = vmul.f32 %v4559, %v4687
    %v4720 = vmul.f32 %v4068, %v4688
    %v4721 = vmul.f32 %v4071, %v4689
    %v4722 = vmul.f32 %v4076, %v4690
    %v4723 = vmul.f32 %v4079, %v4691
    %v4724 = vmul.f32 %v4084, %v4692
    %v4725 = vmul.f32 %v4087, %v4693
    %v4726 = vmul.f32 %v4092, %v4694
    %v4727 = vmul.f32 %v4095, %v4695
    %v4728 = vmul.f32 %v4100, %v4696
    %v4729 = vmul.f32 %v4103, %v4697
    %v4730 = vmul.f32 %v4108, %v4698
    %v4731 = vmul.f32 %v4111, %v4699
    %v4732 = vmul.f32 %v4116, %v4700
    %v4733 = vmul.f32 %v4119, %v4701
    %v4734 = vmul.f32 %v4124, %v4702
    %v4735 = vmul.f32 %v4127, %v4703
    %v4736 = vmul.f32 %v4132, %v4704
    %v4737 = vmul.f32 %v4135, %v4705
    %v4738 = vmul.f32 %v4140, %v4706
    %v4739 = vmul.f32 %v4143, %v4707
    %v4740 = vmul.f32 %v4148, %v4708
    %v4741 = vmul.f32 %v4151, %v4709
    %v4742 = vmul.f32 %v4156, %v4710
    %v4743 = vmul.f32 %v4159, %v4711
    %v4744 = vmul.f32 %v4164, %v4712
    %v4745 = vmul.f32 %v4167, %v4713
    %v4746 = vmul.f32 %v4172, %v4714
    %v4747 = vmul.f32 %v4175, %v4715
    %v4748 = vmul.f32 %v4180, %v4716
    %v4749 = vmul.f32 %v4183, %v4717
    %v4750 = vmul.f32 %v4188, %v4718
    %v4751 = vmul.f32 %v4191, %v4719
    %4752 = vxpose.xlu0.b32.start [1/16] %v4720, 128
    %4753 = vxpose.xlu0.b32.cont [2/16] %v4721, 128
    %4754 = vxpose.xlu0.b32.cont [3/16] %v4722, 128
    %4755 = vxpose.xlu0.b32.cont [4/16] %v4723, 128
    %4756 = vxpose.xlu0.b32.cont [5/16] 0.0, 128
    %4757 = vxpose.xlu0.b32.cont [6/16] 0.0, 128
    %4758 = vxpose.xlu0.b32.cont [7/16] 0.0, 128
    %4759 = vxpose.xlu0.b32.cont [8/16] 0.0, 128
    %4760 = vxpose.xlu0.b32.cont [9/16] 0.0, 128
    %4761 = vxpose.xlu0.b32.cont [10/16] 0.0, 128
    %4762 = vxpose.xlu0.b32.cont [11/16] 0.0, 128
    %4763 = vxpose.xlu0.b32.cont [12/16] 0.0, 128
    %4764 = vxpose.xlu0.b32.cont [13/16] 0.0, 128
    %4765 = vxpose.xlu0.b32.cont [14/16] 0.0, 128
    %4766 = vxpose.xlu0.b32.cont [15/16] 0.0, 128
    %4767 = vxpose.xlu0.b32.end [16/16] 0.0, 128
    %v4768 = vpop.trf.xlu0
    %v4769 = vpop.trf.xlu0
    %v4770 = vpop.trf.xlu0
    %v4771 = vpop.trf.xlu0
    %v4772 = vpop.trf.xlu0
    %v4773 = vpop.trf.xlu0
    %v4774 = vpop.trf.xlu0
    %v4775 = vpop.trf.xlu0
    %v4776 = vpop.trf.xlu0
    %v4777 = vpop.trf.xlu0
    %v4778 = vpop.trf.xlu0
    %v4779 = vpop.trf.xlu0
    %v4780 = vpop.trf.xlu0
    %v4781 = vpop.trf.xlu0
    %v4782 = vpop.trf.xlu0
    %v4783 = vpop.trf.xlu0
    %4784 = vxpose.xlu0.b32.start [1/16] %v4724, 128
    %4785 = vxpose.xlu0.b32.cont [2/16] %v4725, 128
    %4786 = vxpose.xlu0.b32.cont [3/16] %v4726, 128
    %4787 = vxpose.xlu0.b32.cont [4/16] %v4727, 128
    %4788 = vxpose.xlu0.b32.cont [5/16] 0.0, 128
    %4789 = vxpose.xlu0.b32.cont [6/16] 0.0, 128
    %4790 = vxpose.xlu0.b32.cont [7/16] 0.0, 128
    %4791 = vxpose.xlu0.b32.cont [8/16] 0.0, 128
    %4792 = vxpose.xlu0.b32.cont [9/16] 0.0, 128
    %4793 = vxpose.xlu0.b32.cont [10/16] 0.0, 128
    %4794 = vxpose.xlu0.b32.cont [11/16] 0.0, 128
    %4795 = vxpose.xlu0.b32.cont [12/16] 0.0, 128
    %4796 = vxpose.xlu0.b32.cont [13/16] 0.0, 128
    %4797 = vxpose.xlu0.b32.cont [14/16] 0.0, 128
    %4798 = vxpose.xlu0.b32.cont [15/16] 0.0, 128
    %4799 = vxpose.xlu0.b32.end [16/16] 0.0, 128
    %v4800 = vpop.trf.xlu0
    %v4801 = vpop.trf.xlu0
    %v4802 = vpop.trf.xlu0
    %v4803 = vpop.trf.xlu0
    %v4804 = vpop.trf.xlu0
    %v4805 = vpop.trf.xlu0
    %v4806 = vpop.trf.xlu0
    %v4807 = vpop.trf.xlu0
    %v4808 = vpop.trf.xlu0
    %v4809 = vpop.trf.xlu0
    %v4810 = vpop.trf.xlu0
    %v4811 = vpop.trf.xlu0
    %v4812 = vpop.trf.xlu0
    %v4813 = vpop.trf.xlu0
    %v4814 = vpop.trf.xlu0
    %v4815 = vpop.trf.xlu0
    %4816 = vxpose.xlu0.b32.start [1/16] %v4728, 128
    %4817 = vxpose.xlu0.b32.cont [2/16] %v4729, 128
    %4818 = vxpose.xlu0.b32.cont [3/16] %v4730, 128
    %4819 = vxpose.xlu0.b32.cont [4/16] %v4731, 128
    %4820 = vxpose.xlu0.b32.cont [5/16] 0.0, 128
    %4821 = vxpose.xlu0.b32.cont [6/16] 0.0, 128
    %4822 = vxpose.xlu0.b32.cont [7/16] 0.0, 128
    %4823 = vxpose.xlu0.b32.cont [8/16] 0.0, 128
    %4824 = vxpose.xlu0.b32.cont [9/16] 0.0, 128
    %4825 = vxpose.xlu0.b32.cont [10/16] 0.0, 128
    %4826 = vxpose.xlu0.b32.cont [11/16] 0.0, 128
    %4827 = vxpose.xlu0.b32.cont [12/16] 0.0, 128
    %4828 = vxpose.xlu0.b32.cont [13/16] 0.0, 128
    %4829 = vxpose.xlu0.b32.cont [14/16] 0.0, 128
    %4830 = vxpose.xlu0.b32.cont [15/16] 0.0, 128
    %4831 = vxpose.xlu0.b32.end [16/16] 0.0, 128
    %v4832 = vpop.trf.xlu0
    %v4833 = vpop.trf.xlu0
    %v4834 = vpop.trf.xlu0
    %v4835 = vpop.trf.xlu0
    %v4836 = vpop.trf.xlu0
    %v4837 = vpop.trf.xlu0
    %v4838 = vpop.trf.xlu0
    %v4839 = vpop.trf.xlu0
    %v4840 = vpop.trf.xlu0
    %v4841 = vpop.trf.xlu0
    %v4842 = vpop.trf.xlu0
    %v4843 = vpop.trf.xlu0
    %v4844 = vpop.trf.xlu0
    %v4845 = vpop.trf.xlu0
    %v4846 = vpop.trf.xlu0
    %v4847 = vpop.trf.xlu0
    %4848 = vxpose.xlu0.b32.start [1/16] %v4732, 128
    %4849 = vxpose.xlu0.b32.cont [2/16] %v4733, 128
    %4850 = vxpose.xlu0.b32.cont [3/16] %v4734, 128
    %4851 = vxpose.xlu0.b32.cont [4/16] %v4735, 128
    %4852 = vxpose.xlu0.b32.cont [5/16] 0.0, 128
    %4853 = vxpose.xlu0.b32.cont [6/16] 0.0, 128
    %4854 = vxpose.xlu0.b32.cont [7/16] 0.0, 128
    %4855 = vxpose.xlu0.b32.cont [8/16] 0.0, 128
    %4856 = vxpose.xlu0.b32.cont [9/16] 0.0, 128
    %4857 = vxpose.xlu0.b32.cont [10/16] 0.0, 128
    %4858 = vxpose.xlu0.b32.cont [11/16] 0.0, 128
    %4859 = vxpose.xlu0.b32.cont [12/16] 0.0, 128
    %4860 = vxpose.xlu0.b32.cont [13/16] 0.0, 128
    %4861 = vxpose.xlu0.b32.cont [14/16] 0.0, 128
    %4862 = vxpose.xlu0.b32.cont [15/16] 0.0, 128
    %4863 = vxpose.xlu0.b32.end [16/16] 0.0, 128
    %v4864 = vpop.trf.xlu0
    %v4865 = vpop.trf.xlu0
    %v4866 = vpop.trf.xlu0
    %v4867 = vpop.trf.xlu0
    %v4868 = vpop.trf.xlu0
    %v4869 = vpop.trf.xlu0
    %v4870 = vpop.trf.xlu0
    %v4871 = vpop.trf.xlu0
    %v4872 = vpop.trf.xlu0
    %v4873 = vpop.trf.xlu0
    %v4874 = vpop.trf.xlu0
    %v4875 = vpop.trf.xlu0
    %v4876 = vpop.trf.xlu0
    %v4877 = vpop.trf.xlu0
    %v4878 = vpop.trf.xlu0
    %v4879 = vpop.trf.xlu0
    %4880 = vxpose.xlu0.b32.start [1/16] %v4736, 128
    %4881 = vxpose.xlu0.b32.cont [2/16] %v4737, 128
    %4882 = vxpose.xlu0.b32.cont [3/16] %v4738, 128
    %4883 = vxpose.xlu0.b32.cont [4/16] %v4739, 128
    %4884 = vxpose.xlu0.b32.cont [5/16] 0.0, 128
    %4885 = vxpose.xlu0.b32.cont [6/16] 0.0, 128
    %4886 = vxpose.xlu0.b32.cont [7/16] 0.0, 128
    %4887 = vxpose.xlu0.b32.cont [8/16] 0.0, 128
    %4888 = vxpose.xlu0.b32.cont [9/16] 0.0, 128
    %4889 = vxpose.xlu0.b32.cont [10/16] 0.0, 128
    %4890 = vxpose.xlu0.b32.cont [11/16] 0.0, 128
    %4891 = vxpose.xlu0.b32.cont [12/16] 0.0, 128
    %4892 = vxpose.xlu0.b32.cont [13/16] 0.0, 128
    %4893 = vxpose.xlu0.b32.cont [14/16] 0.0, 128
    %4894 = vxpose.xlu0.b32.cont [15/16] 0.0, 128
    %4895 = vxpose.xlu0.b32.end [16/16] 0.0, 128
    %v4896 = vpop.trf.xlu0
    %v4897 = vpop.trf.xlu0
    %v4898 = vpop.trf.xlu0
    %v4899 = vpop.trf.xlu0
    %v4900 = vpop.trf.xlu0
    %v4901 = vpop.trf.xlu0
    %v4902 = vpop.trf.xlu0
    %v4903 = vpop.trf.xlu0
    %v4904 = vpop.trf.xlu0
    %v4905 = vpop.trf.xlu0
    %v4906 = vpop.trf.xlu0
    %v4907 = vpop.trf.xlu0
    %v4908 = vpop.trf.xlu0
    %v4909 = vpop.trf.xlu0
    %v4910 = vpop.trf.xlu0
    %v4911 = vpop.trf.xlu0
    %4912 = vxpose.xlu0.b32.start [1/16] %v4740, 128
    %4913 = vxpose.xlu0.b32.cont [2/16] %v4741, 128
    %4914 = vxpose.xlu0.b32.cont [3/16] %v4742, 128
    %4915 = vxpose.xlu0.b32.cont [4/16] %v4743, 128
    %4916 = vxpose.xlu0.b32.cont [5/16] 0.0, 128
    %4917 = vxpose.xlu0.b32.cont [6/16] 0.0, 128
    %4918 = vxpose.xlu0.b32.cont [7/16] 0.0, 128
    %4919 = vxpose.xlu0.b32.cont [8/16] 0.0, 128
    %4920 = vxpose.xlu0.b32.cont [9/16] 0.0, 128
    %4921 = vxpose.xlu0.b32.cont [10/16] 0.0, 128
    %4922 = vxpose.xlu0.b32.cont [11/16] 0.0, 128
    %4923 = vxpose.xlu0.b32.cont [12/16] 0.0, 128
    %4924 = vxpose.xlu0.b32.cont [13/16] 0.0, 128
    %4925 = vxpose.xlu0.b32.cont [14/16] 0.0, 128
    %4926 = vxpose.xlu0.b32.cont [15/16] 0.0, 128
    %4927 = vxpose.xlu0.b32.end [16/16] 0.0, 128
    %v4928 = vpop.trf.xlu0
    %v4929 = vpop.trf.xlu0
    %v4930 = vpop.trf.xlu0
    %v4931 = vpop.trf.xlu0
    %v4932 = vpop.trf.xlu0
    %v4933 = vpop.trf.xlu0
    %v4934 = vpop.trf.xlu0
    %v4935 = vpop.trf.xlu0
    %v4936 = vpop.trf.xlu0
    %v4937 = vpop.trf.xlu0
    %v4938 = vpop.trf.xlu0
    %v4939 = vpop.trf.xlu0
    %v4940 = vpop.trf.xlu0
    %v4941 = vpop.trf.xlu0
    %v4942 = vpop.trf.xlu0
    %v4943 = vpop.trf.xlu0
    %4944 = vxpose.xlu0.b32.start [1/16] %v4744, 128
    %4945 = vxpose.xlu0.b32.cont [2/16] %v4745, 128
    %4946 = vxpose.xlu0.b32.cont [3/16] %v4746, 128
    %4947 = vxpose.xlu0.b32.cont [4/16] %v4747, 128
    %4948 = vxpose.xlu0.b32.cont [5/16] 0.0, 128
    %4949 = vxpose.xlu0.b32.cont [6/16] 0.0, 128
    %4950 = vxpose.xlu0.b32.cont [7/16] 0.0, 128
    %4951 = vxpose.xlu0.b32.cont [8/16] 0.0, 128
    %4952 = vxpose.xlu0.b32.cont [9/16] 0.0, 128
    %4953 = vxpose.xlu0.b32.cont [10/16] 0.0, 128
    %4954 = vxpose.xlu0.b32.cont [11/16] 0.0, 128
    %4955 = vxpose.xlu0.b32.cont [12/16] 0.0, 128
    %4956 = vxpose.xlu0.b32.cont [13/16] 0.0, 128
    %4957 = vxpose.xlu0.b32.cont [14/16] 0.0, 128
    %4958 = vxpose.xlu0.b32.cont [15/16] 0.0, 128
    %4959 = vxpose.xlu0.b32.end [16/16] 0.0, 128
    %v4960 = vpop.trf.xlu0
    %v4961 = vpop.trf.xlu0
    %v4962 = vpop.trf.xlu0
    %v4963 = vpop.trf.xlu0
    %v4964 = vpop.trf.xlu0
    %v4965 = vpop.trf.xlu0
    %v4966 = vpop.trf.xlu0
    %v4967 = vpop.trf.xlu0
    %v4968 = vpop.trf.xlu0
    %v4969 = vpop.trf.xlu0
    %v4970 = vpop.trf.xlu0
    %v4971 = vpop.trf.xlu0
    %v4972 = vpop.trf.xlu0
    %v4973 = vpop.trf.xlu0
    %v4974 = vpop.trf.xlu0
    %v4975 = vpop.trf.xlu0
    %4976 = vxpose.xlu0.b32.start [1/16] %v4748, 128
    %4977 = vxpose.xlu0.b32.cont [2/16] %v4749, 128
    %4978 = vxpose.xlu0.b32.cont [3/16] %v4750, 128
    %4979 = vxpose.xlu0.b32.cont [4/16] %v4751, 128
    %4980 = vxpose.xlu0.b32.cont [5/16] 0.0, 128
    %4981 = vxpose.xlu0.b32.cont [6/16] 0.0, 128
    %4982 = vxpose.xlu0.b32.cont [7/16] 0.0, 128
    %4983 = vxpose.xlu0.b32.cont [8/16] 0.0, 128
    %4984 = vxpose.xlu0.b32.cont [9/16] 0.0, 128
    %4985 = vxpose.xlu0.b32.cont [10/16] 0.0, 128
    %4986 = vxpose.xlu0.b32.cont [11/16] 0.0, 128
    %4987 = vxpose.xlu0.b32.cont [12/16] 0.0, 128
    %4988 = vxpose.xlu0.b32.cont [13/16] 0.0, 128
    %4989 = vxpose.xlu0.b32.cont [14/16] 0.0, 128
    %4990 = vxpose.xlu0.b32.cont [15/16] 0.0, 128
    %4991 = vxpose.xlu0.b32.end [16/16] 0.0, 128
    %v4992 = vpop.trf.xlu0
    %v4993 = vpop.trf.xlu0
    %v4994 = vpop.trf.xlu0
    %v4995 = vpop.trf.xlu0
    %v4996 = vpop.trf.xlu0
    %v4997 = vpop.trf.xlu0
    %v4998 = vpop.trf.xlu0
    %v4999 = vpop.trf.xlu0
    %v5000 = vpop.trf.xlu0
    %v5001 = vpop.trf.xlu0
    %v5002 = vpop.trf.xlu0
    %v5003 = vpop.trf.xlu0
    %v5004 = vpop.trf.xlu0
    %v5005 = vpop.trf.xlu0
    %v5006 = vpop.trf.xlu0
    %v5007 = vpop.trf.xlu0
    %v5008 = vadd.f32 %v3112, %v4768
    %v5009 = vadd.f32 %v3113, %v4800
    %v5010 = vadd.f32 %v3114, %v4832
    %v5011 = vadd.f32 %v3115, %v4864
    %v5012 = vadd.f32 %v3116, %v4896
    %v5013 = vadd.f32 %v3117, %v4928
    %v5014 = vadd.f32 %v3118, %v4960
    %v5015 = vadd.f32 %v3119, %v4992
    %v5016 = vld [vmem:[#allocation5 + $0x80] sm:$0x1]
    %v5017 = vld [vmem:[#allocation5 + $0x88] sm:$0x1]
    %v5018 = vsel %vm569, %v5008, 0.0
    %5019 = vadd.xlane.f32.xlu0 %v5018
    %v5020 = vpop.xlane.xlu0 %5019
    %v5021 = vsel %vm569, %v5009, 0.0
    %5022 = vadd.xlane.f32.xlu0 %v5021
    %v5023 = vpop.xlane.xlu0 %5022
    %v5024 = vsel %vm569, %v5010, 0.0
    %5025 = vadd.xlane.f32.xlu0 %v5024
    %v5026 = vpop.xlane.xlu0 %5025
    %v5027 = vsel %vm569, %v5011, 0.0
    %5028 = vadd.xlane.f32.xlu0 %v5027
    %v5029 = vpop.xlane.xlu0 %5028
    %v5030 = vsel %vm569, %v5012, 0.0
    %5031 = vadd.xlane.f32.xlu0 %v5030
    %v5032 = vpop.xlane.xlu0 %5031
    %v5033 = vsel %vm569, %v5013, 0.0
    %5034 = vadd.xlane.f32.xlu0 %v5033
    %v5035 = vpop.xlane.xlu0 %5034
    %v5036 = vsel %vm569, %v5014, 0.0
    %5037 = vadd.xlane.f32.xlu0 %v5036
    %v5038 = vpop.xlane.xlu0 %5037
    %v5039 = vsel %vm569, %v5015, 0.0
    %5040 = vadd.xlane.f32.xlu0 %v5039
    %v5041 = vpop.xlane.xlu0 %5040
    %v5042 = vmul.f32 %v5020, %v594
    %v5043 = vmul.f32 %v5023, %v594
    %v5044 = vmul.f32 %v5026, %v594
    %v5045 = vmul.f32 %v5029, %v594
    %v5046 = vmul.f32 %v5032, %v594
    %v5047 = vmul.f32 %v5035, %v594
    %v5048 = vmul.f32 %v5038, %v594
    %v5049 = vmul.f32 %v5041, %v594
    %v5050 = vsub.f32 %v5008, %v5042
    %v5051 = vsub.f32 %v5009, %v5043
    %v5052 = vsub.f32 %v5010, %v5044
    %v5053 = vsub.f32 %v5011, %v5045
    %v5054 = vsub.f32 %v5012, %v5046
    %v5055 = vsub.f32 %v5013, %v5047
    %v5056 = vsub.f32 %v5014, %v5048
    %v5057 = vsub.f32 %v5015, %v5049
    %v5058 = vmul.f32 %v5050, %v5050
    %v5059 = vmul.f32 %v5051, %v5051
    %v5060 = vmul.f32 %v5052, %v5052
    %v5061 = vmul.f32 %v5053, %v5053
    %v5062 = vmul.f32 %v5054, %v5054
    %v5063 = vmul.f32 %v5055, %v5055
    %v5064 = vmul.f32 %v5056, %v5056
    %v5065 = vmul.f32 %v5057, %v5057
    %v5066 = vsel %vm569, %v5058, 0.0
    %5067 = vadd.xlane.f32.xlu0 %v5066
    %v5068 = vpop.xlane.xlu0 %5067
    %v5069 = vsel %vm569, %v5059, 0.0
    %5070 = vadd.xlane.f32.xlu0 %v5069
    %v5071 = vpop.xlane.xlu0 %5070
    %v5072 = vsel %vm569, %v5060, 0.0
    %5073 = vadd.xlane.f32.xlu0 %v5072
    %v5074 = vpop.xlane.xlu0 %5073
    %v5075 = vsel %vm569, %v5061, 0.0
    %5076 = vadd.xlane.f32.xlu0 %v5075
    %v5077 = vpop.xlane.xlu0 %5076
    %v5078 = vsel %vm569, %v5062, 0.0
    %5079 = vadd.xlane.f32.xlu0 %v5078
    %v5080 = vpop.xlane.xlu0 %5079
    %v5081 = vsel %vm569, %v5063, 0.0
    %5082 = vadd.xlane.f32.xlu0 %v5081
    %v5083 = vpop.xlane.xlu0 %5082
    %v5084 = vsel %vm569, %v5064, 0.0
    %5085 = vadd.xlane.f32.xlu0 %v5084
    %v5086 = vpop.xlane.xlu0 %5085
    %v5087 = vsel %vm569, %v5065, 0.0
    %5088 = vadd.xlane.f32.xlu0 %v5087
    %v5089 = vpop.xlane.xlu0 %5088
    %v5090 = vmul.f32 %v5068, %v594
    %v5091 = vmul.f32 %v5071, %v594
    %v5092 = vmul.f32 %v5074, %v594
    %v5093 = vmul.f32 %v5077, %v594
    %v5094 = vmul.f32 %v5080, %v594
    %v5095 = vmul.f32 %v5083, %v594
    %v5096 = vmul.f32 %v5086, %v594
    %v5097 = vmul.f32 %v5089, %v594
    %v5098 = vadd.f32 %v5090, 1e-05
    %v5099 = vadd.f32 %v5091, 1e-05
    %v5100 = vadd.f32 %v5092, 1e-05
    %v5101 = vadd.f32 %v5093, 1e-05
    %v5102 = vadd.f32 %v5094, 1e-05
    %v5103 = vadd.f32 %v5095, 1e-05
    %v5104 = vadd.f32 %v5096, 1e-05
    %v5105 = vadd.f32 %v5097, 1e-05
    %v5106 = vrsqrt.pop %v5098
    %v5107 = vmul.f32 %v5098, %v5106
    %vm5108 = vcmp.eq.f32.partialorder %v5098, inf
    %v5109 = vsel %vm5108, %v5098, %v5107
    %vm5110 = vcmp.eq.f32.partialorder %v5098, 0.0
    %v5111 = vand.u32 %v5098, 2147483648
    %v5112 = vsel %vm5110, %v5111, %v5109
    %v5113 = vrsqrt.pop %v5099
    %v5114 = vmul.f32 %v5099, %v5113
    %vm5115 = vcmp.eq.f32.partialorder %v5099, inf
    %v5116 = vsel %vm5115, %v5099, %v5114
    %vm5117 = vcmp.eq.f32.partialorder %v5099, 0.0
    %v5118 = vand.u32 %v5099, 2147483648
    %v5119 = vsel %vm5117, %v5118, %v5116
    %v5120 = vrsqrt.pop %v5100
    %v5121 = vmul.f32 %v5100, %v5120
    %vm5122 = vcmp.eq.f32.partialorder %v5100, inf
    %v5123 = vsel %vm5122, %v5100, %v5121
    %vm5124 = vcmp.eq.f32.partialorder %v5100, 0.0
    %v5125 = vand.u32 %v5100, 2147483648
    %v5126 = vsel %vm5124, %v5125, %v5123
    %v5127 = vrsqrt.pop %v5101
    %v5128 = vmul.f32 %v5101, %v5127
    %vm5129 = vcmp.eq.f32.partialorder %v5101, inf
    %v5130 = vsel %vm5129, %v5101, %v5128
    %vm5131 = vcmp.eq.f32.partialorder %v5101, 0.0
    %v5132 = vand.u32 %v5101, 2147483648
    %v5133 = vsel %vm5131, %v5132, %v5130
    %v5134 = vrsqrt.pop %v5102
    %v5135 = vmul.f32 %v5102, %v5134
    %vm5136 = vcmp.eq.f32.partialorder %v5102, inf
    %v5137 = vsel %vm5136, %v5102, %v5135
    %vm5138 = vcmp.eq.f32.partialorder %v5102, 0.0
    %v5139 = vand.u32 %v5102, 2147483648
    %v5140 = vsel %vm5138, %v5139, %v5137
    %v5141 = vrsqrt.pop %v5103
    %v5142 = vmul.f32 %v5103, %v5141
    %vm5143 = vcmp.eq.f32.partialorder %v5103, inf
    %v5144 = vsel %vm5143, %v5103, %v5142
    %vm5145 = vcmp.eq.f32.partialorder %v5103, 0.0
    %v5146 = vand.u32 %v5103, 2147483648
    %v5147 = vsel %vm5145, %v5146, %v5144
    %v5148 = vrsqrt.pop %v5104
    %v5149 = vmul.f32 %v5104, %v5148
    %vm5150 = vcmp.eq.f32.partialorder %v5104, inf
    %v5151 = vsel %vm5150, %v5104, %v5149
    %vm5152 = vcmp.eq.f32.partialorder %v5104, 0.0
    %v5153 = vand.u32 %v5104, 2147483648
    %v5154 = vsel %vm5152, %v5153, %v5151
    %v5155 = vrsqrt.pop %v5105
    %v5156 = vmul.f32 %v5105, %v5155
    %vm5157 = vcmp.eq.f32.partialorder %v5105, inf
    %v5158 = vsel %vm5157, %v5105, %v5156
    %vm5159 = vcmp.eq.f32.partialorder %v5105, 0.0
    %v5160 = vand.u32 %v5105, 2147483648
    %v5161 = vsel %vm5159, %v5160, %v5158
    %v5162 = vrcp.pop %v5112
    %v5163 = vmul.f32 %v5050, %v5162
    %v5164 = vrcp.pop %v5119
    %v5165 = vmul.f32 %v5051, %v5164
    %v5166 = vrcp.pop %v5126
    %v5167 = vmul.f32 %v5052, %v5166
    %v5168 = vrcp.pop %v5133
    %v5169 = vmul.f32 %v5053, %v5168
    %v5170 = vrcp.pop %v5140
    %v5171 = vmul.f32 %v5054, %v5170
    %v5172 = vrcp.pop %v5147
    %v5173 = vmul.f32 %v5055, %v5172
    %v5174 = vrcp.pop %v5154
    %v5175 = vmul.f32 %v5056, %v5174
    %v5176 = vrcp.pop %v5161
    %v5177 = vmul.f32 %v5057, %v5176
    %v5178 = vlaneseq
    %v5179 = vshrl.u32 %v5178, 7
    %v5180 = vsub.s32 0, %v5179
    %v5181 = vrot.slane %v5016, %v5180
    %v5182 = vmul.f32 %v5163, %v5181
    %v5183 = vmul.f32 %v5165, %v5181
    %v5184 = vmul.f32 %v5167, %v5181
    %v5185 = vmul.f32 %v5169, %v5181
    %v5186 = vmul.f32 %v5171, %v5181
    %v5187 = vmul.f32 %v5173, %v5181
    %v5188 = vmul.f32 %v5175, %v5181
    %v5189 = vmul.f32 %v5177, %v5181
    %v5190 = vlaneseq
    %v5191 = vshrl.u32 %v5190, 7
    %v5192 = vsub.s32 0, %v5191
    %v5193 = vrot.slane %v5017, %v5192
    %v5194 = vadd.f32 %v5182, %v5193
    %v5195 = vadd.f32 %v5183, %v5193
    %v5196 = vadd.f32 %v5184, %v5193
    %v5197 = vadd.f32 %v5185, %v5193
    %v5198 = vadd.f32 %v5186, %v5193
    %v5199 = vadd.f32 %v5187, %v5193
    %v5200 = vadd.f32 %v5188, %v5193
    %v5201 = vadd.f32 %v5189, %v5193
    %v5202 = vpack.c.bf16 %v5195, %v5194
    %v5203 = vpack.c.bf16 %v5197, %v5196
    %v5204 = vpack.c.bf16 %v5199, %v5198
    %v5205 = vpack.c.bf16 %v5201, %v5200
    %v5206 = vld [vmem:[#allocation2 + $0x7c] sm:$0xf]
    %v5207 = vld [vmem:[#allocation2 + $0x80] sm:$0xf]
    %v5208 = vld [vmem:[#allocation2 + $0x84] sm:$0xf]
    %v5209 = vld [vmem:[#allocation2 + $0x88] sm:$0xf]
    %v5210 = vld [vmem:[#allocation5 + $0x90] sm:$0x1]
    %v5211 = vlaneseq
    %v5212 = vshrl.u32 %v5211, 7
    %v5213 = vsub.s32 0, %v5212
    %v5214 = vrot.slane %v5210, %v5213
    %v5219 = vunpack.c.l.b16 %v5206
    %v5220 = vunpack.c.l.b16 %v5207
    %v5221 = vunpack.c.l.b16 %v5208
    %v5222 = vunpack.c.l.b16 %v5209
    %v5223 = vpack.c.b16 %v5220, %v5219
    %v5224 = vpack.c.b16 %v5222, %v5221
    %v5228 = vsel %vm569, %v5202, 0
    %v5231 = vsel %vm569, %v5203, 0
    %v5234 = vsel %vm569, %v5204, 0
    %v5237 = vsel %vm569, %v5205, 0
    %5239 = vmatprep.subr.bf16.mxu0 0
    %5240 = vmatpush1.bf16.msra.mxu0 %v5223
    %5241 = vmatprep.subr.bf16.mxu0 0
    %5242 = vmatpush1.bf16.msra.mxu0 %v5224
    %5243 = vmatprep.subr.bf16.mxu0 0
    %5244 = vmatpush1.bf16.msra.mxu0 0
    %5245 = vmatprep.subr.bf16.mxu0 0
    %5246 = vmatpush1.bf16.msra.mxu0 0
    %5247 = vmatprep.subr.bf16.mxu0 0
    %5248 = vmatpush1.bf16.msra.mxu0 0
    %5249 = vmatprep.subr.bf16.mxu0 0
    %5250 = vmatpush1.bf16.msra.mxu0 0
    %5251 = vmatprep.subr.bf16.mxu0 0
    %5252 = vmatpush1.bf16.msra.mxu0 0
    %5253 = vmatprep.subr.bf16.mxu0 0
    %5254 = vmatpush1.bf16.msra.mxu0 0
    %5255 = vmatprep.subr.bf16.mxu0 0
    %5256 = vmatpush1.bf16.msra.mxu0 0
    %5257 = vmatprep.subr.bf16.mxu0 0
    %5258 = vmatpush1.bf16.msra.mxu0 0
    %5259 = vmatprep.subr.bf16.mxu0 0
    %5260 = vmatpush1.bf16.msra.mxu0 0
    %5261 = vmatprep.subr.bf16.mxu0 0
    %5262 = vmatpush1.bf16.msra.mxu0 0
    %5263 = vmatprep.subr.bf16.mxu0 0
    %5264 = vmatpush1.bf16.msra.mxu0 0
    %5265 = vmatprep.subr.bf16.mxu0 0
    %5266 = vmatpush1.bf16.msra.mxu0 0
    %5267 = vmatprep.subr.bf16.mxu0 0
    %5268 = vmatpush1.bf16.msra.mxu0 0
    %5269 = vmatprep.subr.bf16.mxu0 0
    %5270 = vmatpush1.bf16.msra.mxu0 0
    %5271 = vmatprep.mubr.bf16.mxu0 0
    %5272 = vmatmul.mubr.bf16.gmra.mrb[0].mxu0 %v5228
    %v5273 = vpop.f32.mrb[0].mxu0
    %v5274 = vadd.f32 %v5214, %v5273
    %v5275 = vpop.f32.mrb[0].mxu0
    %v5276 = vpop.f32.mrb[0].mxu0
    %v5277 = vadd.f32 %v5214, %v5276
    %v5278 = vpop.f32.mrb[0].mxu0
    %5279 = vmatprep.mubr.bf16.mxu0 0
    %5280 = vmatmul.mubr.bf16.gmra.mrb[0].mxu0 %v5231
    %v5281 = vpop.f32.mrb[0].mxu0
    %v5282 = vadd.f32 %v5214, %v5281
    %v5283 = vpop.f32.mrb[0].mxu0
    %v5284 = vpop.f32.mrb[0].mxu0
    %v5285 = vadd.f32 %v5214, %v5284
    %v5286 = vpop.f32.mrb[0].mxu0
    %5287 = vmatprep.mubr.bf16.mxu0 0
    %5288 = vmatmul.mubr.bf16.gmra.mrb[0].mxu0 %v5234
    %v5289 = vpop.f32.mrb[0].mxu0
    %v5290 = vadd.f32 %v5214, %v5289
    %v5291 = vpop.f32.mrb[0].mxu0
    %v5292 = vpop.f32.mrb[0].mxu0
    %v5293 = vadd.f32 %v5214, %v5292
    %v5294 = vpop.f32.mrb[0].mxu0
    %5295 = vmatprep.mubr.bf16.mxu0 0
    %5296 = vmatmul.mubr.bf16.gmra.mrb[0].mxu0 %v5237
    %v5297 = vpop.f32.mrb[0].mxu0
    %v5298 = vadd.f32 %v5214, %v5297
    %v5299 = vpop.f32.mrb[0].mxu0
    %v5300 = vpop.f32.mrb[0].mxu0
    %v5301 = vadd.f32 %v5214, %v5300
    %v5302 = vpop.f32.mrb[0].mxu0
    %5303 = vdwg.mxu0
    %v5304 = vmul.f32 %v5274, 0.5
    %v5305 = vmul.f32 %v5277, 0.5
    %v5306 = vmul.f32 %v5282, 0.5
    %v5307 = vmul.f32 %v5285, 0.5
    %v5308 = vmul.f32 %v5290, 0.5
    %v5309 = vmul.f32 %v5293, 0.5
    %v5310 = vmul.f32 %v5298, 0.5
    %v5311 = vmul.f32 %v5301, 0.5
    %v5312 = vmul.f32 %v5274, %v1277
    %v5313 = vmul.f32 %v5277, %v1277
    %v5314 = vmul.f32 %v5282, %v1277
    %v5315 = vmul.f32 %v5285, %v1277
    %v5316 = vmul.f32 %v5290, %v1277
    %v5317 = vmul.f32 %v5293, %v1277
    %v5318 = vmul.f32 %v5298, %v1277
    %v5319 = vmul.f32 %v5301, %v1277
    %v5320 = verf.f32.pop %v5312
    %v5321 = verf.f32.pop %v5313
    %v5322 = verf.f32.pop %v5314
    %v5323 = verf.f32.pop %v5315
    %v5324 = verf.f32.pop %v5316
    %v5325 = verf.f32.pop %v5317
    %v5326 = verf.f32.pop %v5318
    %v5327 = verf.f32.pop %v5319
    %v5328 = vadd.f32 %v5320, 1.0
    %v5329 = vadd.f32 %v5321, 1.0
    %v5330 = vadd.f32 %v5322, 1.0
    %v5331 = vadd.f32 %v5323, 1.0
    %v5332 = vadd.f32 %v5324, 1.0
    %v5333 = vadd.f32 %v5325, 1.0
    %v5334 = vadd.f32 %v5326, 1.0
    %v5335 = vadd.f32 %v5327, 1.0
    %v5336 = vmul.f32 %v5304, %v5328
    %v5337 = vmul.f32 %v5305, %v5329
    %v5338 = vmul.f32 %v5306, %v5330
    %v5339 = vmul.f32 %v5307, %v5331
    %v5340 = vmul.f32 %v5308, %v5332
    %v5341 = vmul.f32 %v5309, %v5333
    %v5342 = vmul.f32 %v5310, %v5334
    %v5343 = vmul.f32 %v5311, %v5335
    %v5344 = vpack.c.bf16 %v5337, %v5336
    %v5345 = vpack.c.bf16 %v5339, %v5338
    %v5346 = vpack.c.bf16 %v5341, %v5340
    %v5347 = vpack.c.bf16 %v5343, %v5342
    %v5348 = vld [vmem:[#allocation2 + $0x8c] sm:$0xf]
    %v5349 = vld [vmem:[#allocation2 + $0x90] sm:$0xf]
    %v5350 = vld [vmem:[#allocation2 + $0x94] sm:$0xf]
    %v5351 = vld [vmem:[#allocation2 + $0x98] sm:$0xf]
    %v5352 = vld [vmem:[#allocation2 + $0x9c] sm:$0xf]
    %v5353 = vld [vmem:[#allocation2 + $0xa0] sm:$0xf]
    %v5354 = vld [vmem:[#allocation2 + $0xa4] sm:$0xf]
    %v5355 = vld [vmem:[#allocation2 + $0xa8] sm:$0xf]
    %v5356 = vld [vmem:[#allocation5 + $0x98] sm:$0x1]
    %v5357 = vlaneseq
    %v5358 = vshrl.u32 %v5357, 7
    %v5359 = vsub.s32 0, %v5358
    %v5360 = vrot.slane %v5356, %v5359
    %v5369 = vunpack.c.l.b16 %v5348
    %v5370 = vunpack.c.l.b16 %v5349
    %v5371 = vunpack.c.l.b16 %v5350
    %v5372 = vunpack.c.l.b16 %v5351
    %v5373 = vunpack.c.l.b16 %v5352
    %v5374 = vunpack.c.l.b16 %v5353
    %v5375 = vunpack.c.l.b16 %v5354
    %v5376 = vunpack.c.l.b16 %v5355
    %v5377 = vpack.c.b16 %v5370, %v5369
    %v5378 = vpack.c.b16 %v5372, %v5371
    %v5379 = vpack.c.b16 %v5374, %v5373
    %v5380 = vpack.c.b16 %v5376, %v5375
    %v5386 = vsel %vm2836, %v5344, 0
    %v5389 = vsel %vm2836, %v5345, 0
    %v5392 = vsel %vm2836, %v5346, 0
    %v5395 = vsel %vm2836, %v5347, 0
    %5397 = vmatprep.subr.bf16.mxu0 0
    %5398 = vmatpush1.bf16.msra.mxu0 %v5377
    %5399 = vmatprep.subr.bf16.mxu0 0
    %5400 = vmatpush1.bf16.msra.mxu0 %v5378
    %5401 = vmatprep.subr.bf16.mxu0 0
    %5402 = vmatpush1.bf16.msra.mxu0 %v5379
    %5403 = vmatprep.subr.bf16.mxu0 0
    %5404 = vmatpush1.bf16.msra.mxu0 %v5380
    %5405 = vmatprep.subr.bf16.mxu0 0
    %5406 = vmatpush1.bf16.msra.mxu0 0
    %5407 = vmatprep.subr.bf16.mxu0 0
    %5408 = vmatpush1.bf16.msra.mxu0 0
    %5409 = vmatprep.subr.bf16.mxu0 0
    %5410 = vmatpush1.bf16.msra.mxu0 0
    %5411 = vmatprep.subr.bf16.mxu0 0
    %5412 = vmatpush1.bf16.msra.mxu0 0
    %5413 = vmatprep.subr.bf16.mxu0 0
    %5414 = vmatpush1.bf16.msra.mxu0 0
    %5415 = vmatprep.subr.bf16.mxu0 0
    %5416 = vmatpush1.bf16.msra.mxu0 0
    %5417 = vmatprep.subr.bf16.mxu0 0
    %5418 = vmatpush1.bf16.msra.mxu0 0
    %5419 = vmatprep.subr.bf16.mxu0 0
    %5420 = vmatpush1.bf16.msra.mxu0 0
    %5421 = vmatprep.subr.bf16.mxu0 0
    %5422 = vmatpush1.bf16.msra.mxu0 0
    %5423 = vmatprep.subr.bf16.mxu0 0
    %5424 = vmatpush1.bf16.msra.mxu0 0
    %5425 = vmatprep.subr.bf16.mxu0 0
    %5426 = vmatpush1.bf16.msra.mxu0 0
    %5427 = vmatprep.subr.bf16.mxu0 0
    %5428 = vmatpush1.bf16.msra.mxu0 0
    %5429 = vmatprep.mubr.bf16.mxu0 0
    %5430 = vmatmul.mubr.bf16.gmra.mrb[0].mxu0 %v5386
    %v5431 = vpop.f32.mrb[0].mxu0
    %v5432 = vadd.f32 %v5360, %v5431
    %v5433 = vpop.f32.mrb[0].mxu0
    %v5434 = vpop.f32.mrb[0].mxu0
    %v5435 = vadd.f32 %v5360, %v5434
    %v5436 = vpop.f32.mrb[0].mxu0
    %5437 = vmatprep.mubr.bf16.mxu0 0
    %5438 = vmatmul.mubr.bf16.gmra.mrb[0].mxu0 %v5389
    %v5439 = vpop.f32.mrb[0].mxu0
    %v5440 = vadd.f32 %v5360, %v5439
    %v5441 = vpop.f32.mrb[0].mxu0
    %v5442 = vpop.f32.mrb[0].mxu0
    %v5443 = vadd.f32 %v5360, %v5442
    %v5444 = vpop.f32.mrb[0].mxu0
    %5445 = vmatprep.mubr.bf16.mxu0 0
    %5446 = vmatmul.mubr.bf16.gmra.mrb[0].mxu0 %v5392
    %v5447 = vpop.f32.mrb[0].mxu0
    %v5448 = vadd.f32 %v5360, %v5447
    %v5449 = vpop.f32.mrb[0].mxu0
    %v5450 = vpop.f32.mrb[0].mxu0
    %v5451 = vadd.f32 %v5360, %v5450
    %v5452 = vpop.f32.mrb[0].mxu0
    %5453 = vmatprep.mubr.bf16.mxu0 0
    %5454 = vmatmul.mubr.bf16.gmra.mrb[0].mxu0 %v5395
    %v5455 = vpop.f32.mrb[0].mxu0
    %v5456 = vadd.f32 %v5360, %v5455
    %v5457 = vpop.f32.mrb[0].mxu0
    %v5458 = vpop.f32.mrb[0].mxu0
    %v5459 = vadd.f32 %v5360, %v5458
    %v5460 = vpop.f32.mrb[0].mxu0
    %5461 = vdwg.mxu0
    %v5462 = vld [vmem:[#allocation2 + $0xac] sm:$0xf]
    %v5463 = vld [vmem:[#allocation2 + $0xb0] sm:$0xf]
    %v5464 = vld [vmem:[#allocation2 + $0xb4] sm:$0xf]
    %v5465 = vld [vmem:[#allocation2 + $0xb8] sm:$0xf]
    %v5466 = vld [vmem:[#allocation2 + $0xbc] sm:$0xf]
    %v5467 = vld [vmem:[#allocation2 + $0xc0] sm:$0xf]
    %v5468 = vld [vmem:[#allocation2 + $0xc4] sm:$0xf]
    %v5469 = vld [vmem:[#allocation2 + $0xc8] sm:$0xf]
    %v5470 = vld [vmem:[#allocation5 + $0xa0] sm:$0x1]
    %v5471 = vlaneseq
    %v5472 = vshrl.u32 %v5471, 7
    %v5473 = vsub.s32 0, %v5472
    %v5474 = vrot.slane %v5470, %v5473
    %v5483 = vunpack.c.l.b16 %v5462
    %v5484 = vunpack.c.l.b16 %v5463
    %v5485 = vunpack.c.l.b16 %v5464
    %v5486 = vunpack.c.l.b16 %v5465
    %v5487 = vunpack.c.l.b16 %v5466
    %v5488 = vunpack.c.l.b16 %v5467
    %v5489 = vunpack.c.l.b16 %v5468
    %v5490 = vunpack.c.l.b16 %v5469
    %v5491 = vpack.c.b16 %v5484, %v5483
    %v5492 = vpack.c.b16 %v5486, %v5485
    %v5493 = vpack.c.b16 %v5488, %v5487
    %v5494 = vpack.c.b16 %v5490, %v5489
    %5499 = vmatprep.subr.bf16.mxu0 0
    %5500 = vmatpush1.bf16.msra.mxu0 %v5491
    %5501 = vmatprep.subr.bf16.mxu0 0
    %5502 = vmatpush1.bf16.msra.mxu0 %v5492
    %5503 = vmatprep.subr.bf16.mxu0 0
    %5504 = vmatpush1.bf16.msra.mxu0 %v5493
    %5505 = vmatprep.subr.bf16.mxu0 0
    %5506 = vmatpush1.bf16.msra.mxu0 %v5494
    %5507 = vmatprep.subr.bf16.mxu0 0
    %5508 = vmatpush1.bf16.msra.mxu0 0
    %5509 = vmatprep.subr.bf16.mxu0 0
    %5510 = vmatpush1.bf16.msra.mxu0 0
    %5511 = vmatprep.subr.bf16.mxu0 0
    %5512 = vmatpush1.bf16.msra.mxu0 0
    %5513 = vmatprep.subr.bf16.mxu0 0
    %5514 = vmatpush1.bf16.msra.mxu0 0
    %5515 = vmatprep.subr.bf16.mxu0 0
    %5516 = vmatpush1.bf16.msra.mxu0 0
    %5517 = vmatprep.subr.bf16.mxu0 0
    %5518 = vmatpush1.bf16.msra.mxu0 0
    %5519 = vmatprep.subr.bf16.mxu0 0
    %5520 = vmatpush1.bf16.msra.mxu0 0
    %5521 = vmatprep.subr.bf16.mxu0 0
    %5522 = vmatpush1.bf16.msra.mxu0 0
    %5523 = vmatprep.subr.bf16.mxu0 0
    %5524 = vmatpush1.bf16.msra.mxu0 0
    %5525 = vmatprep.subr.bf16.mxu0 0
    %5526 = vmatpush1.bf16.msra.mxu0 0
    %5527 = vmatprep.subr.bf16.mxu0 0
    %5528 = vmatpush1.bf16.msra.mxu0 0
    %5529 = vmatprep.subr.bf16.mxu0 0
    %5530 = vmatpush1.bf16.msra.mxu0 0
    %5531 = vmatprep.mubr.bf16.mxu0 0
    %5532 = vmatmul.mubr.bf16.gmra.mrb[0].mxu0 %v5386
    %v5533 = vpop.f32.mrb[0].mxu0
    %v5534 = vadd.f32 %v5474, %v5533
    %v5535 = vpop.f32.mrb[0].mxu0
    %v5536 = vpop.f32.mrb[0].mxu0
    %v5537 = vadd.f32 %v5474, %v5536
    %v5538 = vpop.f32.mrb[0].mxu0
    %5539 = vmatprep.mubr.bf16.mxu0 0
    %5540 = vmatmul.mubr.bf16.gmra.mrb[0].mxu0 %v5389
    %v5541 = vpop.f32.mrb[0].mxu0
    %v5542 = vadd.f32 %v5474, %v5541
    %v5543 = vpop.f32.mrb[0].mxu0
    %v5544 = vpop.f32.mrb[0].mxu0
    %v5545 = vadd.f32 %v5474, %v5544
    %v5546 = vpop.f32.mrb[0].mxu0
    %5547 = vmatprep.mubr.bf16.mxu0 0
    %5548 = vmatmul.mubr.bf16.gmra.mrb[0].mxu0 %v5392
    %v5549 = vpop.f32.mrb[0].mxu0
    %v5550 = vadd.f32 %v5474, %v5549
    %v5551 = vpop.f32.mrb[0].mxu0
    %v5552 = vpop.f32.mrb[0].mxu0
    %v5553 = vadd.f32 %v5474, %v5552
    %v5554 = vpop.f32.mrb[0].mxu0
    %5555 = vmatprep.mubr.bf16.mxu0 0
    %5556 = vmatmul.mubr.bf16.gmra.mrb[0].mxu0 %v5395
    %v5557 = vpop.f32.mrb[0].mxu0
    %v5558 = vadd.f32 %v5474, %v5557
    %v5559 = vpop.f32.mrb[0].mxu0
    %v5560 = vpop.f32.mrb[0].mxu0
    %v5561 = vadd.f32 %v5474, %v5560
    %v5562 = vpop.f32.mrb[0].mxu0
    %5563 = vdwg.mxu0
    %v5564 = vsel %vm569, %v5534, -inf
    %5565 = vmax.xlane.f32.xlu0 %v5564
    %v5566 = vpop.xlane.xlu0 %5565
    %v5567 = vsel %vm569, %v5537, -inf
    %5568 = vmax.xlane.f32.xlu0 %v5567
    %v5569 = vpop.xlane.xlu0 %5568
    %v5570 = vsel %vm569, %v5542, -inf
    %5571 = vmax.xlane.f32.xlu0 %v5570
    %v5572 = vpop.xlane.xlu0 %5571
    %v5573 = vsel %vm569, %v5545, -inf
    %5574 = vmax.xlane.f32.xlu0 %v5573
    %v5575 = vpop.xlane.xlu0 %5574
    %v5576 = vsel %vm569, %v5550, -inf
    %5577 = vmax.xlane.f32.xlu0 %v5576
    %v5578 = vpop.xlane.xlu0 %5577
    %v5579 = vsel %vm569, %v5553, -inf
    %5580 = vmax.xlane.f32.xlu0 %v5579
    %v5581 = vpop.xlane.xlu0 %5580
    %v5582 = vsel %vm569, %v5558, -inf
    %5583 = vmax.xlane.f32.xlu0 %v5582
    %v5584 = vpop.xlane.xlu0 %5583
    %v5585 = vsel %vm569, %v5561, -inf
    %5586 = vmax.xlane.f32.xlu0 %v5585
    %v5587 = vpop.xlane.xlu0 %5586
    %v5588 = vsub.f32 %v5534, %v5566
    %v5589 = vsub.f32 %v5537, %v5569
    %v5590 = vsub.f32 %v5542, %v5572
    %v5591 = vsub.f32 %v5545, %v5575
    %v5592 = vsub.f32 %v5550, %v5578
    %v5593 = vsub.f32 %v5553, %v5581
    %v5594 = vsub.f32 %v5558, %v5584
    %v5595 = vsub.f32 %v5561, %v5587
    %v5596 = vmul.f32 %v5588, 1.442695
    %v5597 = vpow.pop %v5596
    %v5598 = vmul.f32 %v5589, 1.442695
    %v5599 = vpow.pop %v5598
    %v5600 = vmul.f32 %v5590, 1.442695
    %v5601 = vpow.pop %v5600
    %v5602 = vmul.f32 %v5591, 1.442695
    %v5603 = vpow.pop %v5602
    %v5604 = vmul.f32 %v5592, 1.442695
    %v5605 = vpow.pop %v5604
    %v5606 = vmul.f32 %v5593, 1.442695
    %v5607 = vpow.pop %v5606
    %v5608 = vmul.f32 %v5594, 1.442695
    %v5609 = vpow.pop %v5608
    %v5610 = vmul.f32 %v5595, 1.442695
    %v5611 = vpow.pop %v5610
    %v5612 = vsel %vm569, %v5597, 0.0
    %5613 = vadd.xlane.f32.xlu0 %v5612
    %v5614 = vpop.xlane.xlu0 %5613
    %v5615 = vsel %vm569, %v5599, 0.0
    %5616 = vadd.xlane.f32.xlu0 %v5615
    %v5617 = vpop.xlane.xlu0 %5616
    %v5618 = vsel %vm569, %v5601, 0.0
    %5619 = vadd.xlane.f32.xlu0 %v5618
    %v5620 = vpop.xlane.xlu0 %5619
    %v5621 = vsel %vm569, %v5603, 0.0
    %5622 = vadd.xlane.f32.xlu0 %v5621
    %v5623 = vpop.xlane.xlu0 %5622
    %v5624 = vsel %vm569, %v5605, 0.0
    %5625 = vadd.xlane.f32.xlu0 %v5624
    %v5626 = vpop.xlane.xlu0 %5625
    %v5627 = vsel %vm569, %v5607, 0.0
    %5628 = vadd.xlane.f32.xlu0 %v5627
    %v5629 = vpop.xlane.xlu0 %5628
    %v5630 = vsel %vm569, %v5609, 0.0
    %5631 = vadd.xlane.f32.xlu0 %v5630
    %v5632 = vpop.xlane.xlu0 %5631
    %v5633 = vsel %vm569, %v5611, 0.0
    %5634 = vadd.xlane.f32.xlu0 %v5633
    %v5635 = vpop.xlane.xlu0 %5634
    %v5636 = vrcp.pop %v5614
    %v5637 = vrcp.pop %v5617
    %v5638 = vrcp.pop %v5620
    %v5639 = vrcp.pop %v5623
    %v5640 = vrcp.pop %v5626
    %v5641 = vrcp.pop %v5629
    %v5642 = vrcp.pop %v5632
    %v5643 = vrcp.pop %v5635
    %v5644 = vmul.f32 %v5597, %v5636
    %v5645 = vmul.f32 %v5599, %v5637
    %v5646 = vmul.f32 %v5601, %v5638
    %v5647 = vmul.f32 %v5603, %v5639
    %v5648 = vmul.f32 %v5605, %v5640
    %v5649 = vmul.f32 %v5607, %v5641
    %v5650 = vmul.f32 %v5609, %v5642
    %v5651 = vmul.f32 %v5611, %v5643
    %v5652 = vmul.f32 %v5432, %v5644
    %v5653 = vmul.f32 %v5435, %v5645
    %v5654 = vmul.f32 %v5440, %v5646
    %v5655 = vmul.f32 %v5443, %v5647
    %v5656 = vmul.f32 %v5448, %v5648
    %v5657 = vmul.f32 %v5451, %v5649
    %v5658 = vmul.f32 %v5456, %v5650
    %v5659 = vmul.f32 %v5459, %v5651
    %v5660 = vadd.f32 %v5008, %v5652
    %v5661 = vadd.f32 %v5009, %v5653
    %v5662 = vadd.f32 %v5010, %v5654
    %v5663 = vadd.f32 %v5011, %v5655
    %v5664 = vadd.f32 %v5012, %v5656
    %v5665 = vadd.f32 %v5013, %v5657
    %v5666 = vadd.f32 %v5014, %v5658
    %v5667 = vadd.f32 %v5015, %v5659
    %5670 = vrot.lane.b32.xlu0 %v5661, 32
    %v5671 = vpop.permute.xlu0 %5670
    %5672 = vrot.lane.b32.xlu0 %v5665, 32
    %v5673 = vpop.permute.xlu0 %5672
    %5678 = vrot.lane.b32.xlu0 %v5662, 64
    %v5679 = vpop.permute.xlu0 %5678
    %5680 = vrot.lane.b32.xlu0 %v5666, 64
    %v5681 = vpop.permute.xlu0 %5680
    %5686 = vrot.lane.b32.xlu0 %v5663, 96
    %v5687 = vpop.permute.xlu0 %5686
    %5688 = vrot.lane.b32.xlu0 %v5667, 96
    %v5689 = vpop.permute.xlu0 %5688
    %v5692 = vsel %vm569, %v5660, %v5671
    %v5693 = vsel %vm569, %v5664, %v5673
    %v5694 = vsel %vm2836, %v5692, %v5679
    %v5695 = vsel %vm2836, %v5693, %v5681
    %vm5696 = vcmask 785408
    %v5697 = vsel %vm5696, %v5694, %v5687
    %v5698 = vsel %vm5696, %v5695, %v5689
    %5699 = vst [vmem:[%s4] sm:$0xff] %v5697
    %5700 = vst [vmem:[%s4 + $0x8] sm:$0xff] %v5698
    // Predicated region
    $region26: #{fwd.1} parent=1 // pred_check
      _
    $region27: #{fwd.1} parent=1 // pred_check_branch
      %5702 = sbr.rel (0) target = $region29
    $region28: #{fwd.1} parent=1 // pred_region
      _
    $region29: #{fwd.1} parent=1 // pred_fallthru
      _
    // Predicated region
    $region30: #{fwd.1} parent=1 // pred_check
      _
    $region31: #{fwd.1} parent=1 // pred_check_branch
      %5704 = sbr.rel (0) target = $region33
    $region32: #{fwd.1} parent=1 // pred_region
      %s5706 = ssub.s32 1024, 1024
      %5707 = vsyncadd [#allocation4], %s5706
      %s5708 = sshll.u32 [#allocation7], 4
      %s5709 = int_to_ptr.vmem [resolvable:$true] %s5708
      %5714 = dma.vmem_to_hbm [thread:$0]  %s5709, 1024, %s5, [#allocation4], 128, 128, 8
    $region33: #{fwd.1} parent=1 // pred_fallthru
      _
    // Predicated region
    $region34: #{fwd.1} parent=1 // pred_check
      _
    $region35: #{fwd.1} parent=1 // pred_check_branch
      %5716 = sbr.rel (0) target = $region37
    $region36: #{fwd.1} parent=1 // pred_region
      _
    $region37: #{fwd.1} parent=1 // pred_fallthru
      _
    // Predicated region
    $region38: #{fwd.1} parent=1 // pred_check
      _
    $region39: #{fwd.1} parent=1 // pred_check_branch
      %5718 = sbr.rel (0) target = $region41
    $region40: #{fwd.1} parent=1 // pred_region
      _
    $region41: #{fwd.1} parent=1 // pred_fallthru
      _
    // Predicated region
    $region42: #{fwd.1} parent=1 // pred_check
      _
    $region43: #{fwd.1} parent=1 // pred_check_branch
      %5720 = sbr.rel (0) target = $region45
    $region44: #{fwd.1} parent=1 // pred_region
      %5721 = dma.done [#allocation4], 1024
    $region45: #{fwd.1} parent=1 // pred_fallthru
      _
    // Predicated region
    $region46: #{fwd.1} parent=1 // pred_check
      _
    $region47: #{fwd.1} parent=1 // pred_check_branch
      %5723 = sbr.rel (0) target = $region49
    $region48: #{fwd.1} parent=1 // pred_region
      _
    $region49: #{fwd.1} parent=1 // pred_fallthru
      _
    %5724 = vsyncpa [#allocation3], 1
    %5725 = vsyncpa [#allocation6], 1
    %5726 = vsyncpa [#allocation4], 1

</llo_original>
